<compile_context>
chip_gen: v7x
topology: tpu7x:2x2x1
jax: 0.10.0
libtpu: 0.0.40
codegen_flags: <defaults>
</compile_context>

<pallas_src>
import jax
import jax.numpy as jnp
from jax import lax
from jax.experimental import pallas as pl
from jax.experimental.pallas import tpu as pltpu


def _round_up(x, m):
    return ((x + m - 1) // m) * m


def _layout_constants(hidden_dim):
    """Per-direction lane layout.

    packed (4H<=128): HW = GW = 128, gate slot stride S = 32, slot order [f, i, o, g]
                      (raw (i,f,g,o) -> slots (1,0,3,2)); c/h live in lanes [0:H).
    unpacked        : per-gate 128-lane padded blocks (as in the original kernel).
    """
    H = hidden_dim
    packed = 4 * H <= 128
    if packed:
        HW, GW = 128, 128
        S = GW // 4
        slot_of = (1, 0, 3, 2)          # raw gate k (i,f,g,o) -> packed slot
    else:
        GP = _round_up(H, 128)
        HW, GW, S = GP, 4 * GP, GP
        slot_of = (0, 1, 2, 3)
    return packed, HW, GW, S, slot_of


# ---------------------------------------------------------------------------
# Fused kernel body builder
# ---------------------------------------------------------------------------
def _make_fused_kernel(*, T, B_pad, HW, GW, S, num_layers, ndirs, n_seq, packed):

    def kernel(*refs):
        # ---- unpack refs: inputs..., output, scratch ----------------------
        pos = 0
        x_ref = refs[pos]; pos += 1
        layer_refs = []
        for _ in range(num_layers):
            wihs, bs = [], []
            for _ in range(ndirs):
                wihs.append(refs[pos]); bs.append(refs[pos + 1]); pos += 2
            whh_ref = refs[pos]; pos += 1
            layer_refs.append((wihs, bs, whh_ref))
        fcw_ref = refs[pos]; fcb_ref = refs[pos + 1]; pos += 2
        out_ref = refs[pos]; pos += 1
        gx_refs = refs[pos:pos + ndirs]; pos += ndirs
        seq_refs = refs[pos:pos + n_seq]

        if packed:
            # lane masks for the single-tanh activation trick (hoisted, loop invariant)
            lane = lax.broadcasted_iota(jnp.int32, (B_pad, GW), 1)
            is_tanh = lane >= 3 * S                      # slot 3 = cell (g) gate
            scale = jnp.where(is_tanh, 1.0, 0.5).astype(jnp.float32)

        cur_in_ref = x_ref                               # layer-0 input (T*B_pad, D_in)

        for layer in range(num_layers):
            wih_refs, b_refs, whh_ref = layer_refs[layer]
            is_last = layer == num_layers - 1
            out_seq_ref = None if is_last else seq_refs[layer % n_seq]

            # Hoisted input projections: one big MXU matmul per direction, each into
            # its OWN buffer (no WAW hazard between directions), off the critical path.
            for d in range(ndirs):
                gx_refs[d][...] = (
                    jnp.dot(cur_in_ref[...], wih_refs[d][...],
                            preferred_element_type=jnp.float32)
                    + b_refs[d][...])                    # (T*B_pad, GW)

            whh_cat = whh_ref[...]                       # (ndirs*HW, ndirs*GW), block-diag
            h_list = [jnp.zeros((B_pad, HW), jnp.float32) for _ in range(ndirs)]
            c_list = [jnp.zeros((B_pad, HW), jnp.float32) for _ in range(ndirs)]

            # Interleaved fwd/bwd recurrence: one time loop, one fused matmul per step.
            # Fully unrolled (T small & static); use lax.fori_loop(unroll=2..4) for T >> 16.
            for step in range(T):
                rows = [step * B_pad if d == 0 else (T - 1 - step) * B_pad
                        for d in range(ndirs)]
                gx_parts = [gx_refs[d][rows[d]:rows[d] + B_pad, :] for d in range(ndirs)]
                gx_cat = gx_parts[0] if ndirs == 1 else jnp.concatenate(gx_parts, axis=-1)
                h_in = h_list[0] if ndirs == 1 else jnp.concatenate(h_list, axis=-1)
                pre = gx_cat + jnp.dot(h_in, whh_cat,
                                       preferred_element_type=jnp.float32)

                for d in range(ndirs):
                    p = pre[:, d * GW:(d + 1) * GW]      # vreg-aligned slice
                    if packed:
                        # slots: [f | i | o | g]; one tanh pass for all activations.
                        tv = jnp.tanh(p * scale)
                        a = jnp.where(is_tanh, tv, 0.5 * tv + 0.5)
                        o_al = pltpu.roll(a, 2 * S, axis=1)   # o -> home lanes (symmetric)
                        r_a = pltpu.roll(a, S, axis=1)        # {i, g} -> home lanes
                        r_b = pltpu.roll(a, 3 * S, axis=1)    # (product commutes)
                        c_list[d] = a * c_list[d] + r_a * r_b   # f*c + i*g
                        h_list[d] = o_al * jnp.tanh(c_list[d])
                    else:
                        def _sg(v):
                            return 0.5 * jnp.tanh(0.5 * v) + 0.5
                        i_g = _sg(p[:, 0 * S:1 * S])
                        f_g = _sg(p[:, 1 * S:2 * S])
                        g_g = jnp.tanh(p[:, 2 * S:3 * S])
                        o_g = _sg(p[:, 3 * S:4 * S])
                        c_list[d] = f_g * c_list[d] + i_g * g_g
                        h_list[d] = o_g * jnp.tanh(c_list[d])

                    if out_seq_ref is not None:
                        # aligned (B_pad, HW) slab store; last layer never stores its seq.
                        out_seq_ref[rows[d]:rows[d] + B_pad, d * HW:(d + 1) * HW] = h_list[d]

            if not is_last:
                cur_in_ref = out_seq_ref                 # next layer reads [fwd | bwd]

        # ---- FC + ReLU on the concat of final hidden states (loop carries) --------
        h_fin = h_list[0] if ndirs == 1 else jnp.concatenate(h_list, axis=-1)
        y = jnp.dot(h_fin, fcw_ref[...], preferred_element_type=jnp.float32) + fcb_ref[...]
        out_ref[...] = jnp.maximum(y, 0.0)               # full (B_pad, 128) lane-dense tile

    return kernel


# ---------------------------------------------------------------------------
# Wrapper: one pallas_call for the whole forward pass
# ---------------------------------------------------------------------------
def sequence_analyzer_forward(x, padded_params, *, hidden_dim, num_layers,
                              bidirectional, fc_out=128):
    """x: (B, T, input_dim) float32 (batch_first, like the PyTorch module)."""
    B, T, D_in = x.shape
    ndirs = 2 if bidirectional else 1
    packed, HW, GW, S, _ = _layout_constants(hidden_dim)
    B_pad = _round_up(B, 8)
    n_seq = 0 if num_layers == 1 else min(num_layers - 1, 2)

    # time-major, batch padded to a full sublane tile; row = t*B_pad + b
    xt = jnp.transpose(x, (1, 0, 2)).astype(jnp.float32)            # (T, B, D_in)
    if B_pad != B:
        xt = jnp.pad(xt, ((0, 0), (0, B_pad - B), (0, 0)))
    x2d = xt.reshape(T * B_pad, D_in)

    args = [x2d]
    in_specs = [pl.BlockSpec(x2d.shape, lambda i: (0, 0))]
    for layer in range(num_layers):
        lp = padded_params["lstm"][layer]
        for d in range(ndirs):
            for a in (lp["wih"][d], lp["b"][d]):
                args.append(a)
                in_specs.append(pl.BlockSpec(a.shape, lambda i: (0, 0)))
        args.append(lp["whh_cat"])
        in_specs.append(pl.BlockSpec(lp["whh_cat"].shape, lambda i: (0, 0)))
    for a in (padded_params["fc_w"], padded_params["fc_b"]):
        args.append(a)
        in_specs.append(pl.BlockSpec(a.shape, lambda i: (0, 0)))

    # gx: one buffer per direction (no WAW hazard); seq: ping-pong layer outputs.
    # For long T / v7x's 64 MiB VMEM, block the time axis instead of full materialization.
    scratch_shapes = [pltpu.VMEM((T * B_pad, GW), jnp.float32) for _ in range(ndirs)]
    scratch_shapes += [pltpu.VMEM((T * B_pad, ndirs * HW), jnp.float32)
                       for _ in range(n_seq)]

    kernel = _make_fused_kernel(T=T, B_pad=B_pad, HW=HW, GW=GW, S=S,
                                num_layers=num_layers, ndirs=ndirs,
                                n_seq=n_seq, packed=packed)

    out = pl.pallas_call(
        kernel,
        out_shape=jax.ShapeDtypeStruct((B_pad, fc_out), jnp.float32),
        grid_spec=pltpu.PrefetchScalarGridSpec(
            num_scalar_prefetch=0,
            grid=(1,),
            in_specs=in_specs,
            out_specs=pl.BlockSpec((B_pad, fc_out), lambda i: (0, 0)),
            scratch_shapes=scratch_shapes,
        ),
        compiler_params=pltpu.CompilerParams(
            dimension_semantics=("arbitrary",)),
    )(*args)
    return out[:B]                                        # drop pad batch rows outside


# ---------------------------------------------------------------------------
# Parameter init (raw "math" layout) + re-layout into the padded kernel layout
# ---------------------------------------------------------------------------
def init_params(key, input_dim, hidden_dim, num_layers, bidirectional, fc_out=128):
    """Raw params: W_ih (D_in,4H), W_hh (H,4H), b = b_ih+b_hh (1,4H); gate order (i,f,g,o)."""
    num_dirs = 2 if bidirectional else 1
    k = 1.0 / jnp.sqrt(jnp.float32(hidden_dim))
    params = {"lstm": {}}
    for layer in range(num_layers):
        d_in = input_dim if layer == 0 else hidden_dim * num_dirs
        for d in range(num_dirs):
            key, k1, k2, k3, k4 = jax.random.split(key, 5)
            w_ih = jax.random.uniform(k1, (d_in, 4 * hidden_dim), jnp.float32, -k, k)
            w_hh = jax.random.uniform(k2, (hidden_dim, 4 * hidden_dim), jnp.float32, -k, k)
            b_ih = jax.random.uniform(k3, (4 * hidden_dim,), jnp.float32, -k, k)
            b_hh = jax.random.uniform(k4, (4 * hidden_dim,), jnp.float32, -k, k)
            params["lstm"][(layer, d)] = (w_ih, w_hh, (b_ih + b_hh)[None, :])
    fc_in = hidden_dim * num_dirs
    kf = 1.0 / jnp.sqrt(jnp.float32(fc_in))
    key, k1, k2 = jax.random.split(key, 3)
    params["fc_w"] = jax.random.uniform(k1, (fc_in, fc_out), jnp.float32, -kf, kf)
    params["fc_b"] = jax.random.uniform(k2, (fc_out,), jnp.float32, -kf, kf)[None, :]
    return params


def _relayout_gate_cols(w, H, S, GW, slot_of):
    """(rows, 4H) raw gate order (i,f,g,o) -> (rows, GW), raw gate k at slot slot_of[k]."""
    rows = w.shape[0]
    out = jnp.zeros((rows, GW), jnp.float32)
    for k in range(4):
        s = slot_of[k] * S
        out = out.at[:, s:s + H].set(w[:, k * H:(k + 1) * H])
    return out


def pad_params_for_kernel(raw, input_dim, hidden_dim, num_layers, bidirectional,
                          fc_out=128):
    """Re-lay out raw params into the lane-tile-padded layout the fused kernel expects."""
    ndirs = 2 if bidirectional else 1
    H = hidden_dim
    packed, HW, GW, S, slot_of = _layout_constants(H)
    padded = {"lstm": []}
    for layer in range(num_layers):
        wihs, bs = [], []
        whh_cat = jnp.zeros((ndirs * HW, ndirs * GW), jnp.float32)   # block-diagonal
        for d in range(ndirs):
            w_ih, w_hh, b = raw["lstm"][(layer, d)]
            wih_cols = _relayout_gate_cols(w_ih, H, S, GW, slot_of)  # (d_in_raw, GW)
            if layer == 0:
                wih_p = wih_cols
            else:
                # layer>0 input is the padded concat [fwd | bwd] of width ndirs*HW
                wih_p = jnp.zeros((ndirs * HW, GW), jnp.float32)
                for di in range(ndirs):
                    wih_p = wih_p.at[di * HW:di * HW + H, :].set(
                        wih_cols[di * H:(di + 1) * H, :])
            whh_cols = _relayout_gate_cols(w_hh, H, S, GW, slot_of)  # (H, GW)
            whh_cat = whh_cat.at[d * HW:d * HW + H,
                                 d * GW:(d + 1) * GW].set(whh_cols)
            b_p = _relayout_gate_cols(b, H, S, GW, slot_of)          # (1, GW)
            wihs.append(wih_p)
            bs.append(b_p)
        padded["lstm"].append({"wih": wihs, "b": bs, "whh_cat": whh_cat})
    fcw_p = jnp.zeros((ndirs * HW, fc_out), jnp.float32)
    for d in range(ndirs):
        fcw_p = fcw_p.at[d * HW:d * HW + H, :].set(raw["fc_w"][d * H:(d + 1) * H, :])
    padded["fc_w"] = fcw_p
    padded["fc_b"] = raw["fc_b"]
    return padded


# ---------------------------------------------------------------------------
# Pure-JAX reference (mirrors the PyTorch module) for correctness checking
# ---------------------------------------------------------------------------
def reference_forward(x, raw, hidden_dim, num_layers, bidirectional):
    B, T, _ = x.shape
    ndirs = 2 if bidirectional else 1
    H = hidden_dim
    layer_in = x
    finals = []
    for layer in range(num_layers):
        outs, finals = [], []
        for d in range(ndirs):
            w_ih, w_hh, b = raw["lstm"][(layer, d)]
            seq = layer_in if d == 0 else layer_in[:, ::-1, :]
            h = jnp.zeros((B, H), jnp.float32)
            c = jnp.zeros((B, H), jnp.float32)
            hs = []
            for t in range(T):
                g = seq[:, t, :] @ w_ih + h @ w_hh + b
                i = jax.nn.sigmoid(g[:, 0 * H:1 * H])
                f = jax.nn.sigmoid(g[:, 1 * H:2 * H])
                gg = jnp.tanh(g[:, 2 * H:3 * H])
                o = jax.nn.sigmoid(g[:, 3 * H:4 * H])
                c = f * c + i * gg
                h = o * jnp.tanh(c)
                hs.append(h)
            hseq = jnp.stack(hs, axis=1)
            if d == 1:
                hseq = hseq[:, ::-1, :]
            outs.append(hseq)
            finals.append(h)
        layer_in = jnp.concatenate(outs, axis=-1)
    out_last = jnp.concatenate(finals, axis=-1) if ndirs == 2 else finals[0]
    return jax.nn.relu(out_last @ raw["fc_w"] + raw["fc_b"])


# ---------------------------------------------------------------------------
if __name__ == "__main__":
    # Small, LSTM-consistent shapes: batch=2, seq=8, input_dim=16, hidden_dim=32, 2 layers, bi.
    B, T, INPUT_DIM, HIDDEN_DIM, NUM_LAYERS, BIDIR = 2, 8, 16, 32, 2, True

    key = jax.random.PRNGKey(0)
    key, xkey = jax.random.split(key)
    x = jax.random.normal(xkey, (B, T, INPUT_DIM), dtype=jnp.float32)

    raw_params = init_params(key, INPUT_DIM, HIDDEN_DIM, NUM_LAYERS, BIDIR, fc_out=128)
    padded_params = pad_params_for_kernel(raw_params, INPUT_DIM, HIDDEN_DIM,
                                          NUM_LAYERS, BIDIR, fc_out=128)

    features = sequence_analyzer_forward(
        x, padded_params, hidden_dim=HIDDEN_DIM, num_layers=NUM_LAYERS,
        bidirectional=BIDIR, fc_out=128)
    features = jax.block_until_ready(features)

    assert features.shape == (B, 128), features.shape
    assert bool(jnp.all(features >= 0.0))  # ReLU output

    ref = reference_forward(x, raw_params, HIDDEN_DIM, NUM_LAYERS, BIDIR)
    max_err = float(jnp.max(jnp.abs(features - ref)))
    assert jnp.allclose(features, ref, atol=1e-3, rtol=1e-3), max_err

    print("KERNEL_OK")
</pallas_src>

<mosaic_0001>
module attributes {stable_mosaic.version = 11 : i64} {
  func.func @kernel(%arg0: i32, %arg1: memref<64x16xf32, #tpu.memory_space<vmem>>, %arg2: memref<16x128xf32, #tpu.memory_space<vmem>>, %arg3: memref<1x128xf32, #tpu.memory_space<vmem>>, %arg4: memref<16x128xf32, #tpu.memory_space<vmem>>, %arg5: memref<1x128xf32, #tpu.memory_space<vmem>>, %arg6: memref<256x256xf32, #tpu.memory_space<vmem>>, %arg7: memref<256x128xf32, #tpu.memory_space<vmem>>, %arg8: memref<1x128xf32, #tpu.memory_space<vmem>>, %arg9: memref<256x128xf32, #tpu.memory_space<vmem>>, %arg10: memref<1x128xf32, #tpu.memory_space<vmem>>, %arg11: memref<256x256xf32, #tpu.memory_space<vmem>>, %arg12: memref<256x128xf32, #tpu.memory_space<vmem>>, %arg13: memref<1x128xf32, #tpu.memory_space<vmem>>, %arg14: memref<8x128xf32, #tpu.memory_space<vmem>>, %arg15: memref<64x128xf32, #tpu.memory_space<vmem>>, %arg16: memref<64x128xf32, #tpu.memory_space<vmem>>, %arg17: memref<64x256xf32, #tpu.memory_space<vmem>>) attributes {dimension_semantics = [#tpu.dimension_semantics<arbitrary>], iteration_bounds = array<i64: 1>, scalar_prefetch = 0 : i64, scratch_operands = 3 : i64, tpu.core_type = #tpu.core_type<tc>, window_params = [{pipeline_mode = #tpu.pipeline_mode<synchronous>, transform_indices = @transform_0, window_bounds = array<i64: 64, 16>}, {pipeline_mode = #tpu.pipeline_mode<synchronous>, transform_indices = @transform_1, window_bounds = array<i64: 16, 128>}, {pipeline_mode = #tpu.pipeline_mode<synchronous>, transform_indices = @transform_2, window_bounds = array<i64: 1, 128>}, {pipeline_mode = #tpu.pipeline_mode<synchronous>, transform_indices = @transform_3, window_bounds = array<i64: 16, 128>}, {pipeline_mode = #tpu.pipeline_mode<synchronous>, transform_indices = @transform_4, window_bounds = array<i64: 1, 128>}, {pipeline_mode = #tpu.pipeline_mode<synchronous>, transform_indices = @transform_5, window_bounds = array<i64: 256, 256>}, {pipeline_mode = #tpu.pipeline_mode<synchronous>, transform_indices = @transform_6, window_bounds = array<i64: 256, 128>}, {pipeline_mode = #tpu.pipeline_mode<synchronous>, transform_indices = @transform_7, window_bounds = array<i64: 1, 128>}, {pipeline_mode = #tpu.pipeline_mode<synchronous>, transform_indices = @transform_8, window_bounds = array<i64: 256, 128>}, {pipeline_mode = #tpu.pipeline_mode<synchronous>, transform_indices = @transform_9, window_bounds = array<i64: 1, 128>}, {pipeline_mode = #tpu.pipeline_mode<synchronous>, transform_indices = @transform_10, window_bounds = array<i64: 256, 256>}, {pipeline_mode = #tpu.pipeline_mode<synchronous>, transform_indices = @transform_11, window_bounds = array<i64: 256, 128>}, {pipeline_mode = #tpu.pipeline_mode<synchronous>, transform_indices = @transform_12, window_bounds = array<i64: 1, 128>}, {pipeline_mode = #tpu.pipeline_mode<synchronous>, transform_indices = @transform_13, window_bounds = array<i64: 8, 128>}]} {
    %0 = tpu.iota {dimensions = array<i32: 1>} : vector<8x128xi32>
    %c96_i32 = arith.constant 96 : i32
    %1 = vector.broadcast %c96_i32 : i32 to vector<8x128xi32>
    %2 = arith.cmpi sge, %0, %1 : vector<8x128xi32>
    %cst = arith.constant 1.000000e+00 : f32
    %cst_0 = arith.constant 5.000000e-01 : f32
    %3 = vector.broadcast %cst : f32 to vector<8x128xf32>
    %4 = vector.broadcast %cst_0 : f32 to vector<8x128xf32>
    %5 = arith.select %2, %3, %4 : vector<8x128xi1>, vector<8x128xf32>
    %c0 = arith.constant 0 : index
    %c0_1 = arith.constant 0 : index
    %6 = vector.load %arg1[%c0, %c0_1] : memref<64x16xf32, #tpu.memory_space<vmem>>, vector<64x16xf32>
    %c0_2 = arith.constant 0 : index
    %c0_3 = arith.constant 0 : index
    %7 = vector.load %arg2[%c0_2, %c0_3] : memref<16x128xf32, #tpu.memory_space<vmem>>, vector<16x128xf32>
    %cst_4 = arith.constant dense<0.000000e+00> : vector<64x128xf32>
    %8 = tpu.matmul %6, %7, %cst_4 {dimension_numbers = #tpu.dot_dimension_numbers<[1], [0], [0], [1], [0, 0, 1, 1], [], []>} : vector<64x16xf32>, vector<16x128xf32>, vector<64x128xf32> -> vector<64x128xf32>
    %c0_5 = arith.constant 0 : index
    %c0_6 = arith.constant 0 : index
    %9 = vector.load %arg3[%c0_5, %c0_6] : memref<1x128xf32, #tpu.memory_space<vmem>>, vector<1x128xf32>
    %10 = vector.broadcast %9 : vector<1x128xf32> to vector<64x128xf32>
    %11 = arith.addf %8, %10 : vector<64x128xf32>
    %c0_7 = arith.constant 0 : index
    %c0_8 = arith.constant 0 : index
    %12 = vector.load %arg15[%c0_7, %c0_8] : memref<64x128xf32, #tpu.memory_space<vmem>>, vector<64x128xf32>
    tpu.vector_store %arg15[%c0_7, %c0_8], %11 {strides = array<i32>} : memref<64x128xf32, #tpu.memory_space<vmem>>, vector<64x128xf32>,
    %c0_9 = arith.constant 0 : index
    %c0_10 = arith.constant 0 : index
    %13 = vector.load %arg1[%c0_9, %c0_10] : memref<64x16xf32, #tpu.memory_space<vmem>>, vector<64x16xf32>
    %c0_11 = arith.constant 0 : index
    %c0_12 = arith.constant 0 : index
    %14 = vector.load %arg4[%c0_11, %c0_12] : memref<16x128xf32, #tpu.memory_space<vmem>>, vector<16x128xf32>
    %cst_13 = arith.constant dense<0.000000e+00> : vector<64x128xf32>
    %15 = tpu.matmul %13, %14, %cst_13 {dimension_numbers = #tpu.dot_dimension_numbers<[1], [0], [0], [1], [0, 0, 1, 1], [], []>} : vector<64x16xf32>, vector<16x128xf32>, vector<64x128xf32> -> vector<64x128xf32>
    %c0_14 = arith.constant 0 : index
    %c0_15 = arith.constant 0 : index
    %16 = vector.load %arg5[%c0_14, %c0_15] : memref<1x128xf32, #tpu.memory_space<vmem>>, vector<1x128xf32>
    %17 = vector.broadcast %16 : vector<1x128xf32> to vector<64x128xf32>
    %18 = arith.addf %15, %17 : vector<64x128xf32>
    %c0_16 = arith.constant 0 : index
    %c0_17 = arith.constant 0 : index
    %19 = vector.load %arg16[%c0_16, %c0_17] : memref<64x128xf32, #tpu.memory_space<vmem>>, vector<64x128xf32>
    tpu.vector_store %arg16[%c0_16, %c0_17], %18 {strides = array<i32>} : memref<64x128xf32, #tpu.memory_space<vmem>>, vector<64x128xf32>,
    %c0_18 = arith.constant 0 : index
    %c0_19 = arith.constant 0 : index
    %20 = vector.load %arg6[%c0_18, %c0_19] : memref<256x256xf32, #tpu.memory_space<vmem>>, vector<256x256xf32>
    %cst_20 = arith.constant 0.000000e+00 : f32
    %21 = vector.broadcast %cst_20 : f32 to vector<8x128xf32>
    %cst_21 = arith.constant 0.000000e+00 : f32
    %22 = vector.broadcast %cst_21 : f32 to vector<8x128xf32>
    %cst_22 = arith.constant 0.000000e+00 : f32
    %23 = vector.broadcast %cst_22 : f32 to vector<8x128xf32>
    %cst_23 = arith.constant 0.000000e+00 : f32
    %24 = vector.broadcast %cst_23 : f32 to vector<8x128xf32>
    %c0_24 = arith.constant 0 : index
    %c0_25 = arith.constant 0 : index
    %25 = vector.load %arg15[%c0_24, %c0_25] : memref<64x128xf32, #tpu.memory_space<vmem>>, vector<8x128xf32>
    %c56 = arith.constant 56 : index
    %c0_26 = arith.constant 0 : index
    %26 = vector.load %arg16[%c56, %c0_26] : memref<64x128xf32, #tpu.memory_space<vmem>>, vector<8x128xf32>
    %27 = tpu.concatenate %25, %26 in 1 : vector<8x128xf32>, vector<8x128xf32> -> vector<8x256xf32>
    %28 = tpu.concatenate %21, %22 in 1 : vector<8x128xf32>, vector<8x128xf32> -> vector<8x256xf32>
    %cst_27 = arith.constant dense<0.000000e+00> : vector<8x256xf32>
    %29 = tpu.matmul %28, %20, %cst_27 {dimension_numbers = #tpu.dot_dimension_numbers<[1], [0], [0], [1], [0, 0, 1, 1], [], []>} : vector<8x256xf32>, vector<256x256xf32>, vector<8x256xf32> -> vector<8x256xf32>
    %30 = arith.addf %27, %29 : vector<8x256xf32>
    %31 = vector.extract_strided_slice %30 {offsets = [0, 0], sizes = [8, 128], strides = [1, 1]} : vector<8x256xf32> to vector<8x128xf32>
    %32 = arith.mulf %31, %5 : vector<8x128xf32>
    %33 = math.tanh %32 : vector<8x128xf32>
    %cst_28 = arith.constant 5.000000e-01 : f32
    %34 = vector.broadcast %cst_28 : f32 to vector<8x128xf32>
    %35 = arith.mulf %34, %33 : vector<8x128xf32>
    %cst_29 = arith.constant 5.000000e-01 : f32
    %36 = vector.broadcast %cst_29 : f32 to vector<8x128xf32>
    %37 = arith.addf %35, %36 : vector<8x128xf32>
    %38 = arith.select %2, %33, %37 : vector<8x128xi1>, vector<8x128xf32>
    %c64_i32 = arith.constant 64 : i32
    %39 = tpu.dynamic_rotate %38 by %c64_i32 dim 1 : vector<8x128xf32>, i32 -> vector<8x128xf32>
    %c32_i32 = arith.constant 32 : i32
    %40 = tpu.dynamic_rotate %38 by %c32_i32 dim 1 : vector<8x128xf32>, i32 -> vector<8x128xf32>
    %c96_i32_30 = arith.constant 96 : i32
    %41 = tpu.dynamic_rotate %38 by %c96_i32_30 dim 1 : vector<8x128xf32>, i32 -> vector<8x128xf32>
    %42 = arith.mulf %38, %23 : vector<8x128xf32>
    %43 = arith.mulf %40, %41 : vector<8x128xf32>
    %44 = arith.addf %42, %43 : vector<8x128xf32>
    %45 = math.tanh %44 : vector<8x128xf32>
    %46 = arith.mulf %39, %45 : vector<8x128xf32>
    %c0_31 = arith.constant 0 : index
    %c0_32 = arith.constant 0 : index
    %47 = vector.load %arg17[%c0_31, %c0_32] : memref<64x256xf32, #tpu.memory_space<vmem>>, vector<8x128xf32>
    tpu.vector_store %arg17[%c0_31, %c0_32], %46 {strides = array<i32>} : memref<64x256xf32, #tpu.memory_space<vmem>>, vector<8x128xf32>,
    %48 = vector.extract_strided_slice %30 {offsets = [0, 128], sizes = [8, 128], strides = [1, 1]} : vector<8x256xf32> to vector<8x128xf32>
    %49 = arith.mulf %48, %5 : vector<8x128xf32>
    %50 = math.tanh %49 : vector<8x128xf32>
    %cst_33 = arith.constant 5.000000e-01 : f32
    %51 = vector.broadcast %cst_33 : f32 to vector<8x128xf32>
    %52 = arith.mulf %51, %50 : vector<8x128xf32>
    %cst_34 = arith.constant 5.000000e-01 : f32
    %53 = vector.broadcast %cst_34 : f32 to vector<8x128xf32>
    %54 = arith.addf %52, %53 : vector<8x128xf32>
    %55 = arith.select %2, %50, %54 : vector<8x128xi1>, vector<8x128xf32>
    %c64_i32_35 = arith.constant 64 : i32
    %56 = tpu.dynamic_rotate %55 by %c64_i32_35 dim 1 : vector<8x128xf32>, i32 -> vector<8x128xf32>
    %c32_i32_36 = arith.constant 32 : i32
    %57 = tpu.dynamic_rotate %55 by %c32_i32_36 dim 1 : vector<8x128xf32>, i32 -> vector<8x128xf32>
    %c96_i32_37 = arith.constant 96 : i32
    %58 = tpu.dynamic_rotate %55 by %c96_i32_37 dim 1 : vector<8x128xf32>, i32 -> vector<8x128xf32>
    %59 = arith.mulf %55, %24 : vector<8x128xf32>
    %60 = arith.mulf %57, %58 : vector<8x128xf32>
    %61 = arith.addf %59, %60 : vector<8x128xf32>
    %62 = math.tanh %61 : vector<8x128xf32>
    %63 = arith.mulf %56, %62 : vector<8x128xf32>
    %c56_38 = arith.constant 56 : index
    %c128 = arith.constant 128 : index
    %64 = vector.load %arg17[%c56_38, %c128] : memref<64x256xf32, #tpu.memory_space<vmem>>, vector<8x128xf32>
    tpu.vector_store %arg17[%c56_38, %c128], %63 {strides = array<i32>} : memref<64x256xf32, #tpu.memory_space<vmem>>, vector<8x128xf32>,
    %c8 = arith.constant 8 : index
    %c0_39 = arith.constant 0 : index
    %65 = vector.load %arg15[%c8, %c0_39] : memref<64x128xf32, #tpu.memory_space<vmem>>, vector<8x128xf32>
    %c48 = arith.constant 48 : index
    %c0_40 = arith.constant 0 : index
    %66 = vector.load %arg16[%c48, %c0_40] : memref<64x128xf32, #tpu.memory_space<vmem>>, vector<8x128xf32>
    %67 = tpu.concatenate %65, %66 in 1 : vector<8x128xf32>, vector<8x128xf32> -> vector<8x256xf32>
    %68 = tpu.concatenate %46, %63 in 1 : vector<8x128xf32>, vector<8x128xf32> -> vector<8x256xf32>
    %cst_41 = arith.constant dense<0.000000e+00> : vector<8x256xf32>
    %69 = tpu.matmul %68, %20, %cst_41 {dimension_numbers = #tpu.dot_dimension_numbers<[1], [0], [0], [1], [0, 0, 1, 1], [], []>} : vector<8x256xf32>, vector<256x256xf32>, vector<8x256xf32> -> vector<8x256xf32>
    %70 = arith.addf %67, %69 : vector<8x256xf32>
    %71 = vector.extract_strided_slice %70 {offsets = [0, 0], sizes = [8, 128], strides = [1, 1]} : vector<8x256xf32> to vector<8x128xf32>
    %72 = arith.mulf %71, %5 : vector<8x128xf32>
    %73 = math.tanh %72 : vector<8x128xf32>
    %cst_42 = arith.constant 5.000000e-01 : f32
    %74 = vector.broadcast %cst_42 : f32 to vector<8x128xf32>
    %75 = arith.mulf %74, %73 : vector<8x128xf32>
    %cst_43 = arith.constant 5.000000e-01 : f32
    %76 = vector.broadcast %cst_43 : f32 to vector<8x128xf32>
    %77 = arith.addf %75, %76 : vector<8x128xf32>
    %78 = arith.select %2, %73, %77 : vector<8x128xi1>, vector<8x128xf32>
    %c64_i32_44 = arith.constant 64 : i32
    %79 = tpu.dynamic_rotate %78 by %c64_i32_44 dim 1 : vector<8x128xf32>, i32 -> vector<8x128xf32>
    %c32_i32_45 = arith.constant 32 : i32
    %80 = tpu.dynamic_rotate %78 by %c32_i32_45 dim 1 : vector<8x128xf32>, i32 -> vector<8x128xf32>
    %c96_i32_46 = arith.constant 96 : i32
    %81 = tpu.dynamic_rotate %78 by %c96_i32_46 dim 1 : vector<8x128xf32>, i32 -> vector<8x128xf32>
    %82 = arith.mulf %78, %44 : vector<8x128xf32>
    %83 = arith.mulf %80, %81 : vector<8x128xf32>
    %84 = arith.addf %82, %83 : vector<8x128xf32>
    %85 = math.tanh %84 : vector<8x128xf32>
    %86 = arith.mulf %79, %85 : vector<8x128xf32>
    %c8_47 = arith.constant 8 : index
    %c0_48 = arith.constant 0 : index
    %87 = vector.load %arg17[%c8_47, %c0_48] : memref<64x256xf32, #tpu.memory_space<vmem>>, vector<8x128xf32>
    tpu.vector_store %arg17[%c8_47, %c0_48], %86 {strides = array<i32>} : memref<64x256xf32, #tpu.memory_space<vmem>>, vector<8x128xf32>,
    %88 = vector.extract_strided_slice %70 {offsets = [0, 128], sizes = [8, 128], strides = [1, 1]} : vector<8x256xf32> to vector<8x128xf32>
    %89 = arith.mulf %88, %5 : vector<8x128xf32>
    %90 = math.tanh %89 : vector<8x128xf32>
    %cst_49 = arith.constant 5.000000e-01 : f32
    %91 = vector.broadcast %cst_49 : f32 to vector<8x128xf32>
    %92 = arith.mulf %91, %90 : vector<8x128xf32>
    %cst_50 = arith.constant 5.000000e-01 : f32
    %93 = vector.broadcast %cst_50 : f32 to vector<8x128xf32>
    %94 = arith.addf %92, %93 : vector<8x128xf32>
    %95 = arith.select %2, %90, %94 : vector<8x128xi1>, vector<8x128xf32>
    %c64_i32_51 = arith.constant 64 : i32
    %96 = tpu.dynamic_rotate %95 by %c64_i32_51 dim 1 : vector<8x128xf32>, i32 -> vector<8x128xf32>
    %c32_i32_52 = arith.constant 32 : i32
    %97 = tpu.dynamic_rotate %95 by %c32_i32_52 dim 1 : vector<8x128xf32>, i32 -> vector<8x128xf32>
    %c96_i32_53 = arith.constant 96 : i32
    %98 = tpu.dynamic_rotate %95 by %c96_i32_53 dim 1 : vector<8x128xf32>, i32 -> vector<8x128xf32>
    %99 = arith.mulf %95, %61 : vector<8x128xf32>
    %100 = arith.mulf %97, %98 : vector<8x128xf32>
    %101 = arith.addf %99, %100 : vector<8x128xf32>
    %102 = math.tanh %101 : vector<8x128xf32>
    %103 = arith.mulf %96, %102 : vector<8x128xf32>
    %c48_54 = arith.constant 48 : index
    %c128_55 = arith.constant 128 : index
    %104 = vector.load %arg17[%c48_54, %c128_55] : memref<64x256xf32, #tpu.memory_space<vmem>>, vector<8x128xf32>
    tpu.vector_store %arg17[%c48_54, %c128_55], %103 {strides = array<i32>} : memref<64x256xf32, #tpu.memory_space<vmem>>, vector<8x128xf32>,
    %c16 = arith.constant 16 : index
    %c0_56 = arith.constant 0 : index
    %105 = vector.load %arg15[%c16, %c0_56] : memref<64x128xf32, #tpu.memory_space<vmem>>, vector<8x128xf32>
    %c40 = arith.constant 40 : index
    %c0_57 = arith.constant 0 : index
    %106 = vector.load %arg16[%c40, %c0_57] : memref<64x128xf32, #tpu.memory_space<vmem>>, vector<8x128xf32>
    %107 = tpu.concatenate %105, %106 in 1 : vector<8x128xf32>, vector<8x128xf32> -> vector<8x256xf32>
    %108 = tpu.concatenate %86, %103 in 1 : vector<8x128xf32>, vector<8x128xf32> -> vector<8x256xf32>
    %cst_58 = arith.constant dense<0.000000e+00> : vector<8x256xf32>
    %109 = tpu.matmul %108, %20, %cst_58 {dimension_numbers = #tpu.dot_dimension_numbers<[1], [0], [0], [1], [0, 0, 1, 1], [], []>} : vector<8x256xf32>, vector<256x256xf32>, vector<8x256xf32> -> vector<8x256xf32>
    %110 = arith.addf %107, %109 : vector<8x256xf32>
    %111 = vector.extract_strided_slice %110 {offsets = [0, 0], sizes = [8, 128], strides = [1, 1]} : vector<8x256xf32> to vector<8x128xf32>
    %112 = arith.mulf %111, %5 : vector<8x128xf32>
    %113 = math.tanh %112 : vector<8x128xf32>
    %cst_59 = arith.constant 5.000000e-01 : f32
    %114 = vector.broadcast %cst_59 : f32 to vector<8x128xf32>
    %115 = arith.mulf %114, %113 : vector<8x128xf32>
    %cst_60 = arith.constant 5.000000e-01 : f32
    %116 = vector.broadcast %cst_60 : f32 to vector<8x128xf32>
    %117 = arith.addf %115, %116 : vector<8x128xf32>
    %118 = arith.select %2, %113, %117 : vector<8x128xi1>, vector<8x128xf32>
    %c64_i32_61 = arith.constant 64 : i32
    %119 = tpu.dynamic_rotate %118 by %c64_i32_61 dim 1 : vector<8x128xf32>, i32 -> vector<8x128xf32>
    %c32_i32_62 = arith.constant 32 : i32
    %120 = tpu.dynamic_rotate %118 by %c32_i32_62 dim 1 : vector<8x128xf32>, i32 -> vector<8x128xf32>
    %c96_i32_63 = arith.constant 96 : i32
    %121 = tpu.dynamic_rotate %118 by %c96_i32_63 dim 1 : vector<8x128xf32>, i32 -> vector<8x128xf32>
    %122 = arith.mulf %118, %84 : vector<8x128xf32>
    %123 = arith.mulf %120, %121 : vector<8x128xf32>
    %124 = arith.addf %122, %123 : vector<8x128xf32>
    %125 = math.tanh %124 : vector<8x128xf32>
    %126 = arith.mulf %119, %125 : vector<8x128xf32>
    %c16_64 = arith.constant 16 : index
    %c0_65 = arith.constant 0 : index
    %127 = vector.load %arg17[%c16_64, %c0_65] : memref<64x256xf32, #tpu.memory_space<vmem>>, vector<8x128xf32>
    tpu.vector_store %arg17[%c16_64, %c0_65], %126 {strides = array<i32>} : memref<64x256xf32, #tpu.memory_space<vmem>>, vector<8x128xf32>,
    %128 = vector.extract_strided_slice %110 {offsets = [0, 128], sizes = [8, 128], strides = [1, 1]} : vector<8x256xf32> to vector<8x128xf32>
    %129 = arith.mulf %128, %5 : vector<8x128xf32>
    %130 = math.tanh %129 : vector<8x128xf32>
    %cst_66 = arith.constant 5.000000e-01 : f32
    %131 = vector.broadcast %cst_66 : f32 to vector<8x128xf32>
    %132 = arith.mulf %131, %130 : vector<8x128xf32>
    %cst_67 = arith.constant 5.000000e-01 : f32
    %133 = vector.broadcast %cst_67 : f32 to vector<8x128xf32>
    %134 = arith.addf %132, %133 : vector<8x128xf32>
    %135 = arith.select %2, %130, %134 : vector<8x128xi1>, vector<8x128xf32>
    %c64_i32_68 = arith.constant 64 : i32
    %136 = tpu.dynamic_rotate %135 by %c64_i32_68 dim 1 : vector<8x128xf32>, i32 -> vector<8x128xf32>
    %c32_i32_69 = arith.constant 32 : i32
    %137 = tpu.dynamic_rotate %135 by %c32_i32_69 dim 1 : vector<8x128xf32>, i32 -> vector<8x128xf32>
    %c96_i32_70 = arith.constant 96 : i32
    %138 = tpu.dynamic_rotate %135 by %c96_i32_70 dim 1 : vector<8x128xf32>, i32 -> vector<8x128xf32>
    %139 = arith.mulf %135, %101 : vector<8x128xf32>
    %140 = arith.mulf %137, %138 : vector<8x128xf32>
    %141 = arith.addf %139, %140 : vector<8x128xf32>
    %142 = math.tanh %141 : vector<8x128xf32>
    %143 = arith.mulf %136, %142 : vector<8x128xf32>
    %c40_71 = arith.constant 40 : index
    %c128_72 = arith.constant 128 : index
    %144 = vector.load %arg17[%c40_71, %c128_72] : memref<64x256xf32, #tpu.memory_space<vmem>>, vector<8x128xf32>
    tpu.vector_store %arg17[%c40_71, %c128_72], %143 {strides = array<i32>} : memref<64x256xf32, #tpu.memory_space<vmem>>, vector<8x128xf32>,
    %c24 = arith.constant 24 : index
    %c0_73 = arith.constant 0 : index
    %145 = vector.load %arg15[%c24, %c0_73] : memref<64x128xf32, #tpu.memory_space<vmem>>, vector<8x128xf32>
    %c32 = arith.constant 32 : index
    %c0_74 = arith.constant 0 : index
    %146 = vector.load %arg16[%c32, %c0_74] : memref<64x128xf32, #tpu.memory_space<vmem>>, vector<8x128xf32>
    %147 = tpu.concatenate %145, %146 in 1 : vector<8x128xf32>, vector<8x128xf32> -> vector<8x256xf32>
    %148 = tpu.concatenate %126, %143 in 1 : vector<8x128xf32>, vector<8x128xf32> -> vector<8x256xf32>
    %cst_75 = arith.constant dense<0.000000e+00> : vector<8x256xf32>
    %149 = tpu.matmul %148, %20, %cst_75 {dimension_numbers = #tpu.dot_dimension_numbers<[1], [0], [0], [1], [0, 0, 1, 1], [], []>} : vector<8x256xf32>, vector<256x256xf32>, vector<8x256xf32> -> vector<8x256xf32>
    %150 = arith.addf %147, %149 : vector<8x256xf32>
    %151 = vector.extract_strided_slice %150 {offsets = [0, 0], sizes = [8, 128], strides = [1, 1]} : vector<8x256xf32> to vector<8x128xf32>
    %152 = arith.mulf %151, %5 : vector<8x128xf32>
    %153 = math.tanh %152 : vector<8x128xf32>
    %cst_76 = arith.constant 5.000000e-01 : f32
    %154 = vector.broadcast %cst_76 : f32 to vector<8x128xf32>
    %155 = arith.mulf %154, %153 : vector<8x128xf32>
    %cst_77 = arith.constant 5.000000e-01 : f32
    %156 = vector.broadcast %cst_77 : f32 to vector<8x128xf32>
    %157 = arith.addf %155, %156 : vector<8x128xf32>
    %158 = arith.select %2, %153, %157 : vector<8x128xi1>, vector<8x128xf32>
    %c64_i32_78 = arith.constant 64 : i32
    %159 = tpu.dynamic_rotate %158 by %c64_i32_78 dim 1 : vector<8x128xf32>, i32 -> vector<8x128xf32>
    %c32_i32_79 = arith.constant 32 : i32
    %160 = tpu.dynamic_rotate %158 by %c32_i32_79 dim 1 : vector<8x128xf32>, i32 -> vector<8x128xf32>
    %c96_i32_80 = arith.constant 96 : i32
    %161 = tpu.dynamic_rotate %158 by %c96_i32_80 dim 1 : vector<8x128xf32>, i32 -> vector<8x128xf32>
    %162 = arith.mulf %158, %124 : vector<8x128xf32>
    %163 = arith.mulf %160, %161 : vector<8x128xf32>
    %164 = arith.addf %162, %163 : vector<8x128xf32>
    %165 = math.tanh %164 : vector<8x128xf32>
    %166 = arith.mulf %159, %165 : vector<8x128xf32>
    %c24_81 = arith.constant 24 : index
    %c0_82 = arith.constant 0 : index
    %167 = vector.load %arg17[%c24_81, %c0_82] : memref<64x256xf32, #tpu.memory_space<vmem>>, vector<8x128xf32>
    tpu.vector_store %arg17[%c24_81, %c0_82], %166 {strides = array<i32>} : memref<64x256xf32, #tpu.memory_space<vmem>>, vector<8x128xf32>,
    %168 = vector.extract_strided_slice %150 {offsets = [0, 128], sizes = [8, 128], strides = [1, 1]} : vector<8x256xf32> to vector<8x128xf32>
    %169 = arith.mulf %168, %5 : vector<8x128xf32>
    %170 = math.tanh %169 : vector<8x128xf32>
    %cst_83 = arith.constant 5.000000e-01 : f32
    %171 = vector.broadcast %cst_83 : f32 to vector<8x128xf32>
    %172 = arith.mulf %171, %170 : vector<8x128xf32>
    %cst_84 = arith.constant 5.000000e-01 : f32
    %173 = vector.broadcast %cst_84 : f32 to vector<8x128xf32>
    %174 = arith.addf %172, %173 : vector<8x128xf32>
    %175 = arith.select %2, %170, %174 : vector<8x128xi1>, vector<8x128xf32>
    %c64_i32_85 = arith.constant 64 : i32
    %176 = tpu.dynamic_rotate %175 by %c64_i32_85 dim 1 : vector<8x128xf32>, i32 -> vector<8x128xf32>
    %c32_i32_86 = arith.constant 32 : i32
    %177 = tpu.dynamic_rotate %175 by %c32_i32_86 dim 1 : vector<8x128xf32>, i32 -> vector<8x128xf32>
    %c96_i32_87 = arith.constant 96 : i32
    %178 = tpu.dynamic_rotate %175 by %c96_i32_87 dim 1 : vector<8x128xf32>, i32 -> vector<8x128xf32>
    %179 = arith.mulf %175, %141 : vector<8x128xf32>
    %180 = arith.mulf %177, %178 : vector<8x128xf32>
    %181 = arith.addf %179, %180 : vector<8x128xf32>
    %182 = math.tanh %181 : vector<8x128xf32>
    %183 = arith.mulf %176, %182 : vector<8x128xf32>
    %c32_88 = arith.constant 32 : index
    %c128_89 = arith.constant 128 : index
    %184 = vector.load %arg17[%c32_88, %c128_89] : memref<64x256xf32, #tpu.memory_space<vmem>>, vector<8x128xf32>
    tpu.vector_store %arg17[%c32_88, %c128_89], %183 {strides = array<i32>} : memref<64x256xf32, #tpu.memory_space<vmem>>, vector<8x128xf32>,
    %c32_90 = arith.constant 32 : index
    %c0_91 = arith.constant 0 : index
    %185 = vector.load %arg15[%c32_90, %c0_91] : memref<64x128xf32, #tpu.memory_space<vmem>>, vector<8x128xf32>
    %c24_92 = arith.constant 24 : index
    %c0_93 = arith.constant 0 : index
    %186 = vector.load %arg16[%c24_92, %c0_93] : memref<64x128xf32, #tpu.memory_space<vmem>>, vector<8x128xf32>
    %187 = tpu.concatenate %185, %186 in 1 : vector<8x128xf32>, vector<8x128xf32> -> vector<8x256xf32>
    %188 = tpu.concatenate %166, %183 in 1 : vector<8x128xf32>, vector<8x128xf32> -> vector<8x256xf32>
    %cst_94 = arith.constant dense<0.000000e+00> : vector<8x256xf32>
    %189 = tpu.matmul %188, %20, %cst_94 {dimension_numbers = #tpu.dot_dimension_numbers<[1], [0], [0], [1], [0, 0, 1, 1], [], []>} : vector<8x256xf32>, vector<256x256xf32>, vector<8x256xf32> -> vector<8x256xf32>
    %190 = arith.addf %187, %189 : vector<8x256xf32>
    %191 = vector.extract_strided_slice %190 {offsets = [0, 0], sizes = [8, 128], strides = [1, 1]} : vector<8x256xf32> to vector<8x128xf32>
    %192 = arith.mulf %191, %5 : vector<8x128xf32>
    %193 = math.tanh %192 : vector<8x128xf32>
    %cst_95 = arith.constant 5.000000e-01 : f32
    %194 = vector.broadcast %cst_95 : f32 to vector<8x128xf32>
    %195 = arith.mulf %194, %193 : vector<8x128xf32>
    %cst_96 = arith.constant 5.000000e-01 : f32
    %196 = vector.broadcast %cst_96 : f32 to vector<8x128xf32>
    %197 = arith.addf %195, %196 : vector<8x128xf32>
    %198 = arith.select %2, %193, %197 : vector<8x128xi1>, vector<8x128xf32>
    %c64_i32_97 = arith.constant 64 : i32
    %199 = tpu.dynamic_rotate %198 by %c64_i32_97 dim 1 : vector<8x128xf32>, i32 -> vector<8x128xf32>
    %c32_i32_98 = arith.constant 32 : i32
    %200 = tpu.dynamic_rotate %198 by %c32_i32_98 dim 1 : vector<8x128xf32>, i32 -> vector<8x128xf32>
    %c96_i32_99 = arith.constant 96 : i32
    %201 = tpu.dynamic_rotate %198 by %c96_i32_99 dim 1 : vector<8x128xf32>, i32 -> vector<8x128xf32>
    %202 = arith.mulf %198, %164 : vector<8x128xf32>
    %203 = arith.mulf %200, %201 : vector<8x128xf32>
    %204 = arith.addf %202, %203 : vector<8x128xf32>
    %205 = math.tanh %204 : vector<8x128xf32>
    %206 = arith.mulf %199, %205 : vector<8x128xf32>
    %c32_100 = arith.constant 32 : index
    %c0_101 = arith.constant 0 : index
    %207 = vector.load %arg17[%c32_100, %c0_101] : memref<64x256xf32, #tpu.memory_space<vmem>>, vector<8x128xf32>
    tpu.vector_store %arg17[%c32_100, %c0_101], %206 {strides = array<i32>} : memref<64x256xf32, #tpu.memory_space<vmem>>, vector<8x128xf32>,
    %208 = vector.extract_strided_slice %190 {offsets = [0, 128], sizes = [8, 128], strides = [1, 1]} : vector<8x256xf32> to vector<8x128xf32>
    %209 = arith.mulf %208, %5 : vector<8x128xf32>
    %210 = math.tanh %209 : vector<8x128xf32>
    %cst_102 = arith.constant 5.000000e-01 : f32
    %211 = vector.broadcast %cst_102 : f32 to vector<8x128xf32>
    %212 = arith.mulf %211, %210 : vector<8x128xf32>
    %cst_103 = arith.constant 5.000000e-01 : f32
    %213 = vector.broadcast %cst_103 : f32 to vector<8x128xf32>
    %214 = arith.addf %212, %213 : vector<8x128xf32>
    %215 = arith.select %2, %210, %214 : vector<8x128xi1>, vector<8x128xf32>
    %c64_i32_104 = arith.constant 64 : i32
    %216 = tpu.dynamic_rotate %215 by %c64_i32_104 dim 1 : vector<8x128xf32>, i32 -> vector<8x128xf32>
    %c32_i32_105 = arith.constant 32 : i32
    %217 = tpu.dynamic_rotate %215 by %c32_i32_105 dim 1 : vector<8x128xf32>, i32 -> vector<8x128xf32>
    %c96_i32_106 = arith.constant 96 : i32
    %218 = tpu.dynamic_rotate %215 by %c96_i32_106 dim 1 : vector<8x128xf32>, i32 -> vector<8x128xf32>
    %219 = arith.mulf %215, %181 : vector<8x128xf32>
    %220 = arith.mulf %217, %218 : vector<8x128xf32>
    %221 = arith.addf %219, %220 : vector<8x128xf32>
    %222 = math.tanh %221 : vector<8x128xf32>
    %223 = arith.mulf %216, %222 : vector<8x128xf32>
    %c24_107 = arith.constant 24 : index
    %c128_108 = arith.constant 128 : index
    %224 = vector.load %arg17[%c24_107, %c128_108] : memref<64x256xf32, #tpu.memory_space<vmem>>, vector<8x128xf32>
    tpu.vector_store %arg17[%c24_107, %c128_108], %223 {strides = array<i32>} : memref<64x256xf32, #tpu.memory_space<vmem>>, vector<8x128xf32>,
    %c40_109 = arith.constant 40 : index
    %c0_110 = arith.constant 0 : index
    %225 = vector.load %arg15[%c40_109, %c0_110] : memref<64x128xf32, #tpu.memory_space<vmem>>, vector<8x128xf32>
    %c16_111 = arith.constant 16 : index
    %c0_112 = arith.constant 0 : index
    %226 = vector.load %arg16[%c16_111, %c0_112] : memref<64x128xf32, #tpu.memory_space<vmem>>, vector<8x128xf32>
    %227 = tpu.concatenate %225, %226 in 1 : vector<8x128xf32>, vector<8x128xf32> -> vector<8x256xf32>
    %228 = tpu.concatenate %206, %223 in 1 : vector<8x128xf32>, vector<8x128xf32> -> vector<8x256xf32>
    %cst_113 = arith.constant dense<0.000000e+00> : vector<8x256xf32>
    %229 = tpu.matmul %228, %20, %cst_113 {dimension_numbers = #tpu.dot_dimension_numbers<[1], [0], [0], [1], [0, 0, 1, 1], [], []>} : vector<8x256xf32>, vector<256x256xf32>, vector<8x256xf32> -> vector<8x256xf32>
    %230 = arith.addf %227, %229 : vector<8x256xf32>
    %231 = vector.extract_strided_slice %230 {offsets = [0, 0], sizes = [8, 128], strides = [1, 1]} : vector<8x256xf32> to vector<8x128xf32>
    %232 = arith.mulf %231, %5 : vector<8x128xf32>
    %233 = math.tanh %232 : vector<8x128xf32>
    %cst_114 = arith.constant 5.000000e-01 : f32
    %234 = vector.broadcast %cst_114 : f32 to vector<8x128xf32>
    %235 = arith.mulf %234, %233 : vector<8x128xf32>
    %cst_115 = arith.constant 5.000000e-01 : f32
    %236 = vector.broadcast %cst_115 : f32 to vector<8x128xf32>
    %237 = arith.addf %235, %236 : vector<8x128xf32>
    %238 = arith.select %2, %233, %237 : vector<8x128xi1>, vector<8x128xf32>
    %c64_i32_116 = arith.constant 64 : i32
    %239 = tpu.dynamic_rotate %238 by %c64_i32_116 dim 1 : vector<8x128xf32>, i32 -> vector<8x128xf32>
    %c32_i32_117 = arith.constant 32 : i32
    %240 = tpu.dynamic_rotate %238 by %c32_i32_117 dim 1 : vector<8x128xf32>, i32 -> vector<8x128xf32>
    %c96_i32_118 = arith.constant 96 : i32
    %241 = tpu.dynamic_rotate %238 by %c96_i32_118 dim 1 : vector<8x128xf32>, i32 -> vector<8x128xf32>
    %242 = arith.mulf %238, %204 : vector<8x128xf32>
    %243 = arith.mulf %240, %241 : vector<8x128xf32>
    %244 = arith.addf %242, %243 : vector<8x128xf32>
    %245 = math.tanh %244 : vector<8x128xf32>
    %246 = arith.mulf %239, %245 : vector<8x128xf32>
    %c40_119 = arith.constant 40 : index
    %c0_120 = arith.constant 0 : index
    %247 = vector.load %arg17[%c40_119, %c0_120] : memref<64x256xf32, #tpu.memory_space<vmem>>, vector<8x128xf32>
    tpu.vector_store %arg17[%c40_119, %c0_120], %246 {strides = array<i32>} : memref<64x256xf32, #tpu.memory_space<vmem>>, vector<8x128xf32>,
    %248 = vector.extract_strided_slice %230 {offsets = [0, 128], sizes = [8, 128], strides = [1, 1]} : vector<8x256xf32> to vector<8x128xf32>
    %249 = arith.mulf %248, %5 : vector<8x128xf32>
    %250 = math.tanh %249 : vector<8x128xf32>
    %cst_121 = arith.constant 5.000000e-01 : f32
    %251 = vector.broadcast %cst_121 : f32 to vector<8x128xf32>
    %252 = arith.mulf %251, %250 : vector<8x128xf32>
    %cst_122 = arith.constant 5.000000e-01 : f32
    %253 = vector.broadcast %cst_122 : f32 to vector<8x128xf32>
    %254 = arith.addf %252, %253 : vector<8x128xf32>
    %255 = arith.select %2, %250, %254 : vector<8x128xi1>, vector<8x128xf32>
    %c64_i32_123 = arith.constant 64 : i32
    %256 = tpu.dynamic_rotate %255 by %c64_i32_123 dim 1 : vector<8x128xf32>, i32 -> vector<8x128xf32>
    %c32_i32_124 = arith.constant 32 : i32
    %257 = tpu.dynamic_rotate %255 by %c32_i32_124 dim 1 : vector<8x128xf32>, i32 -> vector<8x128xf32>
    %c96_i32_125 = arith.constant 96 : i32
    %258 = tpu.dynamic_rotate %255 by %c96_i32_125 dim 1 : vector<8x128xf32>, i32 -> vector<8x128xf32>
    %259 = arith.mulf %255, %221 : vector<8x128xf32>
    %260 = arith.mulf %257, %258 : vector<8x128xf32>
    %261 = arith.addf %259, %260 : vector<8x128xf32>
    %262 = math.tanh %261 : vector<8x128xf32>
    %263 = arith.mulf %256, %262 : vector<8x128xf32>
    %c16_126 = arith.constant 16 : index
    %c128_127 = arith.constant 128 : index
    %264 = vector.load %arg17[%c16_126, %c128_127] : memref<64x256xf32, #tpu.memory_space<vmem>>, vector<8x128xf32>
    tpu.vector_store %arg17[%c16_126, %c128_127], %263 {strides = array<i32>} : memref<64x256xf32, #tpu.memory_space<vmem>>, vector<8x128xf32>,
    %c48_128 = arith.constant 48 : index
    %c0_129 = arith.constant 0 : index
    %265 = vector.load %arg15[%c48_128, %c0_129] : memref<64x128xf32, #tpu.memory_space<vmem>>, vector<8x128xf32>
    %c8_130 = arith.constant 8 : index
    %c0_131 = arith.constant 0 : index
    %266 = vector.load %arg16[%c8_130, %c0_131] : memref<64x128xf32, #tpu.memory_space<vmem>>, vector<8x128xf32>
    %267 = tpu.concatenate %265, %266 in 1 : vector<8x128xf32>, vector<8x128xf32> -> vector<8x256xf32>
    %268 = tpu.concatenate %246, %263 in 1 : vector<8x128xf32>, vector<8x128xf32> -> vector<8x256xf32>
    %cst_132 = arith.constant dense<0.000000e+00> : vector<8x256xf32>
    %269 = tpu.matmul %268, %20, %cst_132 {dimension_numbers = #tpu.dot_dimension_numbers<[1], [0], [0], [1], [0, 0, 1, 1], [], []>} : vector<8x256xf32>, vector<256x256xf32>, vector<8x256xf32> -> vector<8x256xf32>
    %270 = arith.addf %267, %269 : vector<8x256xf32>
    %271 = vector.extract_strided_slice %270 {offsets = [0, 0], sizes = [8, 128], strides = [1, 1]} : vector<8x256xf32> to vector<8x128xf32>
    %272 = arith.mulf %271, %5 : vector<8x128xf32>
    %273 = math.tanh %272 : vector<8x128xf32>
    %cst_133 = arith.constant 5.000000e-01 : f32
    %274 = vector.broadcast %cst_133 : f32 to vector<8x128xf32>
    %275 = arith.mulf %274, %273 : vector<8x128xf32>
    %cst_134 = arith.constant 5.000000e-01 : f32
    %276 = vector.broadcast %cst_134 : f32 to vector<8x128xf32>
    %277 = arith.addf %275, %276 : vector<8x128xf32>
    %278 = arith.select %2, %273, %277 : vector<8x128xi1>, vector<8x128xf32>
    %c64_i32_135 = arith.constant 64 : i32
    %279 = tpu.dynamic_rotate %278 by %c64_i32_135 dim 1 : vector<8x128xf32>, i32 -> vector<8x128xf32>
    %c32_i32_136 = arith.constant 32 : i32
    %280 = tpu.dynamic_rotate %278 by %c32_i32_136 dim 1 : vector<8x128xf32>, i32 -> vector<8x128xf32>
    %c96_i32_137 = arith.constant 96 : i32
    %281 = tpu.dynamic_rotate %278 by %c96_i32_137 dim 1 : vector<8x128xf32>, i32 -> vector<8x128xf32>
    %282 = arith.mulf %278, %244 : vector<8x128xf32>
    %283 = arith.mulf %280, %281 : vector<8x128xf32>
    %284 = arith.addf %282, %283 : vector<8x128xf32>
    %285 = math.tanh %284 : vector<8x128xf32>
    %286 = arith.mulf %279, %285 : vector<8x128xf32>
    %c48_138 = arith.constant 48 : index
    %c0_139 = arith.constant 0 : index
    %287 = vector.load %arg17[%c48_138, %c0_139] : memref<64x256xf32, #tpu.memory_space<vmem>>, vector<8x128xf32>
    tpu.vector_store %arg17[%c48_138, %c0_139], %286 {strides = array<i32>} : memref<64x256xf32, #tpu.memory_space<vmem>>, vector<8x128xf32>,
    %288 = vector.extract_strided_slice %270 {offsets = [0, 128], sizes = [8, 128], strides = [1, 1]} : vector<8x256xf32> to vector<8x128xf32>
    %289 = arith.mulf %288, %5 : vector<8x128xf32>
    %290 = math.tanh %289 : vector<8x128xf32>
    %cst_140 = arith.constant 5.000000e-01 : f32
    %291 = vector.broadcast %cst_140 : f32 to vector<8x128xf32>
    %292 = arith.mulf %291, %290 : vector<8x128xf32>
    %cst_141 = arith.constant 5.000000e-01 : f32
    %293 = vector.broadcast %cst_141 : f32 to vector<8x128xf32>
    %294 = arith.addf %292, %293 : vector<8x128xf32>
    %295 = arith.select %2, %290, %294 : vector<8x128xi1>, vector<8x128xf32>
    %c64_i32_142 = arith.constant 64 : i32
    %296 = tpu.dynamic_rotate %295 by %c64_i32_142 dim 1 : vector<8x128xf32>, i32 -> vector<8x128xf32>
    %c32_i32_143 = arith.constant 32 : i32
    %297 = tpu.dynamic_rotate %295 by %c32_i32_143 dim 1 : vector<8x128xf32>, i32 -> vector<8x128xf32>
    %c96_i32_144 = arith.constant 96 : i32
    %298 = tpu.dynamic_rotate %295 by %c96_i32_144 dim 1 : vector<8x128xf32>, i32 -> vector<8x128xf32>
    %299 = arith.mulf %295, %261 : vector<8x128xf32>
    %300 = arith.mulf %297, %298 : vector<8x128xf32>
    %301 = arith.addf %299, %300 : vector<8x128xf32>
    %302 = math.tanh %301 : vector<8x128xf32>
    %303 = arith.mulf %296, %302 : vector<8x128xf32>
    %c8_145 = arith.constant 8 : index
    %c128_146 = arith.constant 128 : index
    %304 = vector.load %arg17[%c8_145, %c128_146] : memref<64x256xf32, #tpu.memory_space<vmem>>, vector<8x128xf32>
    tpu.vector_store %arg17[%c8_145, %c128_146], %303 {strides = array<i32>} : memref<64x256xf32, #tpu.memory_space<vmem>>, vector<8x128xf32>,
    %c56_147 = arith.constant 56 : index
    %c0_148 = arith.constant 0 : index
    %305 = vector.load %arg15[%c56_147, %c0_148] : memref<64x128xf32, #tpu.memory_space<vmem>>, vector<8x128xf32>
    %c0_149 = arith.constant 0 : index
    %c0_150 = arith.constant 0 : index
    %306 = vector.load %arg16[%c0_149, %c0_150] : memref<64x128xf32, #tpu.memory_space<vmem>>, vector<8x128xf32>
    %307 = tpu.concatenate %305, %306 in 1 : vector<8x128xf32>, vector<8x128xf32> -> vector<8x256xf32>
    %308 = tpu.concatenate %286, %303 in 1 : vector<8x128xf32>, vector<8x128xf32> -> vector<8x256xf32>
    %cst_151 = arith.constant dense<0.000000e+00> : vector<8x256xf32>
    %309 = tpu.matmul %308, %20, %cst_151 {dimension_numbers = #tpu.dot_dimension_numbers<[1], [0], [0], [1], [0, 0, 1, 1], [], []>} : vector<8x256xf32>, vector<256x256xf32>, vector<8x256xf32> -> vector<8x256xf32>
    %310 = arith.addf %307, %309 : vector<8x256xf32>
    %311 = vector.extract_strided_slice %310 {offsets = [0, 0], sizes = [8, 128], strides = [1, 1]} : vector<8x256xf32> to vector<8x128xf32>
    %312 = arith.mulf %311, %5 : vector<8x128xf32>
    %313 = math.tanh %312 : vector<8x128xf32>
    %cst_152 = arith.constant 5.000000e-01 : f32
    %314 = vector.broadcast %cst_152 : f32 to vector<8x128xf32>
    %315 = arith.mulf %314, %313 : vector<8x128xf32>
    %cst_153 = arith.constant 5.000000e-01 : f32
    %316 = vector.broadcast %cst_153 : f32 to vector<8x128xf32>
    %317 = arith.addf %315, %316 : vector<8x128xf32>
    %318 = arith.select %2, %313, %317 : vector<8x128xi1>, vector<8x128xf32>
    %c64_i32_154 = arith.constant 64 : i32
    %319 = tpu.dynamic_rotate %318 by %c64_i32_154 dim 1 : vector<8x128xf32>, i32 -> vector<8x128xf32>
    %c32_i32_155 = arith.constant 32 : i32
    %320 = tpu.dynamic_rotate %318 by %c32_i32_155 dim 1 : vector<8x128xf32>, i32 -> vector<8x128xf32>
    %c96_i32_156 = arith.constant 96 : i32
    %321 = tpu.dynamic_rotate %318 by %c96_i32_156 dim 1 : vector<8x128xf32>, i32 -> vector<8x128xf32>
    %322 = arith.mulf %318, %284 : vector<8x128xf32>
    %323 = arith.mulf %320, %321 : vector<8x128xf32>
    %324 = arith.addf %322, %323 : vector<8x128xf32>
    %325 = math.tanh %324 : vector<8x128xf32>
    %326 = arith.mulf %319, %325 : vector<8x128xf32>
    %c56_157 = arith.constant 56 : index
    %c0_158 = arith.constant 0 : index
    %327 = vector.load %arg17[%c56_157, %c0_158] : memref<64x256xf32, #tpu.memory_space<vmem>>, vector<8x128xf32>
    tpu.vector_store %arg17[%c56_157, %c0_158], %326 {strides = array<i32>} : memref<64x256xf32, #tpu.memory_space<vmem>>, vector<8x128xf32>,
    %328 = vector.extract_strided_slice %310 {offsets = [0, 128], sizes = [8, 128], strides = [1, 1]} : vector<8x256xf32> to vector<8x128xf32>
    %329 = arith.mulf %328, %5 : vector<8x128xf32>
    %330 = math.tanh %329 : vector<8x128xf32>
    %cst_159 = arith.constant 5.000000e-01 : f32
    %331 = vector.broadcast %cst_159 : f32 to vector<8x128xf32>
    %332 = arith.mulf %331, %330 : vector<8x128xf32>
    %cst_160 = arith.constant 5.000000e-01 : f32
    %333 = vector.broadcast %cst_160 : f32 to vector<8x128xf32>
    %334 = arith.addf %332, %333 : vector<8x128xf32>
    %335 = arith.select %2, %330, %334 : vector<8x128xi1>, vector<8x128xf32>
    %c64_i32_161 = arith.constant 64 : i32
    %336 = tpu.dynamic_rotate %335 by %c64_i32_161 dim 1 : vector<8x128xf32>, i32 -> vector<8x128xf32>
    %c32_i32_162 = arith.constant 32 : i32
    %337 = tpu.dynamic_rotate %335 by %c32_i32_162 dim 1 : vector<8x128xf32>, i32 -> vector<8x128xf32>
    %c96_i32_163 = arith.constant 96 : i32
    %338 = tpu.dynamic_rotate %335 by %c96_i32_163 dim 1 : vector<8x128xf32>, i32 -> vector<8x128xf32>
    %339 = arith.mulf %335, %301 : vector<8x128xf32>
    %340 = arith.mulf %337, %338 : vector<8x128xf32>
    %341 = arith.addf %339, %340 : vector<8x128xf32>
    %342 = math.tanh %341 : vector<8x128xf32>
    %343 = arith.mulf %336, %342 : vector<8x128xf32>
    %c0_164 = arith.constant 0 : index
    %c128_165 = arith.constant 128 : index
    %344 = vector.load %arg17[%c0_164, %c128_165] : memref<64x256xf32, #tpu.memory_space<vmem>>, vector<8x128xf32>
    tpu.vector_store %arg17[%c0_164, %c128_165], %343 {strides = array<i32>} : memref<64x256xf32, #tpu.memory_space<vmem>>, vector<8x128xf32>,
    %c0_166 = arith.constant 0 : index
    %c0_167 = arith.constant 0 : index
    %345 = vector.load %arg17[%c0_166, %c0_167] : memref<64x256xf32, #tpu.memory_space<vmem>>, vector<64x256xf32>
    %c0_168 = arith.constant 0 : index
    %c0_169 = arith.constant 0 : index
    %346 = vector.load %arg7[%c0_168, %c0_169] : memref<256x128xf32, #tpu.memory_space<vmem>>, vector<256x128xf32>
    %cst_170 = arith.constant dense<0.000000e+00> : vector<64x128xf32>
    %347 = tpu.matmul %345, %346, %cst_170 {dimension_numbers = #tpu.dot_dimension_numbers<[1], [0], [0], [1], [0, 0, 1, 1], [], []>} : vector<64x256xf32>, vector<256x128xf32>, vector<64x128xf32> -> vector<64x128xf32>
    %c0_171 = arith.constant 0 : index
    %c0_172 = arith.constant 0 : index
    %348 = vector.load %arg8[%c0_171, %c0_172] : memref<1x128xf32, #tpu.memory_space<vmem>>, vector<1x128xf32>
    %349 = vector.broadcast %348 : vector<1x128xf32> to vector<64x128xf32>
    %350 = arith.addf %347, %349 : vector<64x128xf32>
    %c0_173 = arith.constant 0 : index
    %c0_174 = arith.constant 0 : index
    %351 = vector.load %arg15[%c0_173, %c0_174] : memref<64x128xf32, #tpu.memory_space<vmem>>, vector<64x128xf32>
    tpu.vector_store %arg15[%c0_173, %c0_174], %350 {strides = array<i32>} : memref<64x128xf32, #tpu.memory_space<vmem>>, vector<64x128xf32>,
    %c0_175 = arith.constant 0 : index
    %c0_176 = arith.constant 0 : index
    %352 = vector.load %arg17[%c0_175, %c0_176] : memref<64x256xf32, #tpu.memory_space<vmem>>, vector<64x256xf32>
    %c0_177 = arith.constant 0 : index
    %c0_178 = arith.constant 0 : index
    %353 = vector.load %arg9[%c0_177, %c0_178] : memref<256x128xf32, #tpu.memory_space<vmem>>, vector<256x128xf32>
    %cst_179 = arith.constant dense<0.000000e+00> : vector<64x128xf32>
    %354 = tpu.matmul %352, %353, %cst_179 {dimension_numbers = #tpu.dot_dimension_numbers<[1], [0], [0], [1], [0, 0, 1, 1], [], []>} : vector<64x256xf32>, vector<256x128xf32>, vector<64x128xf32> -> vector<64x128xf32>
    %c0_180 = arith.constant 0 : index
    %c0_181 = arith.constant 0 : index
    %355 = vector.load %arg10[%c0_180, %c0_181] : memref<1x128xf32, #tpu.memory_space<vmem>>, vector<1x128xf32>
    %356 = vector.broadcast %355 : vector<1x128xf32> to vector<64x128xf32>
    %357 = arith.addf %354, %356 : vector<64x128xf32>
    %c0_182 = arith.constant 0 : index
    %c0_183 = arith.constant 0 : index
    %358 = vector.load %arg16[%c0_182, %c0_183] : memref<64x128xf32, #tpu.memory_space<vmem>>, vector<64x128xf32>
    tpu.vector_store %arg16[%c0_182, %c0_183], %357 {strides = array<i32>} : memref<64x128xf32, #tpu.memory_space<vmem>>, vector<64x128xf32>,
    %c0_184 = arith.constant 0 : index
    %c0_185 = arith.constant 0 : index
    %359 = vector.load %arg11[%c0_184, %c0_185] : memref<256x256xf32, #tpu.memory_space<vmem>>, vector<256x256xf32>
    %cst_186 = arith.constant 0.000000e+00 : f32
    %360 = vector.broadcast %cst_186 : f32 to vector<8x128xf32>
    %cst_187 = arith.constant 0.000000e+00 : f32
    %361 = vector.broadcast %cst_187 : f32 to vector<8x128xf32>
    %cst_188 = arith.constant 0.000000e+00 : f32
    %362 = vector.broadcast %cst_188 : f32 to vector<8x128xf32>
    %cst_189 = arith.constant 0.000000e+00 : f32
    %363 = vector.broadcast %cst_189 : f32 to vector<8x128xf32>
    %c0_190 = arith.constant 0 : index
    %c0_191 = arith.constant 0 : index
    %364 = vector.load %arg15[%c0_190, %c0_191] : memref<64x128xf32, #tpu.memory_space<vmem>>, vector<8x128xf32>
    %c56_192 = arith.constant 56 : index
    %c0_193 = arith.constant 0 : index
    %365 = vector.load %arg16[%c56_192, %c0_193] : memref<64x128xf32, #tpu.memory_space<vmem>>, vector<8x128xf32>
    %366 = tpu.concatenate %364, %365 in 1 : vector<8x128xf32>, vector<8x128xf32> -> vector<8x256xf32>
    %367 = tpu.concatenate %360, %361 in 1 : vector<8x128xf32>, vector<8x128xf32> -> vector<8x256xf32>
    %cst_194 = arith.constant dense<0.000000e+00> : vector<8x256xf32>
    %368 = tpu.matmul %367, %359, %cst_194 {dimension_numbers = #tpu.dot_dimension_numbers<[1], [0], [0], [1], [0, 0, 1, 1], [], []>} : vector<8x256xf32>, vector<256x256xf32>, vector<8x256xf32> -> vector<8x256xf32>
    %369 = arith.addf %366, %368 : vector<8x256xf32>
    %370 = vector.extract_strided_slice %369 {offsets = [0, 0], sizes = [8, 128], strides = [1, 1]} : vector<8x256xf32> to vector<8x128xf32>
    %371 = arith.mulf %370, %5 : vector<8x128xf32>
    %372 = math.tanh %371 : vector<8x128xf32>
    %cst_195 = arith.constant 5.000000e-01 : f32
    %373 = vector.broadcast %cst_195 : f32 to vector<8x128xf32>
    %374 = arith.mulf %373, %372 : vector<8x128xf32>
    %cst_196 = arith.constant 5.000000e-01 : f32
    %375 = vector.broadcast %cst_196 : f32 to vector<8x128xf32>
    %376 = arith.addf %374, %375 : vector<8x128xf32>
    %377 = arith.select %2, %372, %376 : vector<8x128xi1>, vector<8x128xf32>
    %c64_i32_197 = arith.constant 64 : i32
    %378 = tpu.dynamic_rotate %377 by %c64_i32_197 dim 1 : vector<8x128xf32>, i32 -> vector<8x128xf32>
    %c32_i32_198 = arith.constant 32 : i32
    %379 = tpu.dynamic_rotate %377 by %c32_i32_198 dim 1 : vector<8x128xf32>, i32 -> vector<8x128xf32>
    %c96_i32_199 = arith.constant 96 : i32
    %380 = tpu.dynamic_rotate %377 by %c96_i32_199 dim 1 : vector<8x128xf32>, i32 -> vector<8x128xf32>
    %381 = arith.mulf %377, %362 : vector<8x128xf32>
    %382 = arith.mulf %379, %380 : vector<8x128xf32>
    %383 = arith.addf %381, %382 : vector<8x128xf32>
    %384 = math.tanh %383 : vector<8x128xf32>
    %385 = arith.mulf %378, %384 : vector<8x128xf32>
    %386 = vector.extract_strided_slice %369 {offsets = [0, 128], sizes = [8, 128], strides = [1, 1]} : vector<8x256xf32> to vector<8x128xf32>
    %387 = arith.mulf %386, %5 : vector<8x128xf32>
    %388 = math.tanh %387 : vector<8x128xf32>
    %cst_200 = arith.constant 5.000000e-01 : f32
    %389 = vector.broadcast %cst_200 : f32 to vector<8x128xf32>
    %390 = arith.mulf %389, %388 : vector<8x128xf32>
    %cst_201 = arith.constant 5.000000e-01 : f32
    %391 = vector.broadcast %cst_201 : f32 to vector<8x128xf32>
    %392 = arith.addf %390, %391 : vector<8x128xf32>
    %393 = arith.select %2, %388, %392 : vector<8x128xi1>, vector<8x128xf32>
    %c64_i32_202 = arith.constant 64 : i32
    %394 = tpu.dynamic_rotate %393 by %c64_i32_202 dim 1 : vector<8x128xf32>, i32 -> vector<8x128xf32>
    %c32_i32_203 = arith.constant 32 : i32
    %395 = tpu.dynamic_rotate %393 by %c32_i32_203 dim 1 : vector<8x128xf32>, i32 -> vector<8x128xf32>
    %c96_i32_204 = arith.constant 96 : i32
    %396 = tpu.dynamic_rotate %393 by %c96_i32_204 dim 1 : vector<8x128xf32>, i32 -> vector<8x128xf32>
    %397 = arith.mulf %393, %363 : vector<8x128xf32>
    %398 = arith.mulf %395, %396 : vector<8x128xf32>
    %399 = arith.addf %397, %398 : vector<8x128xf32>
    %400 = math.tanh %399 : vector<8x128xf32>
    %401 = arith.mulf %394, %400 : vector<8x128xf32>
    %c8_205 = arith.constant 8 : index
    %c0_206 = arith.constant 0 : index
    %402 = vector.load %arg15[%c8_205, %c0_206] : memref<64x128xf32, #tpu.memory_space<vmem>>, vector<8x128xf32>
    %c48_207 = arith.constant 48 : index
    %c0_208 = arith.constant 0 : index
    %403 = vector.load %arg16[%c48_207, %c0_208] : memref<64x128xf32, #tpu.memory_space<vmem>>, vector<8x128xf32>
    %404 = tpu.concatenate %402, %403 in 1 : vector<8x128xf32>, vector<8x128xf32> -> vector<8x256xf32>
    %405 = tpu.concatenate %385, %401 in 1 : vector<8x128xf32>, vector<8x128xf32> -> vector<8x256xf32>
    %cst_209 = arith.constant dense<0.000000e+00> : vector<8x256xf32>
    %406 = tpu.matmul %405, %359, %cst_209 {dimension_numbers = #tpu.dot_dimension_numbers<[1], [0], [0], [1], [0, 0, 1, 1], [], []>} : vector<8x256xf32>, vector<256x256xf32>, vector<8x256xf32> -> vector<8x256xf32>
    %407 = arith.addf %404, %406 : vector<8x256xf32>
    %408 = vector.extract_strided_slice %407 {offsets = [0, 0], sizes = [8, 128], strides = [1, 1]} : vector<8x256xf32> to vector<8x128xf32>
    %409 = arith.mulf %408, %5 : vector<8x128xf32>
    %410 = math.tanh %409 : vector<8x128xf32>
    %cst_210 = arith.constant 5.000000e-01 : f32
    %411 = vector.broadcast %cst_210 : f32 to vector<8x128xf32>
    %412 = arith.mulf %411, %410 : vector<8x128xf32>
    %cst_211 = arith.constant 5.000000e-01 : f32
    %413 = vector.broadcast %cst_211 : f32 to vector<8x128xf32>
    %414 = arith.addf %412, %413 : vector<8x128xf32>
    %415 = arith.select %2, %410, %414 : vector<8x128xi1>, vector<8x128xf32>
    %c64_i32_212 = arith.constant 64 : i32
    %416 = tpu.dynamic_rotate %415 by %c64_i32_212 dim 1 : vector<8x128xf32>, i32 -> vector<8x128xf32>
    %c32_i32_213 = arith.constant 32 : i32
    %417 = tpu.dynamic_rotate %415 by %c32_i32_213 dim 1 : vector<8x128xf32>, i32 -> vector<8x128xf32>
    %c96_i32_214 = arith.constant 96 : i32
    %418 = tpu.dynamic_rotate %415 by %c96_i32_214 dim 1 : vector<8x128xf32>, i32 -> vector<8x128xf32>
    %419 = arith.mulf %415, %383 : vector<8x128xf32>
    %420 = arith.mulf %417, %418 : vector<8x128xf32>
    %421 = arith.addf %419, %420 : vector<8x128xf32>
    %422 = math.tanh %421 : vector<8x128xf32>
    %423 = arith.mulf %416, %422 : vector<8x128xf32>
    %424 = vector.extract_strided_slice %407 {offsets = [0, 128], sizes = [8, 128], strides = [1, 1]} : vector<8x256xf32> to vector<8x128xf32>
    %425 = arith.mulf %424, %5 : vector<8x128xf32>
    %426 = math.tanh %425 : vector<8x128xf32>
    %cst_215 = arith.constant 5.000000e-01 : f32
    %427 = vector.broadcast %cst_215 : f32 to vector<8x128xf32>
    %428 = arith.mulf %427, %426 : vector<8x128xf32>
    %cst_216 = arith.constant 5.000000e-01 : f32
    %429 = vector.broadcast %cst_216 : f32 to vector<8x128xf32>
    %430 = arith.addf %428, %429 : vector<8x128xf32>
    %431 = arith.select %2, %426, %430 : vector<8x128xi1>, vector<8x128xf32>
    %c64_i32_217 = arith.constant 64 : i32
    %432 = tpu.dynamic_rotate %431 by %c64_i32_217 dim 1 : vector<8x128xf32>, i32 -> vector<8x128xf32>
    %c32_i32_218 = arith.constant 32 : i32
    %433 = tpu.dynamic_rotate %431 by %c32_i32_218 dim 1 : vector<8x128xf32>, i32 -> vector<8x128xf32>
    %c96_i32_219 = arith.constant 96 : i32
    %434 = tpu.dynamic_rotate %431 by %c96_i32_219 dim 1 : vector<8x128xf32>, i32 -> vector<8x128xf32>
    %435 = arith.mulf %431, %399 : vector<8x128xf32>
    %436 = arith.mulf %433, %434 : vector<8x128xf32>
    %437 = arith.addf %435, %436 : vector<8x128xf32>
    %438 = math.tanh %437 : vector<8x128xf32>
    %439 = arith.mulf %432, %438 : vector<8x128xf32>
    %c16_220 = arith.constant 16 : index
    %c0_221 = arith.constant 0 : index
    %440 = vector.load %arg15[%c16_220, %c0_221] : memref<64x128xf32, #tpu.memory_space<vmem>>, vector<8x128xf32>
    %c40_222 = arith.constant 40 : index
    %c0_223 = arith.constant 0 : index
    %441 = vector.load %arg16[%c40_222, %c0_223] : memref<64x128xf32, #tpu.memory_space<vmem>>, vector<8x128xf32>
    %442 = tpu.concatenate %440, %441 in 1 : vector<8x128xf32>, vector<8x128xf32> -> vector<8x256xf32>
    %443 = tpu.concatenate %423, %439 in 1 : vector<8x128xf32>, vector<8x128xf32> -> vector<8x256xf32>
    %cst_224 = arith.constant dense<0.000000e+00> : vector<8x256xf32>
    %444 = tpu.matmul %443, %359, %cst_224 {dimension_numbers = #tpu.dot_dimension_numbers<[1], [0], [0], [1], [0, 0, 1, 1], [], []>} : vector<8x256xf32>, vector<256x256xf32>, vector<8x256xf32> -> vector<8x256xf32>
    %445 = arith.addf %442, %444 : vector<8x256xf32>
    %446 = vector.extract_strided_slice %445 {offsets = [0, 0], sizes = [8, 128], strides = [1, 1]} : vector<8x256xf32> to vector<8x128xf32>
    %447 = arith.mulf %446, %5 : vector<8x128xf32>
    %448 = math.tanh %447 : vector<8x128xf32>
    %cst_225 = arith.constant 5.000000e-01 : f32
    %449 = vector.broadcast %cst_225 : f32 to vector<8x128xf32>
    %450 = arith.mulf %449, %448 : vector<8x128xf32>
    %cst_226 = arith.constant 5.000000e-01 : f32
    %451 = vector.broadcast %cst_226 : f32 to vector<8x128xf32>
    %452 = arith.addf %450, %451 : vector<8x128xf32>
    %453 = arith.select %2, %448, %452 : vector<8x128xi1>, vector<8x128xf32>
    %c64_i32_227 = arith.constant 64 : i32
    %454 = tpu.dynamic_rotate %453 by %c64_i32_227 dim 1 : vector<8x128xf32>, i32 -> vector<8x128xf32>
    %c32_i32_228 = arith.constant 32 : i32
    %455 = tpu.dynamic_rotate %453 by %c32_i32_228 dim 1 : vector<8x128xf32>, i32 -> vector<8x128xf32>
    %c96_i32_229 = arith.constant 96 : i32
    %456 = tpu.dynamic_rotate %453 by %c96_i32_229 dim 1 : vector<8x128xf32>, i32 -> vector<8x128xf32>
    %457 = arith.mulf %453, %421 : vector<8x128xf32>
    %458 = arith.mulf %455, %456 : vector<8x128xf32>
    %459 = arith.addf %457, %458 : vector<8x128xf32>
    %460 = math.tanh %459 : vector<8x128xf32>
    %461 = arith.mulf %454, %460 : vector<8x128xf32>
    %462 = vector.extract_strided_slice %445 {offsets = [0, 128], sizes = [8, 128], strides = [1, 1]} : vector<8x256xf32> to vector<8x128xf32>
    %463 = arith.mulf %462, %5 : vector<8x128xf32>
    %464 = math.tanh %463 : vector<8x128xf32>
    %cst_230 = arith.constant 5.000000e-01 : f32
    %465 = vector.broadcast %cst_230 : f32 to vector<8x128xf32>
    %466 = arith.mulf %465, %464 : vector<8x128xf32>
    %cst_231 = arith.constant 5.000000e-01 : f32
    %467 = vector.broadcast %cst_231 : f32 to vector<8x128xf32>
    %468 = arith.addf %466, %467 : vector<8x128xf32>
    %469 = arith.select %2, %464, %468 : vector<8x128xi1>, vector<8x128xf32>
    %c64_i32_232 = arith.constant 64 : i32
    %470 = tpu.dynamic_rotate %469 by %c64_i32_232 dim 1 : vector<8x128xf32>, i32 -> vector<8x128xf32>
    %c32_i32_233 = arith.constant 32 : i32
    %471 = tpu.dynamic_rotate %469 by %c32_i32_233 dim 1 : vector<8x128xf32>, i32 -> vector<8x128xf32>
    %c96_i32_234 = arith.constant 96 : i32
    %472 = tpu.dynamic_rotate %469 by %c96_i32_234 dim 1 : vector<8x128xf32>, i32 -> vector<8x128xf32>
    %473 = arith.mulf %469, %437 : vector<8x128xf32>
    %474 = arith.mulf %471, %472 : vector<8x128xf32>
    %475 = arith.addf %473, %474 : vector<8x128xf32>
    %476 = math.tanh %475 : vector<8x128xf32>
    %477 = arith.mulf %470, %476 : vector<8x128xf32>
    %c24_235 = arith.constant 24 : index
    %c0_236 = arith.constant 0 : index
    %478 = vector.load %arg15[%c24_235, %c0_236] : memref<64x128xf32, #tpu.memory_space<vmem>>, vector<8x128xf32>
    %c32_237 = arith.constant 32 : index
    %c0_238 = arith.constant 0 : index
    %479 = vector.load %arg16[%c32_237, %c0_238] : memref<64x128xf32, #tpu.memory_space<vmem>>, vector<8x128xf32>
    %480 = tpu.concatenate %478, %479 in 1 : vector<8x128xf32>, vector<8x128xf32> -> vector<8x256xf32>
    %481 = tpu.concatenate %461, %477 in 1 : vector<8x128xf32>, vector<8x128xf32> -> vector<8x256xf32>
    %cst_239 = arith.constant dense<0.000000e+00> : vector<8x256xf32>
    %482 = tpu.matmul %481, %359, %cst_239 {dimension_numbers = #tpu.dot_dimension_numbers<[1], [0], [0], [1], [0, 0, 1, 1], [], []>} : vector<8x256xf32>, vector<256x256xf32>, vector<8x256xf32> -> vector<8x256xf32>
    %483 = arith.addf %480, %482 : vector<8x256xf32>
    %484 = vector.extract_strided_slice %483 {offsets = [0, 0], sizes = [8, 128], strides = [1, 1]} : vector<8x256xf32> to vector<8x128xf32>
    %485 = arith.mulf %484, %5 : vector<8x128xf32>
    %486 = math.tanh %485 : vector<8x128xf32>
    %cst_240 = arith.constant 5.000000e-01 : f32
    %487 = vector.broadcast %cst_240 : f32 to vector<8x128xf32>
    %488 = arith.mulf %487, %486 : vector<8x128xf32>
    %cst_241 = arith.constant 5.000000e-01 : f32
    %489 = vector.broadcast %cst_241 : f32 to vector<8x128xf32>
    %490 = arith.addf %488, %489 : vector<8x128xf32>
    %491 = arith.select %2, %486, %490 : vector<8x128xi1>, vector<8x128xf32>
    %c64_i32_242 = arith.constant 64 : i32
    %492 = tpu.dynamic_rotate %491 by %c64_i32_242 dim 1 : vector<8x128xf32>, i32 -> vector<8x128xf32>
    %c32_i32_243 = arith.constant 32 : i32
    %493 = tpu.dynamic_rotate %491 by %c32_i32_243 dim 1 : vector<8x128xf32>, i32 -> vector<8x128xf32>
    %c96_i32_244 = arith.constant 96 : i32
    %494 = tpu.dynamic_rotate %491 by %c96_i32_244 dim 1 : vector<8x128xf32>, i32 -> vector<8x128xf32>
    %495 = arith.mulf %491, %459 : vector<8x128xf32>
    %496 = arith.mulf %493, %494 : vector<8x128xf32>
    %497 = arith.addf %495, %496 : vector<8x128xf32>
    %498 = math.tanh %497 : vector<8x128xf32>
    %499 = arith.mulf %492, %498 : vector<8x128xf32>
    %500 = vector.extract_strided_slice %483 {offsets = [0, 128], sizes = [8, 128], strides = [1, 1]} : vector<8x256xf32> to vector<8x128xf32>
    %501 = arith.mulf %500, %5 : vector<8x128xf32>
    %502 = math.tanh %501 : vector<8x128xf32>
    %cst_245 = arith.constant 5.000000e-01 : f32
    %503 = vector.broadcast %cst_245 : f32 to vector<8x128xf32>
    %504 = arith.mulf %503, %502 : vector<8x128xf32>
    %cst_246 = arith.constant 5.000000e-01 : f32
    %505 = vector.broadcast %cst_246 : f32 to vector<8x128xf32>
    %506 = arith.addf %504, %505 : vector<8x128xf32>
    %507 = arith.select %2, %502, %506 : vector<8x128xi1>, vector<8x128xf32>
    %c64_i32_247 = arith.constant 64 : i32
    %508 = tpu.dynamic_rotate %507 by %c64_i32_247 dim 1 : vector<8x128xf32>, i32 -> vector<8x128xf32>
    %c32_i32_248 = arith.constant 32 : i32
    %509 = tpu.dynamic_rotate %507 by %c32_i32_248 dim 1 : vector<8x128xf32>, i32 -> vector<8x128xf32>
    %c96_i32_249 = arith.constant 96 : i32
    %510 = tpu.dynamic_rotate %507 by %c96_i32_249 dim 1 : vector<8x128xf32>, i32 -> vector<8x128xf32>
    %511 = arith.mulf %507, %475 : vector<8x128xf32>
    %512 = arith.mulf %509, %510 : vector<8x128xf32>
    %513 = arith.addf %511, %512 : vector<8x128xf32>
    %514 = math.tanh %513 : vector<8x128xf32>
    %515 = arith.mulf %508, %514 : vector<8x128xf32>
    %c32_250 = arith.constant 32 : index
    %c0_251 = arith.constant 0 : index
    %516 = vector.load %arg15[%c32_250, %c0_251] : memref<64x128xf32, #tpu.memory_space<vmem>>, vector<8x128xf32>
    %c24_252 = arith.constant 24 : index
    %c0_253 = arith.constant 0 : index
    %517 = vector.load %arg16[%c24_252, %c0_253] : memref<64x128xf32, #tpu.memory_space<vmem>>, vector<8x128xf32>
    %518 = tpu.concatenate %516, %517 in 1 : vector<8x128xf32>, vector<8x128xf32> -> vector<8x256xf32>
    %519 = tpu.concatenate %499, %515 in 1 : vector<8x128xf32>, vector<8x128xf32> -> vector<8x256xf32>
    %cst_254 = arith.constant dense<0.000000e+00> : vector<8x256xf32>
    %520 = tpu.matmul %519, %359, %cst_254 {dimension_numbers = #tpu.dot_dimension_numbers<[1], [0], [0], [1], [0, 0, 1, 1], [], []>} : vector<8x256xf32>, vector<256x256xf32>, vector<8x256xf32> -> vector<8x256xf32>
    %521 = arith.addf %518, %520 : vector<8x256xf32>
    %522 = vector.extract_strided_slice %521 {offsets = [0, 0], sizes = [8, 128], strides = [1, 1]} : vector<8x256xf32> to vector<8x128xf32>
    %523 = arith.mulf %522, %5 : vector<8x128xf32>
    %524 = math.tanh %523 : vector<8x128xf32>
    %cst_255 = arith.constant 5.000000e-01 : f32
    %525 = vector.broadcast %cst_255 : f32 to vector<8x128xf32>
    %526 = arith.mulf %525, %524 : vector<8x128xf32>
    %cst_256 = arith.constant 5.000000e-01 : f32
    %527 = vector.broadcast %cst_256 : f32 to vector<8x128xf32>
    %528 = arith.addf %526, %527 : vector<8x128xf32>
    %529 = arith.select %2, %524, %528 : vector<8x128xi1>, vector<8x128xf32>
    %c64_i32_257 = arith.constant 64 : i32
    %530 = tpu.dynamic_rotate %529 by %c64_i32_257 dim 1 : vector<8x128xf32>, i32 -> vector<8x128xf32>
    %c32_i32_258 = arith.constant 32 : i32
    %531 = tpu.dynamic_rotate %529 by %c32_i32_258 dim 1 : vector<8x128xf32>, i32 -> vector<8x128xf32>
    %c96_i32_259 = arith.constant 96 : i32
    %532 = tpu.dynamic_rotate %529 by %c96_i32_259 dim 1 : vector<8x128xf32>, i32 -> vector<8x128xf32>
    %533 = arith.mulf %529, %497 : vector<8x128xf32>
    %534 = arith.mulf %531, %532 : vector<8x128xf32>
    %535 = arith.addf %533, %534 : vector<8x128xf32>
    %536 = math.tanh %535 : vector<8x128xf32>
    %537 = arith.mulf %530, %536 : vector<8x128xf32>
    %538 = vector.extract_strided_slice %521 {offsets = [0, 128], sizes = [8, 128], strides = [1, 1]} : vector<8x256xf32> to vector<8x128xf32>
    %539 = arith.mulf %538, %5 : vector<8x128xf32>
    %540 = math.tanh %539 : vector<8x128xf32>
    %cst_260 = arith.constant 5.000000e-01 : f32
    %541 = vector.broadcast %cst_260 : f32 to vector<8x128xf32>
    %542 = arith.mulf %541, %540 : vector<8x128xf32>
    %cst_261 = arith.constant 5.000000e-01 : f32
    %543 = vector.broadcast %cst_261 : f32 to vector<8x128xf32>
    %544 = arith.addf %542, %543 : vector<8x128xf32>
    %545 = arith.select %2, %540, %544 : vector<8x128xi1>, vector<8x128xf32>
    %c64_i32_262 = arith.constant 64 : i32
    %546 = tpu.dynamic_rotate %545 by %c64_i32_262 dim 1 : vector<8x128xf32>, i32 -> vector<8x128xf32>
    %c32_i32_263 = arith.constant 32 : i32
    %547 = tpu.dynamic_rotate %545 by %c32_i32_263 dim 1 : vector<8x128xf32>, i32 -> vector<8x128xf32>
    %c96_i32_264 = arith.constant 96 : i32
    %548 = tpu.dynamic_rotate %545 by %c96_i32_264 dim 1 : vector<8x128xf32>, i32 -> vector<8x128xf32>
    %549 = arith.mulf %545, %513 : vector<8x128xf32>
    %550 = arith.mulf %547, %548 : vector<8x128xf32>
    %551 = arith.addf %549, %550 : vector<8x128xf32>
    %552 = math.tanh %551 : vector<8x128xf32>
    %553 = arith.mulf %546, %552 : vector<8x128xf32>
    %c40_265 = arith.constant 40 : index
    %c0_266 = arith.constant 0 : index
    %554 = vector.load %arg15[%c40_265, %c0_266] : memref<64x128xf32, #tpu.memory_space<vmem>>, vector<8x128xf32>
    %c16_267 = arith.constant 16 : index
    %c0_268 = arith.constant 0 : index
    %555 = vector.load %arg16[%c16_267, %c0_268] : memref<64x128xf32, #tpu.memory_space<vmem>>, vector<8x128xf32>
    %556 = tpu.concatenate %554, %555 in 1 : vector<8x128xf32>, vector<8x128xf32> -> vector<8x256xf32>
    %557 = tpu.concatenate %537, %553 in 1 : vector<8x128xf32>, vector<8x128xf32> -> vector<8x256xf32>
    %cst_269 = arith.constant dense<0.000000e+00> : vector<8x256xf32>
    %558 = tpu.matmul %557, %359, %cst_269 {dimension_numbers = #tpu.dot_dimension_numbers<[1], [0], [0], [1], [0, 0, 1, 1], [], []>} : vector<8x256xf32>, vector<256x256xf32>, vector<8x256xf32> -> vector<8x256xf32>
    %559 = arith.addf %556, %558 : vector<8x256xf32>
    %560 = vector.extract_strided_slice %559 {offsets = [0, 0], sizes = [8, 128], strides = [1, 1]} : vector<8x256xf32> to vector<8x128xf32>
    %561 = arith.mulf %560, %5 : vector<8x128xf32>
    %562 = math.tanh %561 : vector<8x128xf32>
    %cst_270 = arith.constant 5.000000e-01 : f32
    %563 = vector.broadcast %cst_270 : f32 to vector<8x128xf32>
    %564 = arith.mulf %563, %562 : vector<8x128xf32>
    %cst_271 = arith.constant 5.000000e-01 : f32
    %565 = vector.broadcast %cst_271 : f32 to vector<8x128xf32>
    %566 = arith.addf %564, %565 : vector<8x128xf32>
    %567 = arith.select %2, %562, %566 : vector<8x128xi1>, vector<8x128xf32>
    %c64_i32_272 = arith.constant 64 : i32
    %568 = tpu.dynamic_rotate %567 by %c64_i32_272 dim 1 : vector<8x128xf32>, i32 -> vector<8x128xf32>
    %c32_i32_273 = arith.constant 32 : i32
    %569 = tpu.dynamic_rotate %567 by %c32_i32_273 dim 1 : vector<8x128xf32>, i32 -> vector<8x128xf32>
    %c96_i32_274 = arith.constant 96 : i32
    %570 = tpu.dynamic_rotate %567 by %c96_i32_274 dim 1 : vector<8x128xf32>, i32 -> vector<8x128xf32>
    %571 = arith.mulf %567, %535 : vector<8x128xf32>
    %572 = arith.mulf %569, %570 : vector<8x128xf32>
    %573 = arith.addf %571, %572 : vector<8x128xf32>
    %574 = math.tanh %573 : vector<8x128xf32>
    %575 = arith.mulf %568, %574 : vector<8x128xf32>
    %576 = vector.extract_strided_slice %559 {offsets = [0, 128], sizes = [8, 128], strides = [1, 1]} : vector<8x256xf32> to vector<8x128xf32>
    %577 = arith.mulf %576, %5 : vector<8x128xf32>
    %578 = math.tanh %577 : vector<8x128xf32>
    %cst_275 = arith.constant 5.000000e-01 : f32
    %579 = vector.broadcast %cst_275 : f32 to vector<8x128xf32>
    %580 = arith.mulf %579, %578 : vector<8x128xf32>
    %cst_276 = arith.constant 5.000000e-01 : f32
    %581 = vector.broadcast %cst_276 : f32 to vector<8x128xf32>
    %582 = arith.addf %580, %581 : vector<8x128xf32>
    %583 = arith.select %2, %578, %582 : vector<8x128xi1>, vector<8x128xf32>
    %c64_i32_277 = arith.constant 64 : i32
    %584 = tpu.dynamic_rotate %583 by %c64_i32_277 dim 1 : vector<8x128xf32>, i32 -> vector<8x128xf32>
    %c32_i32_278 = arith.constant 32 : i32
    %585 = tpu.dynamic_rotate %583 by %c32_i32_278 dim 1 : vector<8x128xf32>, i32 -> vector<8x128xf32>
    %c96_i32_279 = arith.constant 96 : i32
    %586 = tpu.dynamic_rotate %583 by %c96_i32_279 dim 1 : vector<8x128xf32>, i32 -> vector<8x128xf32>
    %587 = arith.mulf %583, %551 : vector<8x128xf32>
    %588 = arith.mulf %585, %586 : vector<8x128xf32>
    %589 = arith.addf %587, %588 : vector<8x128xf32>
    %590 = math.tanh %589 : vector<8x128xf32>
    %591 = arith.mulf %584, %590 : vector<8x128xf32>
    %c48_280 = arith.constant 48 : index
    %c0_281 = arith.constant 0 : index
    %592 = vector.load %arg15[%c48_280, %c0_281] : memref<64x128xf32, #tpu.memory_space<vmem>>, vector<8x128xf32>
    %c8_282 = arith.constant 8 : index
    %c0_283 = arith.constant 0 : index
    %593 = vector.load %arg16[%c8_282, %c0_283] : memref<64x128xf32, #tpu.memory_space<vmem>>, vector<8x128xf32>
    %594 = tpu.concatenate %592, %593 in 1 : vector<8x128xf32>, vector<8x128xf32> -> vector<8x256xf32>
    %595 = tpu.concatenate %575, %591 in 1 : vector<8x128xf32>, vector<8x128xf32> -> vector<8x256xf32>
    %cst_284 = arith.constant dense<0.000000e+00> : vector<8x256xf32>
    %596 = tpu.matmul %595, %359, %cst_284 {dimension_numbers = #tpu.dot_dimension_numbers<[1], [0], [0], [1], [0, 0, 1, 1], [], []>} : vector<8x256xf32>, vector<256x256xf32>, vector<8x256xf32> -> vector<8x256xf32>
    %597 = arith.addf %594, %596 : vector<8x256xf32>
    %598 = vector.extract_strided_slice %597 {offsets = [0, 0], sizes = [8, 128], strides = [1, 1]} : vector<8x256xf32> to vector<8x128xf32>
    %599 = arith.mulf %598, %5 : vector<8x128xf32>
    %600 = math.tanh %599 : vector<8x128xf32>
    %cst_285 = arith.constant 5.000000e-01 : f32
    %601 = vector.broadcast %cst_285 : f32 to vector<8x128xf32>
    %602 = arith.mulf %601, %600 : vector<8x128xf32>
    %cst_286 = arith.constant 5.000000e-01 : f32
    %603 = vector.broadcast %cst_286 : f32 to vector<8x128xf32>
    %604 = arith.addf %602, %603 : vector<8x128xf32>
    %605 = arith.select %2, %600, %604 : vector<8x128xi1>, vector<8x128xf32>
    %c64_i32_287 = arith.constant 64 : i32
    %606 = tpu.dynamic_rotate %605 by %c64_i32_287 dim 1 : vector<8x128xf32>, i32 -> vector<8x128xf32>
    %c32_i32_288 = arith.constant 32 : i32
    %607 = tpu.dynamic_rotate %605 by %c32_i32_288 dim 1 : vector<8x128xf32>, i32 -> vector<8x128xf32>
    %c96_i32_289 = arith.constant 96 : i32
    %608 = tpu.dynamic_rotate %605 by %c96_i32_289 dim 1 : vector<8x128xf32>, i32 -> vector<8x128xf32>
    %609 = arith.mulf %605, %573 : vector<8x128xf32>
    %610 = arith.mulf %607, %608 : vector<8x128xf32>
    %611 = arith.addf %609, %610 : vector<8x128xf32>
    %612 = math.tanh %611 : vector<8x128xf32>
    %613 = arith.mulf %606, %612 : vector<8x128xf32>
    %614 = vector.extract_strided_slice %597 {offsets = [0, 128], sizes = [8, 128], strides = [1, 1]} : vector<8x256xf32> to vector<8x128xf32>
    %615 = arith.mulf %614, %5 : vector<8x128xf32>
    %616 = math.tanh %615 : vector<8x128xf32>
    %cst_290 = arith.constant 5.000000e-01 : f32
    %617 = vector.broadcast %cst_290 : f32 to vector<8x128xf32>
    %618 = arith.mulf %617, %616 : vector<8x128xf32>
    %cst_291 = arith.constant 5.000000e-01 : f32
    %619 = vector.broadcast %cst_291 : f32 to vector<8x128xf32>
    %620 = arith.addf %618, %619 : vector<8x128xf32>
    %621 = arith.select %2, %616, %620 : vector<8x128xi1>, vector<8x128xf32>
    %c64_i32_292 = arith.constant 64 : i32
    %622 = tpu.dynamic_rotate %621 by %c64_i32_292 dim 1 : vector<8x128xf32>, i32 -> vector<8x128xf32>
    %c32_i32_293 = arith.constant 32 : i32
    %623 = tpu.dynamic_rotate %621 by %c32_i32_293 dim 1 : vector<8x128xf32>, i32 -> vector<8x128xf32>
    %c96_i32_294 = arith.constant 96 : i32
    %624 = tpu.dynamic_rotate %621 by %c96_i32_294 dim 1 : vector<8x128xf32>, i32 -> vector<8x128xf32>
    %625 = arith.mulf %621, %589 : vector<8x128xf32>
    %626 = arith.mulf %623, %624 : vector<8x128xf32>
    %627 = arith.addf %625, %626 : vector<8x128xf32>
    %628 = math.tanh %627 : vector<8x128xf32>
    %629 = arith.mulf %622, %628 : vector<8x128xf32>
    %c56_295 = arith.constant 56 : index
    %c0_296 = arith.constant 0 : index
    %630 = vector.load %arg15[%c56_295, %c0_296] : memref<64x128xf32, #tpu.memory_space<vmem>>, vector<8x128xf32>
    %c0_297 = arith.constant 0 : index
    %c0_298 = arith.constant 0 : index
    %631 = vector.load %arg16[%c0_297, %c0_298] : memref<64x128xf32, #tpu.memory_space<vmem>>, vector<8x128xf32>
    %632 = tpu.concatenate %630, %631 in 1 : vector<8x128xf32>, vector<8x128xf32> -> vector<8x256xf32>
    %633 = tpu.concatenate %613, %629 in 1 : vector<8x128xf32>, vector<8x128xf32> -> vector<8x256xf32>
    %cst_299 = arith.constant dense<0.000000e+00> : vector<8x256xf32>
    %634 = tpu.matmul %633, %359, %cst_299 {dimension_numbers = #tpu.dot_dimension_numbers<[1], [0], [0], [1], [0, 0, 1, 1], [], []>} : vector<8x256xf32>, vector<256x256xf32>, vector<8x256xf32> -> vector<8x256xf32>
    %635 = arith.addf %632, %634 : vector<8x256xf32>
    %636 = vector.extract_strided_slice %635 {offsets = [0, 0], sizes = [8, 128], strides = [1, 1]} : vector<8x256xf32> to vector<8x128xf32>
    %637 = arith.mulf %636, %5 : vector<8x128xf32>
    %638 = math.tanh %637 : vector<8x128xf32>
    %cst_300 = arith.constant 5.000000e-01 : f32
    %639 = vector.broadcast %cst_300 : f32 to vector<8x128xf32>
    %640 = arith.mulf %639, %638 : vector<8x128xf32>
    %cst_301 = arith.constant 5.000000e-01 : f32
    %641 = vector.broadcast %cst_301 : f32 to vector<8x128xf32>
    %642 = arith.addf %640, %641 : vector<8x128xf32>
    %643 = arith.select %2, %638, %642 : vector<8x128xi1>, vector<8x128xf32>
    %c64_i32_302 = arith.constant 64 : i32
    %644 = tpu.dynamic_rotate %643 by %c64_i32_302 dim 1 : vector<8x128xf32>, i32 -> vector<8x128xf32>
    %c32_i32_303 = arith.constant 32 : i32
    %645 = tpu.dynamic_rotate %643 by %c32_i32_303 dim 1 : vector<8x128xf32>, i32 -> vector<8x128xf32>
    %c96_i32_304 = arith.constant 96 : i32
    %646 = tpu.dynamic_rotate %643 by %c96_i32_304 dim 1 : vector<8x128xf32>, i32 -> vector<8x128xf32>
    %647 = arith.mulf %643, %611 : vector<8x128xf32>
    %648 = arith.mulf %645, %646 : vector<8x128xf32>
    %649 = arith.addf %647, %648 : vector<8x128xf32>
    %650 = math.tanh %649 : vector<8x128xf32>
    %651 = arith.mulf %644, %650 : vector<8x128xf32>
    %652 = vector.extract_strided_slice %635 {offsets = [0, 128], sizes = [8, 128], strides = [1, 1]} : vector<8x256xf32> to vector<8x128xf32>
    %653 = arith.mulf %652, %5 : vector<8x128xf32>
    %654 = math.tanh %653 : vector<8x128xf32>
    %cst_305 = arith.constant 5.000000e-01 : f32
    %655 = vector.broadcast %cst_305 : f32 to vector<8x128xf32>
    %656 = arith.mulf %655, %654 : vector<8x128xf32>
    %cst_306 = arith.constant 5.000000e-01 : f32
    %657 = vector.broadcast %cst_306 : f32 to vector<8x128xf32>
    %658 = arith.addf %656, %657 : vector<8x128xf32>
    %659 = arith.select %2, %654, %658 : vector<8x128xi1>, vector<8x128xf32>
    %c64_i32_307 = arith.constant 64 : i32
    %660 = tpu.dynamic_rotate %659 by %c64_i32_307 dim 1 : vector<8x128xf32>, i32 -> vector<8x128xf32>
    %c32_i32_308 = arith.constant 32 : i32
    %661 = tpu.dynamic_rotate %659 by %c32_i32_308 dim 1 : vector<8x128xf32>, i32 -> vector<8x128xf32>
    %c96_i32_309 = arith.constant 96 : i32
    %662 = tpu.dynamic_rotate %659 by %c96_i32_309 dim 1 : vector<8x128xf32>, i32 -> vector<8x128xf32>
    %663 = arith.mulf %659, %627 : vector<8x128xf32>
    %664 = arith.mulf %661, %662 : vector<8x128xf32>
    %665 = arith.addf %663, %664 : vector<8x128xf32>
    %666 = math.tanh %665 : vector<8x128xf32>
    %667 = arith.mulf %660, %666 : vector<8x128xf32>
    %668 = tpu.concatenate %651, %667 in 1 : vector<8x128xf32>, vector<8x128xf32> -> vector<8x256xf32>
    %c0_310 = arith.constant 0 : index
    %c0_311 = arith.constant 0 : index
    %669 = vector.load %arg12[%c0_310, %c0_311] : memref<256x128xf32, #tpu.memory_space<vmem>>, vector<256x128xf32>
    %cst_312 = arith.constant dense<0.000000e+00> : vector<8x128xf32>
    %670 = tpu.matmul %668, %669, %cst_312 {dimension_numbers = #tpu.dot_dimension_numbers<[1], [0], [0], [1], [0, 0, 1, 1], [], []>} : vector<8x256xf32>, vector<256x128xf32>, vector<8x128xf32> -> vector<8x128xf32>
    %c0_313 = arith.constant 0 : index
    %c0_314 = arith.constant 0 : index
    %671 = vector.load %arg13[%c0_313, %c0_314] : memref<1x128xf32, #tpu.memory_space<vmem>>, vector<1x128xf32>
    %672 = vector.broadcast %671 : vector<1x128xf32> to vector<8x128xf32>
    %673 = arith.addf %670, %672 : vector<8x128xf32>
    %cst_315 = arith.constant 0.000000e+00 : f32
    %674 = vector.broadcast %cst_315 : f32 to vector<8x128xf32>
    %675 = arith.maximumf %673, %674 : vector<8x128xf32>
    %c0_316 = arith.constant 0 : index
    %c0_317 = arith.constant 0 : index
    %676 = vector.load %arg14[%c0_316, %c0_317] : memref<8x128xf32, #tpu.memory_space<vmem>>, vector<8x128xf32>
    tpu.vector_store %arg14[%c0_316, %c0_317], %675 {strides = array<i32>} : memref<8x128xf32, #tpu.memory_space<vmem>>, vector<8x128xf32>,
    return
  }
  func.func @transform_0(%arg0: i32) -> (i32, i32) {
    %c0_i32 = arith.constant 0 : i32
    %c0_i32_0 = arith.constant 0 : i32
    %c0_i32_1 = arith.constant 0 : i32
    return %c0_i32, %c0_i32_0 : i32, i32
  }
  func.func @transform_1(%arg0: i32) -> (i32, i32) {
    %c0_i32 = arith.constant 0 : i32
    %c0_i32_0 = arith.constant 0 : i32
    %c0_i32_1 = arith.constant 0 : i32
    return %c0_i32, %c0_i32_0 : i32, i32
  }
  func.func @transform_2(%arg0: i32) -> (i32, i32) {
    %c0_i32 = arith.constant 0 : i32
    %c0_i32_0 = arith.constant 0 : i32
    %c0_i32_1 = arith.constant 0 : i32
    return %c0_i32, %c0_i32_0 : i32, i32
  }
  func.func @transform_3(%arg0: i32) -> (i32, i32) {
    %c0_i32 = arith.constant 0 : i32
    %c0_i32_0 = arith.constant 0 : i32
    %c0_i32_1 = arith.constant 0 : i32
    return %c0_i32, %c0_i32_0 : i32, i32
  }
  func.func @transform_4(%arg0: i32) -> (i32, i32) {
    %c0_i32 = arith.constant 0 : i32
    %c0_i32_0 = arith.constant 0 : i32
    %c0_i32_1 = arith.constant 0 : i32
    return %c0_i32, %c0_i32_0 : i32, i32
  }
  func.func @transform_5(%arg0: i32) -> (i32, i32) {
    %c0_i32 = arith.constant 0 : i32
    %c0_i32_0 = arith.constant 0 : i32
    %c0_i32_1 = arith.constant 0 : i32
    return %c0_i32, %c0_i32_0 : i32, i32
  }
  func.func @transform_6(%arg0: i32) -> (i32, i32) {
    %c0_i32 = arith.constant 0 : i32
    %c0_i32_0 = arith.constant 0 : i32
    %c0_i32_1 = arith.constant 0 : i32
    return %c0_i32, %c0_i32_0 : i32, i32
  }
  func.func @transform_7(%arg0: i32) -> (i32, i32) {
    %c0_i32 = arith.constant 0 : i32
    %c0_i32_0 = arith.constant 0 : i32
    %c0_i32_1 = arith.constant 0 : i32
    return %c0_i32, %c0_i32_0 : i32, i32
  }
  func.func @transform_8(%arg0: i32) -> (i32, i32) {
    %c0_i32 = arith.constant 0 : i32
    %c0_i32_0 = arith.constant 0 : i32
    %c0_i32_1 = arith.constant 0 : i32
    return %c0_i32, %c0_i32_0 : i32, i32
  }
  func.func @transform_9(%arg0: i32) -> (i32, i32) {
    %c0_i32 = arith.constant 0 : i32
    %c0_i32_0 = arith.constant 0 : i32
    %c0_i32_1 = arith.constant 0 : i32
    return %c0_i32, %c0_i32_0 : i32, i32
  }
  func.func @transform_10(%arg0: i32) -> (i32, i32) {
    %c0_i32 = arith.constant 0 : i32
    %c0_i32_0 = arith.constant 0 : i32
    %c0_i32_1 = arith.constant 0 : i32
    return %c0_i32, %c0_i32_0 : i32, i32
  }
  func.func @transform_11(%arg0: i32) -> (i32, i32) {
    %c0_i32 = arith.constant 0 : i32
    %c0_i32_0 = arith.constant 0 : i32
    %c0_i32_1 = arith.constant 0 : i32
    return %c0_i32, %c0_i32_0 : i32, i32
  }
  func.func @transform_12(%arg0: i32) -> (i32, i32) {
    %c0_i32 = arith.constant 0 : i32
    %c0_i32_0 = arith.constant 0 : i32
    %c0_i32_1 = arith.constant 0 : i32
    return %c0_i32, %c0_i32_0 : i32, i32
  }
  func.func @transform_13(%arg0: i32) -> (i32, i32) {
    %c0_i32 = arith.constant 0 : i32
    %c0_i32_0 = arith.constant 0 : i32
    %c0_i32_1 = arith.constant 0 : i32
    return %c0_i32, %c0_i32_0 : i32, i32
  }
}

</mosaic_0001>

<llo_original>
// kernel: tpu_custom_call.1
$region0: #{tpu_custom_call.1}
  #allocation0 [shape = 'u32[]', space=smem, size = 0x4, offset = 0x4, fixed_abs, tag = 'smem constant byte address 0x4 - core index']
  #allocation1 [shape = 'u32[144,128]{1,0:T(1,128)}', space=vmem, size = 0x12000, scoped, tag = 'internal scratch']
  #allocation2 [shape = 'f32[64,128]{1,0:T(8,128)}', space=vmem, size = 0x8000, scoped, tag = 'scratch operand']
  #allocation3 [shape = 'f32[64,128]{1,0:T(8,128)}', space=vmem, size = 0x8000, scoped, tag = 'scratch operand']
  #allocation4 [shape = 'f32[64,256]{1,0:T(8,128)}', space=vmem, size = 0x10000, scoped, tag = 'scratch operand']
  %s0 = inlined_call_operand.vmem [shape: f32[64,16], index: 0, kind: input, shape index: {}]
  %s1 = inlined_call_operand.vmem [shape: f32[16,128], index: 1, kind: input, shape index: {}]
  %s2 = inlined_call_operand.vmem [shape: f32[1,128], index: 2, kind: input, shape index: {}]
  %s3 = inlined_call_operand.vmem [shape: f32[16,128], index: 3, kind: input, shape index: {}]
  %s4 = inlined_call_operand.vmem [shape: f32[1,128], index: 4, kind: input, shape index: {}]
  %s5 = inlined_call_operand.hbm [shape: f32[256,256], index: 5, kind: input, shape index: {}]
  %s6 = inlined_call_operand.hbm [shape: f32[256,128], index: 6, kind: input, shape index: {}]
  %s7 = inlined_call_operand.vmem [shape: f32[1,128], index: 7, kind: input, shape index: {}]
  %s8 = inlined_call_operand.hbm [shape: f32[256,128], index: 8, kind: input, shape index: {}]
  %s9 = inlined_call_operand.vmem [shape: f32[1,128], index: 9, kind: input, shape index: {}]
  %s10 = inlined_call_operand.hbm [shape: f32[256,256], index: 10, kind: input, shape index: {}]
  %s11 = inlined_call_operand.hbm [shape: f32[256,128], index: 11, kind: input, shape index: {}]
  %s12 = inlined_call_operand.vmem [shape: f32[1,128], index: 12, kind: input, shape index: {}]
  %s13 = inlined_call_operand.hbm [shape: f32[8,128], index: 13, kind: output, shape index: {}]
  %s14 = sld [smem:[#allocation0]]
  $region82: #{tpu_custom_call.1} parent=0
    _
  %s16 = ssub.s32 1, %s14
  %s17 = scalar_select 0, %s16, %s14
  $region1: #{tpu_custom_call.1} parent=0
    #allocation5 [shape = 'u8[262144]{0}', space=vmem, size = 0x40000, scoped, tag = 'input window, operand 5, single buffered']
    #allocation6 [shape = 's32[1]{0}', space=sflag, size = 0x4, scoped, tag = 'scoped memory for tpu_custom_call.1']
    #allocation7 [shape = 's32[1]{0}', space=sflag, size = 0x4, scoped, tag = 'scoped memory for tpu_custom_call.1']
    #allocation8 [shape = 'u8[131072]{0}', space=vmem, size = 0x20000, scoped, tag = 'input window, operand 6, single buffered']
    #allocation9 [shape = 's32[1]{0}', space=sflag, size = 0x4, scoped, tag = 'scoped memory for tpu_custom_call.1']
    #allocation10 [shape = 'u8[131072]{0}', space=vmem, size = 0x20000, scoped, tag = 'input window, operand 8, single buffered']
    #allocation11 [shape = 'u8[262144]{0}', space=vmem, size = 0x40000, scoped, tag = 'input window, operand 10, single buffered']
    #allocation12 [shape = 's32[1]{0}', space=sflag, size = 0x4, scoped, tag = 'scoped memory for tpu_custom_call.1']
    #allocation13 [shape = 'u8[131072]{0}', space=vmem, size = 0x20000, scoped, tag = 'input window, operand 11, single buffered']
    #allocation14 [shape = 'u8[4096]{0}', space=vmem, size = 0x1000, scoped, tag = 'output window, operand 0, single buffered']
    %18 = vsyncpa [#allocation6], 0
    %19 = vsyncpa [#allocation9], 0
    %20 = vsyncpa [#allocation12], 0
    %21 = vsyncpa [#allocation7], 0
    // Predicated region
    $region2: #{tpu_custom_call.1} parent=1 // pred_check
      _
    $region3: #{tpu_custom_call.1} parent=1 // pred_check_branch
      %23 = sbr.rel (0) target = $region5
    $region4: #{tpu_custom_call.1} parent=1 // pred_region
      _
    $region5: #{tpu_custom_call.1} parent=1 // pred_fallthru
      _
    // Predicated region
    $region6: #{tpu_custom_call.1} parent=1 // pred_check
      _
    $region7: #{tpu_custom_call.1} parent=1 // pred_check_branch
      %25 = sbr.rel (0) target = $region9
    $region8: #{tpu_custom_call.1} parent=1 // pred_region
      _
    $region9: #{tpu_custom_call.1} parent=1 // pred_fallthru
      _
    // Predicated region
    $region10: #{tpu_custom_call.1} parent=1 // pred_check
      _
    $region11: #{tpu_custom_call.1} parent=1 // pred_check_branch
      %27 = sbr.rel (0) target = $region13
    $region12: #{tpu_custom_call.1} parent=1 // pred_region
      _
    $region13: #{tpu_custom_call.1} parent=1 // pred_fallthru
      _
    // Predicated region
    $region14: #{tpu_custom_call.1} parent=1 // pred_check
      _
    $region15: #{tpu_custom_call.1} parent=1 // pred_check_branch
      %29 = sbr.rel (0) target = $region17
    $region16: #{tpu_custom_call.1} parent=1 // pred_region
      _
    $region17: #{tpu_custom_call.1} parent=1 // pred_fallthru
      _
    // Predicated region
    $region18: #{tpu_custom_call.1} parent=1 // pred_check
      _
    $region19: #{tpu_custom_call.1} parent=1 // pred_check_branch
      %31 = sbr.rel (0) target = $region21
    $region20: #{tpu_custom_call.1} parent=1 // pred_region
      _
    $region21: #{tpu_custom_call.1} parent=1 // pred_fallthru
      _
    // Predicated region
    $region22: #{tpu_custom_call.1} parent=1 // pred_check
      _
    $region23: #{tpu_custom_call.1} parent=1 // pred_check_branch
      %33 = sbr.rel (0) target = $region25
    $region24: #{tpu_custom_call.1} parent=1 // pred_region
      %s35 = ssub.s32 8192, 8192
      %36 = vsyncadd [#allocation6], %s35
      %s37 = sshll.u32 [#allocation5], 4
      %s38 = int_to_ptr.vmem [resolvable:$true] %s37
      %43 = dma.hbm_to_vmem [thread:$0]  %s5, 8192, %s38, [#allocation6], 256, 256, 16
    $region25: #{tpu_custom_call.1} parent=1 // pred_fallthru
      _
    // Predicated region
    $region26: #{tpu_custom_call.1} parent=1 // pred_check
      _
    $region27: #{tpu_custom_call.1} parent=1 // pred_check_branch
      %45 = sbr.rel (0) target = $region29
    $region28: #{tpu_custom_call.1} parent=1 // pred_region
      %s47 = ssub.s32 4096, 4096
      %48 = vsyncadd [#allocation9], %s47
      %s49 = sshll.u32 [#allocation8], 4
      %s50 = int_to_ptr.vmem [resolvable:$true] %s49
      %55 = dma.hbm_to_vmem [thread:$0]  %s6, 4096, %s50, [#allocation9], 128, 128, 8
    $region29: #{tpu_custom_call.1} parent=1 // pred_fallthru
      _
    // Predicated region
    $region30: #{tpu_custom_call.1} parent=1 // pred_check
      _
    $region31: #{tpu_custom_call.1} parent=1 // pred_check_branch
      %57 = sbr.rel (0) target = $region33
    $region32: #{tpu_custom_call.1} parent=1 // pred_region
      _
    $region33: #{tpu_custom_call.1} parent=1 // pred_fallthru
      _
    // Predicated region
    $region34: #{tpu_custom_call.1} parent=1 // pred_check
      _
    $region35: #{tpu_custom_call.1} parent=1 // pred_check_branch
      %59 = sbr.rel (0) target = $region37
    $region36: #{tpu_custom_call.1} parent=1 // pred_region
      %s61 = ssub.s32 4096, 4096
      %62 = vsyncadd [#allocation9], %s61
      %s63 = sshll.u32 [#allocation10], 4
      %s64 = int_to_ptr.vmem [resolvable:$true] %s63
      %69 = dma.hbm_to_vmem [thread:$0]  %s8, 4096, %s64, [#allocation9], 128, 128, 8
    $region37: #{tpu_custom_call.1} parent=1 // pred_fallthru
      _
    // Predicated region
    $region38: #{tpu_custom_call.1} parent=1 // pred_check
      _
    $region39: #{tpu_custom_call.1} parent=1 // pred_check_branch
      %71 = sbr.rel (0) target = $region41
    $region40: #{tpu_custom_call.1} parent=1 // pred_region
      _
    $region41: #{tpu_custom_call.1} parent=1 // pred_fallthru
      _
    // Predicated region
    $region42: #{tpu_custom_call.1} parent=1 // pred_check
      _
    $region43: #{tpu_custom_call.1} parent=1 // pred_check_branch
      %73 = sbr.rel (0) target = $region45
    $region44: #{tpu_custom_call.1} parent=1 // pred_region
      %s75 = ssub.s32 8192, 8192
      %76 = vsyncadd [#allocation12], %s75
      %s77 = sshll.u32 [#allocation11], 4
      %s78 = int_to_ptr.vmem [resolvable:$true] %s77
      %83 = dma.hbm_to_vmem [thread:$0]  %s10, 8192, %s78, [#allocation12], 256, 256, 16
    $region45: #{tpu_custom_call.1} parent=1 // pred_fallthru
      _
    // Predicated region
    $region46: #{tpu_custom_call.1} parent=1 // pred_check
      _
    $region47: #{tpu_custom_call.1} parent=1 // pred_check_branch
      %85 = sbr.rel (0) target = $region49
    $region48: #{tpu_custom_call.1} parent=1 // pred_region
      %s87 = ssub.s32 4096, 4096
      %88 = vsyncadd [#allocation12], %s87
      %s89 = sshll.u32 [#allocation13], 4
      %s90 = int_to_ptr.vmem [resolvable:$true] %s89
      %95 = dma.hbm_to_vmem [thread:$0]  %s11, 4096, %s90, [#allocation12], 128, 128, 8
    $region49: #{tpu_custom_call.1} parent=1 // pred_fallthru
      _
    // Predicated region
    $region50: #{tpu_custom_call.1} parent=1 // pred_check
      _
    $region51: #{tpu_custom_call.1} parent=1 // pred_check_branch
      %97 = sbr.rel (0) target = $region53
    $region52: #{tpu_custom_call.1} parent=1 // pred_region
      _
    $region53: #{tpu_custom_call.1} parent=1 // pred_fallthru
      _
    // Predicated region
    $region54: #{tpu_custom_call.1} parent=1 // pred_check
      _
    $region55: #{tpu_custom_call.1} parent=1 // pred_check_branch
      %99 = sbr.rel (0) target = $region57
    $region56: #{tpu_custom_call.1} parent=1 // pred_region
      %100 = dma.done [#allocation6], 8192
    $region57: #{tpu_custom_call.1} parent=1 // pred_fallthru
      _
    // Predicated region
    $region58: #{tpu_custom_call.1} parent=1 // pred_check
      _
    $region59: #{tpu_custom_call.1} parent=1 // pred_check_branch
      %102 = sbr.rel (0) target = $region61
    $region60: #{tpu_custom_call.1} parent=1 // pred_region
      %103 = dma.done [#allocation9], 4096
    $region61: #{tpu_custom_call.1} parent=1 // pred_fallthru
      _
    // Predicated region
    $region62: #{tpu_custom_call.1} parent=1 // pred_check
      _
    $region63: #{tpu_custom_call.1} parent=1 // pred_check_branch
      %105 = sbr.rel (0) target = $region65
    $region64: #{tpu_custom_call.1} parent=1 // pred_region
      %106 = dma.done [#allocation9], 4096
    $region65: #{tpu_custom_call.1} parent=1 // pred_fallthru
      _
    // Predicated region
    $region66: #{tpu_custom_call.1} parent=1 // pred_check
      _
    $region67: #{tpu_custom_call.1} parent=1 // pred_check_branch
      %108 = sbr.rel (0) target = $region69
    $region68: #{tpu_custom_call.1} parent=1 // pred_region
      %109 = dma.done [#allocation12], 8192
    $region69: #{tpu_custom_call.1} parent=1 // pred_fallthru
      _
    // Predicated region
    $region70: #{tpu_custom_call.1} parent=1 // pred_check
      _
    $region71: #{tpu_custom_call.1} parent=1 // pred_check_branch
      %111 = sbr.rel (0) target = $region73
    $region72: #{tpu_custom_call.1} parent=1 // pred_region
      %112 = dma.done [#allocation12], 4096
    $region73: #{tpu_custom_call.1} parent=1 // pred_fallthru
      _
    %v113 = vlaneseq
    %v114 = vand.u32 %v113, 127
    %vm115 = vcmp.ge.s32.totalorder %v114, 96
    %v116 = vsel %vm115, 1.0, 0.5
    %v117 = vld [vmem:[%s0] sm:$0xff]
    %v118 = vld [vmem:[%s0 + $0x8] sm:$0xff]
    %v119 = vld [vmem:[%s0 + $0x10] sm:$0xff]
    %v120 = vld [vmem:[%s0 + $0x18] sm:$0xff]
    %v121 = vld [vmem:[%s0 + $0x20] sm:$0xff]
    %v122 = vld [vmem:[%s0 + $0x28] sm:$0xff]
    %v123 = vld [vmem:[%s0 + $0x30] sm:$0xff]
    %v124 = vld [vmem:[%s0 + $0x38] sm:$0xff]
    %v125 = vld [vmem:[%s1] sm:$0xff]
    %v126 = vld [vmem:[%s1 + $0x8] sm:$0xff]
    %v127 = vld [vmem:[%s2] sm:$0x1]
    %v129 = vlaneseq
    %v130 = vshrl.u32 %v129, 7
    %v131 = vsub.s32 0, %v130
    %v132 = vrot.slane %v127, %v131
    %vm134 = vcmask 130048
    %v136 = vsel %vm134, %v117, 0
    %v139 = vsel %vm134, %v118, 0
    %v142 = vsel %vm134, %v119, 0
    %v145 = vsel %vm134, %v120, 0
    %v148 = vsel %vm134, %v121, 0
    %v151 = vsel %vm134, %v122, 0
    %v154 = vsel %vm134, %v123, 0
    %v157 = vsel %vm134, %v124, 0
    %159 = vmatprep.subr.mxu0 0.0
    %160 = vmatpush1.msra.mxu0 %v125
    %161 = vmatprep.subr.mxu0 0.0
    %162 = vmatpush1.msra.mxu0 %v126
    %163 = vmatprep.subr.mxu0 0.0
    %164 = vmatpush1.msra.mxu0 0.0
    %165 = vmatprep.subr.mxu0 0.0
    %166 = vmatpush1.msra.mxu0 0.0
    %167 = vmatprep.subr.mxu0 0.0
    %168 = vmatpush1.msra.mxu0 0.0
    %169 = vmatprep.subr.mxu0 0.0
    %170 = vmatpush1.msra.mxu0 0.0
    %171 = vmatprep.subr.mxu0 0.0
    %172 = vmatpush1.msra.mxu0 0.0
    %173 = vmatprep.subr.mxu0 0.0
    %174 = vmatpush1.msra.mxu0 0.0
    %175 = vmatprep.subr.mxu0 0.0
    %176 = vmatpush1.msra.mxu0 0.0
    %177 = vmatprep.subr.mxu0 0.0
    %178 = vmatpush1.msra.mxu0 0.0
    %179 = vmatprep.subr.mxu0 0.0
    %180 = vmatpush1.msra.mxu0 0.0
    %181 = vmatprep.subr.mxu0 0.0
    %182 = vmatpush1.msra.mxu0 0.0
    %183 = vmatprep.subr.mxu0 0.0
    %184 = vmatpush1.msra.mxu0 0.0
    %185 = vmatprep.subr.mxu0 0.0
    %186 = vmatpush1.msra.mxu0 0.0
    %187 = vmatprep.subr.mxu0 0.0
    %188 = vmatpush1.msra.mxu0 0.0
    %189 = vmatprep.subr.mxu0 0.0
    %190 = vmatpush1.msra.mxu0 0.0
    %191 = vmatprep.subr.mxu0 0.0
    %192 = vmatpush1.msra.mxu0 0.0
    %193 = vmatprep.subr.mxu0 0.0
    %194 = vmatpush1.msra.mxu0 0.0
    %195 = vmatprep.subr.mxu0 0.0
    %196 = vmatpush1.msra.mxu0 0.0
    %197 = vmatprep.subr.mxu0 0.0
    %198 = vmatpush1.msra.mxu0 0.0
    %199 = vmatprep.subr.mxu0 0.0
    %200 = vmatpush1.msra.mxu0 0.0
    %201 = vmatprep.subr.mxu0 0.0
    %202 = vmatpush1.msra.mxu0 0.0
    %203 = vmatprep.subr.mxu0 0.0
    %204 = vmatpush1.msra.mxu0 0.0
    %205 = vmatprep.subr.mxu0 0.0
    %206 = vmatpush1.msra.mxu0 0.0
    %207 = vmatprep.subr.mxu0 0.0
    %208 = vmatpush1.msra.mxu0 0.0
    %209 = vmatprep.subr.mxu0 0.0
    %210 = vmatpush1.msra.mxu0 0.0
    %211 = vmatprep.subr.mxu0 0.0
    %212 = vmatpush1.msra.mxu0 0.0
    %213 = vmatprep.subr.mxu0 0.0
    %214 = vmatpush1.msra.mxu0 0.0
    %215 = vmatprep.subr.mxu0 0.0
    %216 = vmatpush1.msra.mxu0 0.0
    %217 = vmatprep.subr.mxu0 0.0
    %218 = vmatpush1.msra.mxu0 0.0
    %219 = vmatprep.subr.mxu0 0.0
    %220 = vmatpush1.msra.mxu0 0.0
    %221 = vmatprep.subr.mxu0 0.0
    %222 = vmatpush1.msra.mxu0 0.0
    %223 = vmatprep.mubr.f32.mxu0 0.0
    %224 = vmatmul.mubr.f32.gmra.mrb[0].mxu0 %v136
    %v225 = vpop.f32.mrb[0].mxu0
    %v226 = vadd.f32 %v132, %v225
    %v227 = vpop.f32.mrb[0].mxu0
    %228 = vmatprep.mubr.f32.mxu0 0.0
    %229 = vmatmul.mubr.f32.gmra.mrb[0].mxu0 %v139
    %v230 = vpop.f32.mrb[0].mxu0
    %v231 = vadd.f32 %v132, %v230
    %v232 = vpop.f32.mrb[0].mxu0
    %233 = vmatprep.mubr.f32.mxu0 0.0
    %234 = vmatmul.mubr.f32.gmra.mrb[0].mxu0 %v142
    %v235 = vpop.f32.mrb[0].mxu0
    %v236 = vadd.f32 %v132, %v235
    %v237 = vpop.f32.mrb[0].mxu0
    %238 = vmatprep.mubr.f32.mxu0 0.0
    %239 = vmatmul.mubr.f32.gmra.mrb[0].mxu0 %v145
    %v240 = vpop.f32.mrb[0].mxu0
    %v241 = vadd.f32 %v132, %v240
    %v242 = vpop.f32.mrb[0].mxu0
    %243 = vmatprep.mubr.f32.mxu0 0.0
    %244 = vmatmul.mubr.f32.gmra.mrb[0].mxu0 %v148
    %v245 = vpop.f32.mrb[0].mxu0
    %v246 = vadd.f32 %v132, %v245
    %v247 = vpop.f32.mrb[0].mxu0
    %248 = vmatprep.mubr.f32.mxu0 0.0
    %249 = vmatmul.mubr.f32.gmra.mrb[0].mxu0 %v151
    %v250 = vpop.f32.mrb[0].mxu0
    %v251 = vadd.f32 %v132, %v250
    %v252 = vpop.f32.mrb[0].mxu0
    %253 = vmatprep.mubr.f32.mxu0 0.0
    %254 = vmatmul.mubr.f32.gmra.mrb[0].mxu0 %v154
    %v255 = vpop.f32.mrb[0].mxu0
    %v256 = vadd.f32 %v132, %v255
    %v257 = vpop.f32.mrb[0].mxu0
    %258 = vmatprep.mubr.f32.mxu0 0.0
    %259 = vmatmul.mubr.f32.gmra.mrb[0].mxu0 %v157
    %v260 = vpop.f32.mrb[0].mxu0
    %v261 = vadd.f32 %v132, %v260
    %v262 = vpop.f32.mrb[0].mxu0
    %263 = vdwg.mxu0
    %264 = vst [vmem:[#allocation2] sm:$0xff] %v226
    %265 = vst [vmem:[#allocation2 + $0x8] sm:$0xff] %v231
    %266 = vst [vmem:[#allocation2 + $0x10] sm:$0xff] %v236
    %267 = vst [vmem:[#allocation2 + $0x18] sm:$0xff] %v241
    %268 = vst [vmem:[#allocation2 + $0x20] sm:$0xff] %v246
    %269 = vst [vmem:[#allocation2 + $0x28] sm:$0xff] %v251
    %270 = vst [vmem:[#allocation2 + $0x30] sm:$0xff] %v256
    %271 = vst [vmem:[#allocation2 + $0x38] sm:$0xff] %v261
    %v272 = vld [vmem:[%s0] sm:$0xff]
    %v273 = vld [vmem:[%s0 + $0x8] sm:$0xff]
    %v274 = vld [vmem:[%s0 + $0x10] sm:$0xff]
    %v275 = vld [vmem:[%s0 + $0x18] sm:$0xff]
    %v276 = vld [vmem:[%s0 + $0x20] sm:$0xff]
    %v277 = vld [vmem:[%s0 + $0x28] sm:$0xff]
    %v278 = vld [vmem:[%s0 + $0x30] sm:$0xff]
    %v279 = vld [vmem:[%s0 + $0x38] sm:$0xff]
    %v280 = vld [vmem:[%s3] sm:$0xff]
    %v281 = vld [vmem:[%s3 + $0x8] sm:$0xff]
    %v282 = vld [vmem:[%s4] sm:$0x1]
    %v284 = vlaneseq
    %v285 = vshrl.u32 %v284, 7
    %v286 = vsub.s32 0, %v285
    %v287 = vrot.slane %v282, %v286
    %v290 = vsel %vm134, %v272, 0
    %v293 = vsel %vm134, %v273, 0
    %v296 = vsel %vm134, %v274, 0
    %v299 = vsel %vm134, %v275, 0
    %v302 = vsel %vm134, %v276, 0
    %v305 = vsel %vm134, %v277, 0
    %v308 = vsel %vm134, %v278, 0
    %v311 = vsel %vm134, %v279, 0
    %313 = vmatprep.subr.mxu0 0.0
    %314 = vmatpush1.msra.mxu0 %v280
    %315 = vmatprep.subr.mxu0 0.0
    %316 = vmatpush1.msra.mxu0 %v281
    %317 = vmatprep.subr.mxu0 0.0
    %318 = vmatpush1.msra.mxu0 0.0
    %319 = vmatprep.subr.mxu0 0.0
    %320 = vmatpush1.msra.mxu0 0.0
    %321 = vmatprep.subr.mxu0 0.0
    %322 = vmatpush1.msra.mxu0 0.0
    %323 = vmatprep.subr.mxu0 0.0
    %324 = vmatpush1.msra.mxu0 0.0
    %325 = vmatprep.subr.mxu0 0.0
    %326 = vmatpush1.msra.mxu0 0.0
    %327 = vmatprep.subr.mxu0 0.0
    %328 = vmatpush1.msra.mxu0 0.0
    %329 = vmatprep.subr.mxu0 0.0
    %330 = vmatpush1.msra.mxu0 0.0
    %331 = vmatprep.subr.mxu0 0.0
    %332 = vmatpush1.msra.mxu0 0.0
    %333 = vmatprep.subr.mxu0 0.0
    %334 = vmatpush1.msra.mxu0 0.0
    %335 = vmatprep.subr.mxu0 0.0
    %336 = vmatpush1.msra.mxu0 0.0
    %337 = vmatprep.subr.mxu0 0.0
    %338 = vmatpush1.msra.mxu0 0.0
    %339 = vmatprep.subr.mxu0 0.0
    %340 = vmatpush1.msra.mxu0 0.0
    %341 = vmatprep.subr.mxu0 0.0
    %342 = vmatpush1.msra.mxu0 0.0
    %343 = vmatprep.subr.mxu0 0.0
    %344 = vmatpush1.msra.mxu0 0.0
    %345 = vmatprep.subr.mxu0 0.0
    %346 = vmatpush1.msra.mxu0 0.0
    %347 = vmatprep.subr.mxu0 0.0
    %348 = vmatpush1.msra.mxu0 0.0
    %349 = vmatprep.subr.mxu0 0.0
    %350 = vmatpush1.msra.mxu0 0.0
    %351 = vmatprep.subr.mxu0 0.0
    %352 = vmatpush1.msra.mxu0 0.0
    %353 = vmatprep.subr.mxu0 0.0
    %354 = vmatpush1.msra.mxu0 0.0
    %355 = vmatprep.subr.mxu0 0.0
    %356 = vmatpush1.msra.mxu0 0.0
    %357 = vmatprep.subr.mxu0 0.0
    %358 = vmatpush1.msra.mxu0 0.0
    %359 = vmatprep.subr.mxu0 0.0
    %360 = vmatpush1.msra.mxu0 0.0
    %361 = vmatprep.subr.mxu0 0.0
    %362 = vmatpush1.msra.mxu0 0.0
    %363 = vmatprep.subr.mxu0 0.0
    %364 = vmatpush1.msra.mxu0 0.0
    %365 = vmatprep.subr.mxu0 0.0
    %366 = vmatpush1.msra.mxu0 0.0
    %367 = vmatprep.subr.mxu0 0.0
    %368 = vmatpush1.msra.mxu0 0.0
    %369 = vmatprep.subr.mxu0 0.0
    %370 = vmatpush1.msra.mxu0 0.0
    %371 = vmatprep.subr.mxu0 0.0
    %372 = vmatpush1.msra.mxu0 0.0
    %373 = vmatprep.subr.mxu0 0.0
    %374 = vmatpush1.msra.mxu0 0.0
    %375 = vmatprep.subr.mxu0 0.0
    %376 = vmatpush1.msra.mxu0 0.0
    %377 = vmatprep.mubr.f32.mxu0 0.0
    %378 = vmatmul.mubr.f32.gmra.mrb[0].mxu0 %v290
    %v379 = vpop.f32.mrb[0].mxu0
    %v380 = vadd.f32 %v287, %v379
    %v381 = vpop.f32.mrb[0].mxu0
    %382 = vmatprep.mubr.f32.mxu0 0.0
    %383 = vmatmul.mubr.f32.gmra.mrb[0].mxu0 %v293
    %v384 = vpop.f32.mrb[0].mxu0
    %v385 = vadd.f32 %v287, %v384
    %v386 = vpop.f32.mrb[0].mxu0
    %387 = vmatprep.mubr.f32.mxu0 0.0
    %388 = vmatmul.mubr.f32.gmra.mrb[0].mxu0 %v296
    %v389 = vpop.f32.mrb[0].mxu0
    %v390 = vadd.f32 %v287, %v389
    %v391 = vpop.f32.mrb[0].mxu0
    %392 = vmatprep.mubr.f32.mxu0 0.0
    %393 = vmatmul.mubr.f32.gmra.mrb[0].mxu0 %v299
    %v394 = vpop.f32.mrb[0].mxu0
    %v395 = vadd.f32 %v287, %v394
    %v396 = vpop.f32.mrb[0].mxu0
    %397 = vmatprep.mubr.f32.mxu0 0.0
    %398 = vmatmul.mubr.f32.gmra.mrb[0].mxu0 %v302
    %v399 = vpop.f32.mrb[0].mxu0
    %v400 = vadd.f32 %v287, %v399
    %v401 = vpop.f32.mrb[0].mxu0
    %402 = vmatprep.mubr.f32.mxu0 0.0
    %403 = vmatmul.mubr.f32.gmra.mrb[0].mxu0 %v305
    %v404 = vpop.f32.mrb[0].mxu0
    %v405 = vadd.f32 %v287, %v404
    %v406 = vpop.f32.mrb[0].mxu0
    %407 = vmatprep.mubr.f32.mxu0 0.0
    %408 = vmatmul.mubr.f32.gmra.mrb[0].mxu0 %v308
    %v409 = vpop.f32.mrb[0].mxu0
    %v410 = vadd.f32 %v287, %v409
    %v411 = vpop.f32.mrb[0].mxu0
    %412 = vmatprep.mubr.f32.mxu0 0.0
    %413 = vmatmul.mubr.f32.gmra.mrb[0].mxu0 %v311
    %v414 = vpop.f32.mrb[0].mxu0
    %v415 = vadd.f32 %v287, %v414
    %v416 = vpop.f32.mrb[0].mxu0
    %417 = vdwg.mxu0
    %418 = vst [vmem:[#allocation3] sm:$0xff] %v380
    %419 = vst [vmem:[#allocation3 + $0x8] sm:$0xff] %v385
    %420 = vst [vmem:[#allocation3 + $0x10] sm:$0xff] %v390
    %421 = vst [vmem:[#allocation3 + $0x18] sm:$0xff] %v395
    %422 = vst [vmem:[#allocation3 + $0x20] sm:$0xff] %v400
    %423 = vst [vmem:[#allocation3 + $0x28] sm:$0xff] %v405
    %424 = vst [vmem:[#allocation3 + $0x30] sm:$0xff] %v410
    %425 = vst [vmem:[#allocation3 + $0x38] sm:$0xff] %v415
    %v426 = vld [vmem:[#allocation5] sm:$0xff]
    %v427 = vld [vmem:[#allocation5 + $0x8] sm:$0xff]
    %v428 = vld [vmem:[#allocation5 + $0x10] sm:$0xff]
    %v429 = vld [vmem:[#allocation5 + $0x18] sm:$0xff]
    %v430 = vld [vmem:[#allocation5 + $0x20] sm:$0xff]
    %v431 = vld [vmem:[#allocation5 + $0x28] sm:$0xff]
    %v432 = vld [vmem:[#allocation5 + $0x30] sm:$0xff]
    %v433 = vld [vmem:[#allocation5 + $0x38] sm:$0xff]
    %v434 = vld [vmem:[#allocation5 + $0x40] sm:$0xff]
    %v435 = vld [vmem:[#allocation5 + $0x48] sm:$0xff]
    %v436 = vld [vmem:[#allocation5 + $0x50] sm:$0xff]
    %v437 = vld [vmem:[#allocation5 + $0x58] sm:$0xff]
    %v438 = vld [vmem:[#allocation5 + $0x60] sm:$0xff]
    %v439 = vld [vmem:[#allocation5 + $0x68] sm:$0xff]
    %v440 = vld [vmem:[#allocation5 + $0x70] sm:$0xff]
    %v441 = vld [vmem:[#allocation5 + $0x78] sm:$0xff]
    %v442 = vld [vmem:[#allocation5 + $0x80] sm:$0xff]
    %v443 = vld [vmem:[#allocation5 + $0x88] sm:$0xff]
    %v444 = vld [vmem:[#allocation5 + $0x90] sm:$0xff]
    %v445 = vld [vmem:[#allocation5 + $0x98] sm:$0xff]
    %v446 = vld [vmem:[#allocation5 + $0xa0] sm:$0xff]
    %v447 = vld [vmem:[#allocation5 + $0xa8] sm:$0xff]
    %v448 = vld [vmem:[#allocation5 + $0xb0] sm:$0xff]
    %v449 = vld [vmem:[#allocation5 + $0xb8] sm:$0xff]
    %v450 = vld [vmem:[#allocation5 + $0xc0] sm:$0xff]
    %v451 = vld [vmem:[#allocation5 + $0xc8] sm:$0xff]
    %v452 = vld [vmem:[#allocation5 + $0xd0] sm:$0xff]
    %v453 = vld [vmem:[#allocation5 + $0xd8] sm:$0xff]
    %v454 = vld [vmem:[#allocation5 + $0xe0] sm:$0xff]
    %v455 = vld [vmem:[#allocation5 + $0xe8] sm:$0xff]
    %v456 = vld [vmem:[#allocation5 + $0xf0] sm:$0xff]
    %v457 = vld [vmem:[#allocation5 + $0xf8] sm:$0xff]
    %v458 = vld [vmem:[#allocation5 + $0x100] sm:$0xff]
    %v459 = vld [vmem:[#allocation5 + $0x108] sm:$0xff]
    %v460 = vld [vmem:[#allocation5 + $0x110] sm:$0xff]
    %v461 = vld [vmem:[#allocation5 + $0x118] sm:$0xff]
    %v462 = vld [vmem:[#allocation5 + $0x120] sm:$0xff]
    %v463 = vld [vmem:[#allocation5 + $0x128] sm:$0xff]
    %v464 = vld [vmem:[#allocation5 + $0x130] sm:$0xff]
    %v465 = vld [vmem:[#allocation5 + $0x138] sm:$0xff]
    %v466 = vld [vmem:[#allocation5 + $0x140] sm:$0xff]
    %v467 = vld [vmem:[#allocation5 + $0x148] sm:$0xff]
    %v468 = vld [vmem:[#allocation5 + $0x150] sm:$0xff]
    %v469 = vld [vmem:[#allocation5 + $0x158] sm:$0xff]
    %v470 = vld [vmem:[#allocation5 + $0x160] sm:$0xff]
    %v471 = vld [vmem:[#allocation5 + $0x168] sm:$0xff]
    %v472 = vld [vmem:[#allocation5 + $0x170] sm:$0xff]
    %v473 = vld [vmem:[#allocation5 + $0x178] sm:$0xff]
    %v474 = vld [vmem:[#allocation5 + $0x180] sm:$0xff]
    %v475 = vld [vmem:[#allocation5 + $0x188] sm:$0xff]
    %v476 = vld [vmem:[#allocation5 + $0x190] sm:$0xff]
    %v477 = vld [vmem:[#allocation5 + $0x198] sm:$0xff]
    %v478 = vld [vmem:[#allocation5 + $0x1a0] sm:$0xff]
    %v479 = vld [vmem:[#allocation5 + $0x1a8] sm:$0xff]
    %v480 = vld [vmem:[#allocation5 + $0x1b0] sm:$0xff]
    %v481 = vld [vmem:[#allocation5 + $0x1b8] sm:$0xff]
    %v482 = vld [vmem:[#allocation5 + $0x1c0] sm:$0xff]
    %v483 = vld [vmem:[#allocation5 + $0x1c8] sm:$0xff]
    %v484 = vld [vmem:[#allocation5 + $0x1d0] sm:$0xff]
    %v485 = vld [vmem:[#allocation5 + $0x1d8] sm:$0xff]
    %v486 = vld [vmem:[#allocation5 + $0x1e0] sm:$0xff]
    %v487 = vld [vmem:[#allocation5 + $0x1e8] sm:$0xff]
    %v488 = vld [vmem:[#allocation5 + $0x1f0] sm:$0xff]
    %v489 = vld [vmem:[#allocation5 + $0x1f8] sm:$0xff]
    %v490 = vld [vmem:[#allocation2] sm:$0xff]
    %v491 = vld [vmem:[#allocation3 + $0x38] sm:$0xff]
    %492 = vmatprep.subr.mxu0 %v427
    %493 = vmatpush1.msra.mxu0 %v426
    %494 = vmatprep.subr.mxu0 %v429
    %495 = vmatpush1.msra.mxu0 %v428
    %496 = vmatprep.subr.mxu0 %v431
    %497 = vmatpush1.msra.mxu0 %v430
    %498 = vmatprep.subr.mxu0 %v433
    %499 = vmatpush1.msra.mxu0 %v432
    %500 = vmatprep.subr.mxu0 %v435
    %501 = vmatpush1.msra.mxu0 %v434
    %502 = vmatprep.subr.mxu0 %v437
    %503 = vmatpush1.msra.mxu0 %v436
    %504 = vmatprep.subr.mxu0 %v439
    %505 = vmatpush1.msra.mxu0 %v438
    %506 = vmatprep.subr.mxu0 %v441
    %507 = vmatpush1.msra.mxu0 %v440
    %508 = vmatprep.subr.mxu0 %v443
    %509 = vmatpush1.msra.mxu0 %v442
    %510 = vmatprep.subr.mxu0 %v445
    %511 = vmatpush1.msra.mxu0 %v444
    %512 = vmatprep.subr.mxu0 %v447
    %513 = vmatpush1.msra.mxu0 %v446
    %514 = vmatprep.subr.mxu0 %v449
    %515 = vmatpush1.msra.mxu0 %v448
    %516 = vmatprep.subr.mxu0 %v451
    %517 = vmatpush1.msra.mxu0 %v450
    %518 = vmatprep.subr.mxu0 %v453
    %519 = vmatpush1.msra.mxu0 %v452
    %520 = vmatprep.subr.mxu0 %v455
    %521 = vmatpush1.msra.mxu0 %v454
    %522 = vmatprep.subr.mxu0 %v457
    %523 = vmatpush1.msra.mxu0 %v456
    %524 = vmatprep.subr.mxu0 %v459
    %525 = vmatpush1.msra.mxu0 %v458
    %526 = vmatprep.subr.mxu0 %v461
    %527 = vmatpush1.msra.mxu0 %v460
    %528 = vmatprep.subr.mxu0 %v463
    %529 = vmatpush1.msra.mxu0 %v462
    %530 = vmatprep.subr.mxu0 %v465
    %531 = vmatpush1.msra.mxu0 %v464
    %532 = vmatprep.subr.mxu0 %v467
    %533 = vmatpush1.msra.mxu0 %v466
    %534 = vmatprep.subr.mxu0 %v469
    %535 = vmatpush1.msra.mxu0 %v468
    %536 = vmatprep.subr.mxu0 %v471
    %537 = vmatpush1.msra.mxu0 %v470
    %538 = vmatprep.subr.mxu0 %v473
    %539 = vmatpush1.msra.mxu0 %v472
    %540 = vmatprep.subr.mxu0 %v475
    %541 = vmatpush1.msra.mxu0 %v474
    %542 = vmatprep.subr.mxu0 %v477
    %543 = vmatpush1.msra.mxu0 %v476
    %544 = vmatprep.subr.mxu0 %v479
    %545 = vmatpush1.msra.mxu0 %v478
    %546 = vmatprep.subr.mxu0 %v481
    %547 = vmatpush1.msra.mxu0 %v480
    %548 = vmatprep.subr.mxu0 %v483
    %549 = vmatpush1.msra.mxu0 %v482
    %550 = vmatprep.subr.mxu0 %v485
    %551 = vmatpush1.msra.mxu0 %v484
    %552 = vmatprep.subr.mxu0 %v487
    %553 = vmatpush1.msra.mxu0 %v486
    %554 = vmatprep.subr.mxu0 %v489
    %555 = vmatpush1.msra.mxu0 %v488
    %556 = vmatprep.mubr.f32.mxu0 0.0
    %557 = vmatmul.mubr.f32.gmra.mrb[0].mxu0 0.0
    %v558 = vpop.f32.mrb[0].mxu0
    %v559 = vadd.f32 0.0, %v558
    %v560 = vpop.f32.mrb[0].mxu0
    %v561 = vadd.f32 0.0, %v560
    %562 = vdwg.mxu0
    %v563 = vadd.f32 %v490, %v559
    %v564 = vadd.f32 %v491, %v561
    %v565 = vmul.f32 %v563, %v116
    %v566 = vtanh.pop %v565
    %v567 = vmul.f32 %v566, 0.5
    %v568 = vadd.f32 %v567, 0.5
    %v569 = vsel %vm115, %v566, %v568
    %570 = vrot.lane.b32.xlu0 %v569, 64
    %v571 = vpop.permute.xlu0 %570
    %572 = vrot.lane.b32.xlu0 %v569, 32
    %v573 = vpop.permute.xlu0 %572
    %574 = vrot.lane.b32.xlu0 %v569, 96
    %v575 = vpop.permute.xlu0 %574
    %v576 = vmul.f32 %v569, 0.0
    %v577 = vmul.f32 %v573, %v575
    %v578 = vadd.f32 %v576, %v577
    %v579 = vtanh.pop %v578
    %v580 = vmul.f32 %v571, %v579
    %581 = vst [vmem:[#allocation4] sm:$0xff] %v580
    %v582 = vmul.f32 %v564, %v116
    %v583 = vtanh.pop %v582
    %v584 = vmul.f32 %v583, 0.5
    %v585 = vadd.f32 %v584, 0.5
    %v586 = vsel %vm115, %v583, %v585
    %587 = vrot.lane.b32.xlu0 %v586, 64
    %v588 = vpop.permute.xlu0 %587
    %589 = vrot.lane.b32.xlu0 %v586, 32
    %v590 = vpop.permute.xlu0 %589
    %591 = vrot.lane.b32.xlu0 %v586, 96
    %v592 = vpop.permute.xlu0 %591
    %v593 = vmul.f32 %v586, 0.0
    %v594 = vmul.f32 %v590, %v592
    %v595 = vadd.f32 %v593, %v594
    %v596 = vtanh.pop %v595
    %v597 = vmul.f32 %v588, %v596
    %598 = vst [vmem:[#allocation4 + $0x78] sm:$0xff] %v597
    %v599 = vld [vmem:[#allocation2 + $0x8] sm:$0xff]
    %v600 = vld [vmem:[#allocation3 + $0x30] sm:$0xff]
    %601 = vmatprep.subr.mxu0 %v427
    %602 = vmatpush1.msra.mxu0 %v426
    %603 = vmatprep.subr.mxu0 %v429
    %604 = vmatpush1.msra.mxu0 %v428
    %605 = vmatprep.subr.mxu0 %v431
    %606 = vmatpush1.msra.mxu0 %v430
    %607 = vmatprep.subr.mxu0 %v433
    %608 = vmatpush1.msra.mxu0 %v432
    %609 = vmatprep.subr.mxu0 %v435
    %610 = vmatpush1.msra.mxu0 %v434
    %611 = vmatprep.subr.mxu0 %v437
    %612 = vmatpush1.msra.mxu0 %v436
    %613 = vmatprep.subr.mxu0 %v439
    %614 = vmatpush1.msra.mxu0 %v438
    %615 = vmatprep.subr.mxu0 %v441
    %616 = vmatpush1.msra.mxu0 %v440
    %617 = vmatprep.subr.mxu0 %v443
    %618 = vmatpush1.msra.mxu0 %v442
    %619 = vmatprep.subr.mxu0 %v445
    %620 = vmatpush1.msra.mxu0 %v444
    %621 = vmatprep.subr.mxu0 %v447
    %622 = vmatpush1.msra.mxu0 %v446
    %623 = vmatprep.subr.mxu0 %v449
    %624 = vmatpush1.msra.mxu0 %v448
    %625 = vmatprep.subr.mxu0 %v451
    %626 = vmatpush1.msra.mxu0 %v450
    %627 = vmatprep.subr.mxu0 %v453
    %628 = vmatpush1.msra.mxu0 %v452
    %629 = vmatprep.subr.mxu0 %v455
    %630 = vmatpush1.msra.mxu0 %v454
    %631 = vmatprep.subr.mxu0 %v457
    %632 = vmatpush1.msra.mxu0 %v456
    %633 = vmatprep.subr.mxu0 %v459
    %634 = vmatpush1.msra.mxu0 %v458
    %635 = vmatprep.subr.mxu0 %v461
    %636 = vmatpush1.msra.mxu0 %v460
    %637 = vmatprep.subr.mxu0 %v463
    %638 = vmatpush1.msra.mxu0 %v462
    %639 = vmatprep.subr.mxu0 %v465
    %640 = vmatpush1.msra.mxu0 %v464
    %641 = vmatprep.subr.mxu0 %v467
    %642 = vmatpush1.msra.mxu0 %v466
    %643 = vmatprep.subr.mxu0 %v469
    %644 = vmatpush1.msra.mxu0 %v468
    %645 = vmatprep.subr.mxu0 %v471
    %646 = vmatpush1.msra.mxu0 %v470
    %647 = vmatprep.subr.mxu0 %v473
    %648 = vmatpush1.msra.mxu0 %v472
    %649 = vmatprep.subr.mxu0 %v475
    %650 = vmatpush1.msra.mxu0 %v474
    %651 = vmatprep.subr.mxu0 %v477
    %652 = vmatpush1.msra.mxu0 %v476
    %653 = vmatprep.subr.mxu0 %v479
    %654 = vmatpush1.msra.mxu0 %v478
    %655 = vmatprep.subr.mxu0 %v481
    %656 = vmatpush1.msra.mxu0 %v480
    %657 = vmatprep.subr.mxu0 %v483
    %658 = vmatpush1.msra.mxu0 %v482
    %659 = vmatprep.subr.mxu0 %v485
    %660 = vmatpush1.msra.mxu0 %v484
    %661 = vmatprep.subr.mxu0 %v487
    %662 = vmatpush1.msra.mxu0 %v486
    %663 = vmatprep.subr.mxu0 %v489
    %664 = vmatpush1.msra.mxu0 %v488
    %665 = vmatprep.mubr.f32.mxu0 %v597
    %666 = vmatmul.mubr.f32.gmra.mrb[0].mxu0 %v580
    %v667 = vpop.f32.mrb[0].mxu0
    %v668 = vadd.f32 0.0, %v667
    %v669 = vpop.f32.mrb[0].mxu0
    %v670 = vadd.f32 0.0, %v669
    %671 = vdwg.mxu0
    %v672 = vadd.f32 %v599, %v668
    %v673 = vadd.f32 %v600, %v670
    %v674 = vmul.f32 %v672, %v116
    %v675 = vtanh.pop %v674
    %v676 = vmul.f32 %v675, 0.5
    %v677 = vadd.f32 %v676, 0.5
    %v678 = vsel %vm115, %v675, %v677
    %679 = vrot.lane.b32.xlu0 %v678, 64
    %v680 = vpop.permute.xlu0 %679
    %681 = vrot.lane.b32.xlu0 %v678, 32
    %v682 = vpop.permute.xlu0 %681
    %683 = vrot.lane.b32.xlu0 %v678, 96
    %v684 = vpop.permute.xlu0 %683
    %v685 = vmul.f32 %v678, %v578
    %v686 = vmul.f32 %v682, %v684
    %v687 = vadd.f32 %v685, %v686
    %v688 = vtanh.pop %v687
    %v689 = vmul.f32 %v680, %v688
    %690 = vst [vmem:[#allocation4 + $0x10] sm:$0xff] %v689
    %v691 = vmul.f32 %v673, %v116
    %v692 = vtanh.pop %v691
    %v693 = vmul.f32 %v692, 0.5
    %v694 = vadd.f32 %v693, 0.5
    %v695 = vsel %vm115, %v692, %v694
    %696 = vrot.lane.b32.xlu0 %v695, 64
    %v697 = vpop.permute.xlu0 %696
    %698 = vrot.lane.b32.xlu0 %v695, 32
    %v699 = vpop.permute.xlu0 %698
    %700 = vrot.lane.b32.xlu0 %v695, 96
    %v701 = vpop.permute.xlu0 %700
    %v702 = vmul.f32 %v695, %v595
    %v703 = vmul.f32 %v699, %v701
    %v704 = vadd.f32 %v702, %v703
    %v705 = vtanh.pop %v704
    %v706 = vmul.f32 %v697, %v705
    %707 = vst [vmem:[#allocation4 + $0x68] sm:$0xff] %v706
    %v708 = vld [vmem:[#allocation2 + $0x10] sm:$0xff]
    %v709 = vld [vmem:[#allocation3 + $0x28] sm:$0xff]
    %710 = vmatprep.subr.mxu0 %v427
    %711 = vmatpush1.msra.mxu0 %v426
    %712 = vmatprep.subr.mxu0 %v429
    %713 = vmatpush1.msra.mxu0 %v428
    %714 = vmatprep.subr.mxu0 %v431
    %715 = vmatpush1.msra.mxu0 %v430
    %716 = vmatprep.subr.mxu0 %v433
    %717 = vmatpush1.msra.mxu0 %v432
    %718 = vmatprep.subr.mxu0 %v435
    %719 = vmatpush1.msra.mxu0 %v434
    %720 = vmatprep.subr.mxu0 %v437
    %721 = vmatpush1.msra.mxu0 %v436
    %722 = vmatprep.subr.mxu0 %v439
    %723 = vmatpush1.msra.mxu0 %v438
    %724 = vmatprep.subr.mxu0 %v441
    %725 = vmatpush1.msra.mxu0 %v440
    %726 = vmatprep.subr.mxu0 %v443
    %727 = vmatpush1.msra.mxu0 %v442
    %728 = vmatprep.subr.mxu0 %v445
    %729 = vmatpush1.msra.mxu0 %v444
    %730 = vmatprep.subr.mxu0 %v447
    %731 = vmatpush1.msra.mxu0 %v446
    %732 = vmatprep.subr.mxu0 %v449
    %733 = vmatpush1.msra.mxu0 %v448
    %734 = vmatprep.subr.mxu0 %v451
    %735 = vmatpush1.msra.mxu0 %v450
    %736 = vmatprep.subr.mxu0 %v453
    %737 = vmatpush1.msra.mxu0 %v452
    %738 = vmatprep.subr.mxu0 %v455
    %739 = vmatpush1.msra.mxu0 %v454
    %740 = vmatprep.subr.mxu0 %v457
    %741 = vmatpush1.msra.mxu0 %v456
    %742 = vmatprep.subr.mxu0 %v459
    %743 = vmatpush1.msra.mxu0 %v458
    %744 = vmatprep.subr.mxu0 %v461
    %745 = vmatpush1.msra.mxu0 %v460
    %746 = vmatprep.subr.mxu0 %v463
    %747 = vmatpush1.msra.mxu0 %v462
    %748 = vmatprep.subr.mxu0 %v465
    %749 = vmatpush1.msra.mxu0 %v464
    %750 = vmatprep.subr.mxu0 %v467
    %751 = vmatpush1.msra.mxu0 %v466
    %752 = vmatprep.subr.mxu0 %v469
    %753 = vmatpush1.msra.mxu0 %v468
    %754 = vmatprep.subr.mxu0 %v471
    %755 = vmatpush1.msra.mxu0 %v470
    %756 = vmatprep.subr.mxu0 %v473
    %757 = vmatpush1.msra.mxu0 %v472
    %758 = vmatprep.subr.mxu0 %v475
    %759 = vmatpush1.msra.mxu0 %v474
    %760 = vmatprep.subr.mxu0 %v477
    %761 = vmatpush1.msra.mxu0 %v476
    %762 = vmatprep.subr.mxu0 %v479
    %763 = vmatpush1.msra.mxu0 %v478
    %764 = vmatprep.subr.mxu0 %v481
    %765 = vmatpush1.msra.mxu0 %v480
    %766 = vmatprep.subr.mxu0 %v483
    %767 = vmatpush1.msra.mxu0 %v482
    %768 = vmatprep.subr.mxu0 %v485
    %769 = vmatpush1.msra.mxu0 %v484
    %770 = vmatprep.subr.mxu0 %v487
    %771 = vmatpush1.msra.mxu0 %v486
    %772 = vmatprep.subr.mxu0 %v489
    %773 = vmatpush1.msra.mxu0 %v488
    %774 = vmatprep.mubr.f32.mxu0 %v706
    %775 = vmatmul.mubr.f32.gmra.mrb[0].mxu0 %v689
    %v776 = vpop.f32.mrb[0].mxu0
    %v777 = vadd.f32 0.0, %v776
    %v778 = vpop.f32.mrb[0].mxu0
    %v779 = vadd.f32 0.0, %v778
    %780 = vdwg.mxu0
    %v781 = vadd.f32 %v708, %v777
    %v782 = vadd.f32 %v709, %v779
    %v783 = vmul.f32 %v781, %v116
    %v784 = vtanh.pop %v783
    %v785 = vmul.f32 %v784, 0.5
    %v786 = vadd.f32 %v785, 0.5
    %v787 = vsel %vm115, %v784, %v786
    %788 = vrot.lane.b32.xlu0 %v787, 64
    %v789 = vpop.permute.xlu0 %788
    %790 = vrot.lane.b32.xlu0 %v787, 32
    %v791 = vpop.permute.xlu0 %790
    %792 = vrot.lane.b32.xlu0 %v787, 96
    %v793 = vpop.permute.xlu0 %792
    %v794 = vmul.f32 %v787, %v687
    %v795 = vmul.f32 %v791, %v793
    %v796 = vadd.f32 %v794, %v795
    %v797 = vtanh.pop %v796
    %v798 = vmul.f32 %v789, %v797
    %799 = vst [vmem:[#allocation4 + $0x20] sm:$0xff] %v798
    %v800 = vmul.f32 %v782, %v116
    %v801 = vtanh.pop %v800
    %v802 = vmul.f32 %v801, 0.5
    %v803 = vadd.f32 %v802, 0.5
    %v804 = vsel %vm115, %v801, %v803
    %805 = vrot.lane.b32.xlu0 %v804, 64
    %v806 = vpop.permute.xlu0 %805
    %807 = vrot.lane.b32.xlu0 %v804, 32
    %v808 = vpop.permute.xlu0 %807
    %809 = vrot.lane.b32.xlu0 %v804, 96
    %v810 = vpop.permute.xlu0 %809
    %v811 = vmul.f32 %v804, %v704
    %v812 = vmul.f32 %v808, %v810
    %v813 = vadd.f32 %v811, %v812
    %v814 = vtanh.pop %v813
    %v815 = vmul.f32 %v806, %v814
    %816 = vst [vmem:[#allocation4 + $0x58] sm:$0xff] %v815
    %v817 = vld [vmem:[#allocation2 + $0x18] sm:$0xff]
    %v818 = vld [vmem:[#allocation3 + $0x20] sm:$0xff]
    %819 = vmatprep.subr.mxu0 %v427
    %820 = vmatpush1.msra.mxu0 %v426
    %821 = vmatprep.subr.mxu0 %v429
    %822 = vmatpush1.msra.mxu0 %v428
    %823 = vmatprep.subr.mxu0 %v431
    %824 = vmatpush1.msra.mxu0 %v430
    %825 = vmatprep.subr.mxu0 %v433
    %826 = vmatpush1.msra.mxu0 %v432
    %827 = vmatprep.subr.mxu0 %v435
    %828 = vmatpush1.msra.mxu0 %v434
    %829 = vmatprep.subr.mxu0 %v437
    %830 = vmatpush1.msra.mxu0 %v436
    %831 = vmatprep.subr.mxu0 %v439
    %832 = vmatpush1.msra.mxu0 %v438
    %833 = vmatprep.subr.mxu0 %v441
    %834 = vmatpush1.msra.mxu0 %v440
    %835 = vmatprep.subr.mxu0 %v443
    %836 = vmatpush1.msra.mxu0 %v442
    %837 = vmatprep.subr.mxu0 %v445
    %838 = vmatpush1.msra.mxu0 %v444
    %839 = vmatprep.subr.mxu0 %v447
    %840 = vmatpush1.msra.mxu0 %v446
    %841 = vmatprep.subr.mxu0 %v449
    %842 = vmatpush1.msra.mxu0 %v448
    %843 = vmatprep.subr.mxu0 %v451
    %844 = vmatpush1.msra.mxu0 %v450
    %845 = vmatprep.subr.mxu0 %v453
    %846 = vmatpush1.msra.mxu0 %v452
    %847 = vmatprep.subr.mxu0 %v455
    %848 = vmatpush1.msra.mxu0 %v454
    %849 = vmatprep.subr.mxu0 %v457
    %850 = vmatpush1.msra.mxu0 %v456
    %851 = vmatprep.subr.mxu0 %v459
    %852 = vmatpush1.msra.mxu0 %v458
    %853 = vmatprep.subr.mxu0 %v461
    %854 = vmatpush1.msra.mxu0 %v460
    %855 = vmatprep.subr.mxu0 %v463
    %856 = vmatpush1.msra.mxu0 %v462
    %857 = vmatprep.subr.mxu0 %v465
    %858 = vmatpush1.msra.mxu0 %v464
    %859 = vmatprep.subr.mxu0 %v467
    %860 = vmatpush1.msra.mxu0 %v466
    %861 = vmatprep.subr.mxu0 %v469
    %862 = vmatpush1.msra.mxu0 %v468
    %863 = vmatprep.subr.mxu0 %v471
    %864 = vmatpush1.msra.mxu0 %v470
    %865 = vmatprep.subr.mxu0 %v473
    %866 = vmatpush1.msra.mxu0 %v472
    %867 = vmatprep.subr.mxu0 %v475
    %868 = vmatpush1.msra.mxu0 %v474
    %869 = vmatprep.subr.mxu0 %v477
    %870 = vmatpush1.msra.mxu0 %v476
    %871 = vmatprep.subr.mxu0 %v479
    %872 = vmatpush1.msra.mxu0 %v478
    %873 = vmatprep.subr.mxu0 %v481
    %874 = vmatpush1.msra.mxu0 %v480
    %875 = vmatprep.subr.mxu0 %v483
    %876 = vmatpush1.msra.mxu0 %v482
    %877 = vmatprep.subr.mxu0 %v485
    %878 = vmatpush1.msra.mxu0 %v484
    %879 = vmatprep.subr.mxu0 %v487
    %880 = vmatpush1.msra.mxu0 %v486
    %881 = vmatprep.subr.mxu0 %v489
    %882 = vmatpush1.msra.mxu0 %v488
    %883 = vmatprep.mubr.f32.mxu0 %v815
    %884 = vmatmul.mubr.f32.gmra.mrb[0].mxu0 %v798
    %v885 = vpop.f32.mrb[0].mxu0
    %v886 = vadd.f32 0.0, %v885
    %v887 = vpop.f32.mrb[0].mxu0
    %v888 = vadd.f32 0.0, %v887
    %889 = vdwg.mxu0
    %v890 = vadd.f32 %v817, %v886
    %v891 = vadd.f32 %v818, %v888
    %v892 = vmul.f32 %v890, %v116
    %v893 = vtanh.pop %v892
    %v894 = vmul.f32 %v893, 0.5
    %v895 = vadd.f32 %v894, 0.5
    %v896 = vsel %vm115, %v893, %v895
    %897 = vrot.lane.b32.xlu0 %v896, 64
    %v898 = vpop.permute.xlu0 %897
    %899 = vrot.lane.b32.xlu0 %v896, 32
    %v900 = vpop.permute.xlu0 %899
    %901 = vrot.lane.b32.xlu0 %v896, 96
    %v902 = vpop.permute.xlu0 %901
    %v903 = vmul.f32 %v896, %v796
    %v904 = vmul.f32 %v900, %v902
    %v905 = vadd.f32 %v903, %v904
    %v906 = vtanh.pop %v905
    %v907 = vmul.f32 %v898, %v906
    %908 = vst [vmem:[#allocation4 + $0x30] sm:$0xff] %v907
    %v909 = vmul.f32 %v891, %v116
    %v910 = vtanh.pop %v909
    %v911 = vmul.f32 %v910, 0.5
    %v912 = vadd.f32 %v911, 0.5
    %v913 = vsel %vm115, %v910, %v912
    %914 = vrot.lane.b32.xlu0 %v913, 64
    %v915 = vpop.permute.xlu0 %914
    %916 = vrot.lane.b32.xlu0 %v913, 32
    %v917 = vpop.permute.xlu0 %916
    %918 = vrot.lane.b32.xlu0 %v913, 96
    %v919 = vpop.permute.xlu0 %918
    %v920 = vmul.f32 %v913, %v813
    %v921 = vmul.f32 %v917, %v919
    %v922 = vadd.f32 %v920, %v921
    %v923 = vtanh.pop %v922
    %v924 = vmul.f32 %v915, %v923
    %925 = vst [vmem:[#allocation4 + $0x48] sm:$0xff] %v924
    %v926 = vld [vmem:[#allocation2 + $0x20] sm:$0xff]
    %v927 = vld [vmem:[#allocation3 + $0x18] sm:$0xff]
    %928 = vmatprep.subr.mxu0 %v427
    %929 = vmatpush1.msra.mxu0 %v426
    %930 = vmatprep.subr.mxu0 %v429
    %931 = vmatpush1.msra.mxu0 %v428
    %932 = vmatprep.subr.mxu0 %v431
    %933 = vmatpush1.msra.mxu0 %v430
    %934 = vmatprep.subr.mxu0 %v433
    %935 = vmatpush1.msra.mxu0 %v432
    %936 = vmatprep.subr.mxu0 %v435
    %937 = vmatpush1.msra.mxu0 %v434
    %938 = vmatprep.subr.mxu0 %v437
    %939 = vmatpush1.msra.mxu0 %v436
    %940 = vmatprep.subr.mxu0 %v439
    %941 = vmatpush1.msra.mxu0 %v438
    %942 = vmatprep.subr.mxu0 %v441
    %943 = vmatpush1.msra.mxu0 %v440
    %944 = vmatprep.subr.mxu0 %v443
    %945 = vmatpush1.msra.mxu0 %v442
    %946 = vmatprep.subr.mxu0 %v445
    %947 = vmatpush1.msra.mxu0 %v444
    %948 = vmatprep.subr.mxu0 %v447
    %949 = vmatpush1.msra.mxu0 %v446
    %950 = vmatprep.subr.mxu0 %v449
    %951 = vmatpush1.msra.mxu0 %v448
    %952 = vmatprep.subr.mxu0 %v451
    %953 = vmatpush1.msra.mxu0 %v450
    %954 = vmatprep.subr.mxu0 %v453
    %955 = vmatpush1.msra.mxu0 %v452
    %956 = vmatprep.subr.mxu0 %v455
    %957 = vmatpush1.msra.mxu0 %v454
    %958 = vmatprep.subr.mxu0 %v457
    %959 = vmatpush1.msra.mxu0 %v456
    %960 = vmatprep.subr.mxu0 %v459
    %961 = vmatpush1.msra.mxu0 %v458
    %962 = vmatprep.subr.mxu0 %v461
    %963 = vmatpush1.msra.mxu0 %v460
    %964 = vmatprep.subr.mxu0 %v463
    %965 = vmatpush1.msra.mxu0 %v462
    %966 = vmatprep.subr.mxu0 %v465
    %967 = vmatpush1.msra.mxu0 %v464
    %968 = vmatprep.subr.mxu0 %v467
    %969 = vmatpush1.msra.mxu0 %v466
    %970 = vmatprep.subr.mxu0 %v469
    %971 = vmatpush1.msra.mxu0 %v468
    %972 = vmatprep.subr.mxu0 %v471
    %973 = vmatpush1.msra.mxu0 %v470
    %974 = vmatprep.subr.mxu0 %v473
    %975 = vmatpush1.msra.mxu0 %v472
    %976 = vmatprep.subr.mxu0 %v475
    %977 = vmatpush1.msra.mxu0 %v474
    %978 = vmatprep.subr.mxu0 %v477
    %979 = vmatpush1.msra.mxu0 %v476
    %980 = vmatprep.subr.mxu0 %v479
    %981 = vmatpush1.msra.mxu0 %v478
    %982 = vmatprep.subr.mxu0 %v481
    %983 = vmatpush1.msra.mxu0 %v480
    %984 = vmatprep.subr.mxu0 %v483
    %985 = vmatpush1.msra.mxu0 %v482
    %986 = vmatprep.subr.mxu0 %v485
    %987 = vmatpush1.msra.mxu0 %v484
    %988 = vmatprep.subr.mxu0 %v487
    %989 = vmatpush1.msra.mxu0 %v486
    %990 = vmatprep.subr.mxu0 %v489
    %991 = vmatpush1.msra.mxu0 %v488
    %992 = vmatprep.mubr.f32.mxu0 %v924
    %993 = vmatmul.mubr.f32.gmra.mrb[0].mxu0 %v907
    %v994 = vpop.f32.mrb[0].mxu0
    %v995 = vadd.f32 0.0, %v994
    %v996 = vpop.f32.mrb[0].mxu0
    %v997 = vadd.f32 0.0, %v996
    %998 = vdwg.mxu0
    %v999 = vadd.f32 %v926, %v995
    %v1000 = vadd.f32 %v927, %v997
    %v1001 = vmul.f32 %v999, %v116
    %v1002 = vtanh.pop %v1001
    %v1003 = vmul.f32 %v1002, 0.5
    %v1004 = vadd.f32 %v1003, 0.5
    %v1005 = vsel %vm115, %v1002, %v1004
    %1006 = vrot.lane.b32.xlu0 %v1005, 64
    %v1007 = vpop.permute.xlu0 %1006
    %1008 = vrot.lane.b32.xlu0 %v1005, 32
    %v1009 = vpop.permute.xlu0 %1008
    %1010 = vrot.lane.b32.xlu0 %v1005, 96
    %v1011 = vpop.permute.xlu0 %1010
    %v1012 = vmul.f32 %v1005, %v905
    %v1013 = vmul.f32 %v1009, %v1011
    %v1014 = vadd.f32 %v1012, %v1013
    %v1015 = vtanh.pop %v1014
    %v1016 = vmul.f32 %v1007, %v1015
    %1017 = vst [vmem:[#allocation4 + $0x40] sm:$0xff] %v1016
    %v1018 = vmul.f32 %v1000, %v116
    %v1019 = vtanh.pop %v1018
    %v1020 = vmul.f32 %v1019, 0.5
    %v1021 = vadd.f32 %v1020, 0.5
    %v1022 = vsel %vm115, %v1019, %v1021
    %1023 = vrot.lane.b32.xlu0 %v1022, 64
    %v1024 = vpop.permute.xlu0 %1023
    %1025 = vrot.lane.b32.xlu0 %v1022, 32
    %v1026 = vpop.permute.xlu0 %1025
    %1027 = vrot.lane.b32.xlu0 %v1022, 96
    %v1028 = vpop.permute.xlu0 %1027
    %v1029 = vmul.f32 %v1022, %v922
    %v1030 = vmul.f32 %v1026, %v1028
    %v1031 = vadd.f32 %v1029, %v1030
    %v1032 = vtanh.pop %v1031
    %v1033 = vmul.f32 %v1024, %v1032
    %1034 = vst [vmem:[#allocation4 + $0x38] sm:$0xff] %v1033
    %v1035 = vld [vmem:[#allocation2 + $0x28] sm:$0xff]
    %v1036 = vld [vmem:[#allocation3 + $0x10] sm:$0xff]
    %1037 = vmatprep.subr.mxu0 %v427
    %1038 = vmatpush1.msra.mxu0 %v426
    %1039 = vmatprep.subr.mxu0 %v429
    %1040 = vmatpush1.msra.mxu0 %v428
    %1041 = vmatprep.subr.mxu0 %v431
    %1042 = vmatpush1.msra.mxu0 %v430
    %1043 = vmatprep.subr.mxu0 %v433
    %1044 = vmatpush1.msra.mxu0 %v432
    %1045 = vmatprep.subr.mxu0 %v435
    %1046 = vmatpush1.msra.mxu0 %v434
    %1047 = vmatprep.subr.mxu0 %v437
    %1048 = vmatpush1.msra.mxu0 %v436
    %1049 = vmatprep.subr.mxu0 %v439
    %1050 = vmatpush1.msra.mxu0 %v438
    %1051 = vmatprep.subr.mxu0 %v441
    %1052 = vmatpush1.msra.mxu0 %v440
    %1053 = vmatprep.subr.mxu0 %v443
    %1054 = vmatpush1.msra.mxu0 %v442
    %1055 = vmatprep.subr.mxu0 %v445
    %1056 = vmatpush1.msra.mxu0 %v444
    %1057 = vmatprep.subr.mxu0 %v447
    %1058 = vmatpush1.msra.mxu0 %v446
    %1059 = vmatprep.subr.mxu0 %v449
    %1060 = vmatpush1.msra.mxu0 %v448
    %1061 = vmatprep.subr.mxu0 %v451
    %1062 = vmatpush1.msra.mxu0 %v450
    %1063 = vmatprep.subr.mxu0 %v453
    %1064 = vmatpush1.msra.mxu0 %v452
    %1065 = vmatprep.subr.mxu0 %v455
    %1066 = vmatpush1.msra.mxu0 %v454
    %1067 = vmatprep.subr.mxu0 %v457
    %1068 = vmatpush1.msra.mxu0 %v456
    %1069 = vmatprep.subr.mxu0 %v459
    %1070 = vmatpush1.msra.mxu0 %v458
    %1071 = vmatprep.subr.mxu0 %v461
    %1072 = vmatpush1.msra.mxu0 %v460
    %1073 = vmatprep.subr.mxu0 %v463
    %1074 = vmatpush1.msra.mxu0 %v462
    %1075 = vmatprep.subr.mxu0 %v465
    %1076 = vmatpush1.msra.mxu0 %v464
    %1077 = vmatprep.subr.mxu0 %v467
    %1078 = vmatpush1.msra.mxu0 %v466
    %1079 = vmatprep.subr.mxu0 %v469
    %1080 = vmatpush1.msra.mxu0 %v468
    %1081 = vmatprep.subr.mxu0 %v471
    %1082 = vmatpush1.msra.mxu0 %v470
    %1083 = vmatprep.subr.mxu0 %v473
    %1084 = vmatpush1.msra.mxu0 %v472
    %1085 = vmatprep.subr.mxu0 %v475
    %1086 = vmatpush1.msra.mxu0 %v474
    %1087 = vmatprep.subr.mxu0 %v477
    %1088 = vmatpush1.msra.mxu0 %v476
    %1089 = vmatprep.subr.mxu0 %v479
    %1090 = vmatpush1.msra.mxu0 %v478
    %1091 = vmatprep.subr.mxu0 %v481
    %1092 = vmatpush1.msra.mxu0 %v480
    %1093 = vmatprep.subr.mxu0 %v483
    %1094 = vmatpush1.msra.mxu0 %v482
    %1095 = vmatprep.subr.mxu0 %v485
    %1096 = vmatpush1.msra.mxu0 %v484
    %1097 = vmatprep.subr.mxu0 %v487
    %1098 = vmatpush1.msra.mxu0 %v486
    %1099 = vmatprep.subr.mxu0 %v489
    %1100 = vmatpush1.msra.mxu0 %v488
    %1101 = vmatprep.mubr.f32.mxu0 %v1033
    %1102 = vmatmul.mubr.f32.gmra.mrb[0].mxu0 %v1016
    %v1103 = vpop.f32.mrb[0].mxu0
    %v1104 = vadd.f32 0.0, %v1103
    %v1105 = vpop.f32.mrb[0].mxu0
    %v1106 = vadd.f32 0.0, %v1105
    %1107 = vdwg.mxu0
    %v1108 = vadd.f32 %v1035, %v1104
    %v1109 = vadd.f32 %v1036, %v1106
    %v1110 = vmul.f32 %v1108, %v116
    %v1111 = vtanh.pop %v1110
    %v1112 = vmul.f32 %v1111, 0.5
    %v1113 = vadd.f32 %v1112, 0.5
    %v1114 = vsel %vm115, %v1111, %v1113
    %1115 = vrot.lane.b32.xlu0 %v1114, 64
    %v1116 = vpop.permute.xlu0 %1115
    %1117 = vrot.lane.b32.xlu0 %v1114, 32
    %v1118 = vpop.permute.xlu0 %1117
    %1119 = vrot.lane.b32.xlu0 %v1114, 96
    %v1120 = vpop.permute.xlu0 %1119
    %v1121 = vmul.f32 %v1114, %v1014
    %v1122 = vmul.f32 %v1118, %v1120
    %v1123 = vadd.f32 %v1121, %v1122
    %v1124 = vtanh.pop %v1123
    %v1125 = vmul.f32 %v1116, %v1124
    %1126 = vst [vmem:[#allocation4 + $0x50] sm:$0xff] %v1125
    %v1127 = vmul.f32 %v1109, %v116
    %v1128 = vtanh.pop %v1127
    %v1129 = vmul.f32 %v1128, 0.5
    %v1130 = vadd.f32 %v1129, 0.5
    %v1131 = vsel %vm115, %v1128, %v1130
    %1132 = vrot.lane.b32.xlu0 %v1131, 64
    %v1133 = vpop.permute.xlu0 %1132
    %1134 = vrot.lane.b32.xlu0 %v1131, 32
    %v1135 = vpop.permute.xlu0 %1134
    %1136 = vrot.lane.b32.xlu0 %v1131, 96
    %v1137 = vpop.permute.xlu0 %1136
    %v1138 = vmul.f32 %v1131, %v1031
    %v1139 = vmul.f32 %v1135, %v1137
    %v1140 = vadd.f32 %v1138, %v1139
    %v1141 = vtanh.pop %v1140
    %v1142 = vmul.f32 %v1133, %v1141
    %1143 = vst [vmem:[#allocation4 + $0x28] sm:$0xff] %v1142
    %v1144 = vld [vmem:[#allocation2 + $0x30] sm:$0xff]
    %v1145 = vld [vmem:[#allocation3 + $0x8] sm:$0xff]
    %1146 = vmatprep.subr.mxu0 %v427
    %1147 = vmatpush1.msra.mxu0 %v426
    %1148 = vmatprep.subr.mxu0 %v429
    %1149 = vmatpush1.msra.mxu0 %v428
    %1150 = vmatprep.subr.mxu0 %v431
    %1151 = vmatpush1.msra.mxu0 %v430
    %1152 = vmatprep.subr.mxu0 %v433
    %1153 = vmatpush1.msra.mxu0 %v432
    %1154 = vmatprep.subr.mxu0 %v435
    %1155 = vmatpush1.msra.mxu0 %v434
    %1156 = vmatprep.subr.mxu0 %v437
    %1157 = vmatpush1.msra.mxu0 %v436
    %1158 = vmatprep.subr.mxu0 %v439
    %1159 = vmatpush1.msra.mxu0 %v438
    %1160 = vmatprep.subr.mxu0 %v441
    %1161 = vmatpush1.msra.mxu0 %v440
    %1162 = vmatprep.subr.mxu0 %v443
    %1163 = vmatpush1.msra.mxu0 %v442
    %1164 = vmatprep.subr.mxu0 %v445
    %1165 = vmatpush1.msra.mxu0 %v444
    %1166 = vmatprep.subr.mxu0 %v447
    %1167 = vmatpush1.msra.mxu0 %v446
    %1168 = vmatprep.subr.mxu0 %v449
    %1169 = vmatpush1.msra.mxu0 %v448
    %1170 = vmatprep.subr.mxu0 %v451
    %1171 = vmatpush1.msra.mxu0 %v450
    %1172 = vmatprep.subr.mxu0 %v453
    %1173 = vmatpush1.msra.mxu0 %v452
    %1174 = vmatprep.subr.mxu0 %v455
    %1175 = vmatpush1.msra.mxu0 %v454
    %1176 = vmatprep.subr.mxu0 %v457
    %1177 = vmatpush1.msra.mxu0 %v456
    %1178 = vmatprep.subr.mxu0 %v459
    %1179 = vmatpush1.msra.mxu0 %v458
    %1180 = vmatprep.subr.mxu0 %v461
    %1181 = vmatpush1.msra.mxu0 %v460
    %1182 = vmatprep.subr.mxu0 %v463
    %1183 = vmatpush1.msra.mxu0 %v462
    %1184 = vmatprep.subr.mxu0 %v465
    %1185 = vmatpush1.msra.mxu0 %v464
    %1186 = vmatprep.subr.mxu0 %v467
    %1187 = vmatpush1.msra.mxu0 %v466
    %1188 = vmatprep.subr.mxu0 %v469
    %1189 = vmatpush1.msra.mxu0 %v468
    %1190 = vmatprep.subr.mxu0 %v471
    %1191 = vmatpush1.msra.mxu0 %v470
    %1192 = vmatprep.subr.mxu0 %v473
    %1193 = vmatpush1.msra.mxu0 %v472
    %1194 = vmatprep.subr.mxu0 %v475
    %1195 = vmatpush1.msra.mxu0 %v474
    %1196 = vmatprep.subr.mxu0 %v477
    %1197 = vmatpush1.msra.mxu0 %v476
    %1198 = vmatprep.subr.mxu0 %v479
    %1199 = vmatpush1.msra.mxu0 %v478
    %1200 = vmatprep.subr.mxu0 %v481
    %1201 = vmatpush1.msra.mxu0 %v480
    %1202 = vmatprep.subr.mxu0 %v483
    %1203 = vmatpush1.msra.mxu0 %v482
    %1204 = vmatprep.subr.mxu0 %v485
    %1205 = vmatpush1.msra.mxu0 %v484
    %1206 = vmatprep.subr.mxu0 %v487
    %1207 = vmatpush1.msra.mxu0 %v486
    %1208 = vmatprep.subr.mxu0 %v489
    %1209 = vmatpush1.msra.mxu0 %v488
    %1210 = vmatprep.mubr.f32.mxu0 %v1142
    %1211 = vmatmul.mubr.f32.gmra.mrb[0].mxu0 %v1125
    %v1212 = vpop.f32.mrb[0].mxu0
    %v1213 = vadd.f32 0.0, %v1212
    %v1214 = vpop.f32.mrb[0].mxu0
    %v1215 = vadd.f32 0.0, %v1214
    %1216 = vdwg.mxu0
    %v1217 = vadd.f32 %v1144, %v1213
    %v1218 = vadd.f32 %v1145, %v1215
    %v1219 = vmul.f32 %v1217, %v116
    %v1220 = vtanh.pop %v1219
    %v1221 = vmul.f32 %v1220, 0.5
    %v1222 = vadd.f32 %v1221, 0.5
    %v1223 = vsel %vm115, %v1220, %v1222
    %1224 = vrot.lane.b32.xlu0 %v1223, 64
    %v1225 = vpop.permute.xlu0 %1224
    %1226 = vrot.lane.b32.xlu0 %v1223, 32
    %v1227 = vpop.permute.xlu0 %1226
    %1228 = vrot.lane.b32.xlu0 %v1223, 96
    %v1229 = vpop.permute.xlu0 %1228
    %v1230 = vmul.f32 %v1223, %v1123
    %v1231 = vmul.f32 %v1227, %v1229
    %v1232 = vadd.f32 %v1230, %v1231
    %v1233 = vtanh.pop %v1232
    %v1234 = vmul.f32 %v1225, %v1233
    %1235 = vst [vmem:[#allocation4 + $0x60] sm:$0xff] %v1234
    %v1236 = vmul.f32 %v1218, %v116
    %v1237 = vtanh.pop %v1236
    %v1238 = vmul.f32 %v1237, 0.5
    %v1239 = vadd.f32 %v1238, 0.5
    %v1240 = vsel %vm115, %v1237, %v1239
    %1241 = vrot.lane.b32.xlu0 %v1240, 64
    %v1242 = vpop.permute.xlu0 %1241
    %1243 = vrot.lane.b32.xlu0 %v1240, 32
    %v1244 = vpop.permute.xlu0 %1243
    %1245 = vrot.lane.b32.xlu0 %v1240, 96
    %v1246 = vpop.permute.xlu0 %1245
    %v1247 = vmul.f32 %v1240, %v1140
    %v1248 = vmul.f32 %v1244, %v1246
    %v1249 = vadd.f32 %v1247, %v1248
    %v1250 = vtanh.pop %v1249
    %v1251 = vmul.f32 %v1242, %v1250
    %1252 = vst [vmem:[#allocation4 + $0x18] sm:$0xff] %v1251
    %v1253 = vld [vmem:[#allocation2 + $0x38] sm:$0xff]
    %v1254 = vld [vmem:[#allocation3] sm:$0xff]
    %1255 = vmatprep.subr.mxu0 %v427
    %1256 = vmatpush1.msra.mxu0 %v426
    %1257 = vmatprep.subr.mxu0 %v429
    %1258 = vmatpush1.msra.mxu0 %v428
    %1259 = vmatprep.subr.mxu0 %v431
    %1260 = vmatpush1.msra.mxu0 %v430
    %1261 = vmatprep.subr.mxu0 %v433
    %1262 = vmatpush1.msra.mxu0 %v432
    %1263 = vmatprep.subr.mxu0 %v435
    %1264 = vmatpush1.msra.mxu0 %v434
    %1265 = vmatprep.subr.mxu0 %v437
    %1266 = vmatpush1.msra.mxu0 %v436
    %1267 = vmatprep.subr.mxu0 %v439
    %1268 = vmatpush1.msra.mxu0 %v438
    %1269 = vmatprep.subr.mxu0 %v441
    %1270 = vmatpush1.msra.mxu0 %v440
    %1271 = vmatprep.subr.mxu0 %v443
    %1272 = vmatpush1.msra.mxu0 %v442
    %1273 = vmatprep.subr.mxu0 %v445
    %1274 = vmatpush1.msra.mxu0 %v444
    %1275 = vmatprep.subr.mxu0 %v447
    %1276 = vmatpush1.msra.mxu0 %v446
    %1277 = vmatprep.subr.mxu0 %v449
    %1278 = vmatpush1.msra.mxu0 %v448
    %1279 = vmatprep.subr.mxu0 %v451
    %1280 = vmatpush1.msra.mxu0 %v450
    %1281 = vmatprep.subr.mxu0 %v453
    %1282 = vmatpush1.msra.mxu0 %v452
    %1283 = vmatprep.subr.mxu0 %v455
    %1284 = vmatpush1.msra.mxu0 %v454
    %1285 = vmatprep.subr.mxu0 %v457
    %1286 = vmatpush1.msra.mxu0 %v456
    %1287 = vmatprep.subr.mxu0 %v459
    %1288 = vmatpush1.msra.mxu0 %v458
    %1289 = vmatprep.subr.mxu0 %v461
    %1290 = vmatpush1.msra.mxu0 %v460
    %1291 = vmatprep.subr.mxu0 %v463
    %1292 = vmatpush1.msra.mxu0 %v462
    %1293 = vmatprep.subr.mxu0 %v465
    %1294 = vmatpush1.msra.mxu0 %v464
    %1295 = vmatprep.subr.mxu0 %v467
    %1296 = vmatpush1.msra.mxu0 %v466
    %1297 = vmatprep.subr.mxu0 %v469
    %1298 = vmatpush1.msra.mxu0 %v468
    %1299 = vmatprep.subr.mxu0 %v471
    %1300 = vmatpush1.msra.mxu0 %v470
    %1301 = vmatprep.subr.mxu0 %v473
    %1302 = vmatpush1.msra.mxu0 %v472
    %1303 = vmatprep.subr.mxu0 %v475
    %1304 = vmatpush1.msra.mxu0 %v474
    %1305 = vmatprep.subr.mxu0 %v477
    %1306 = vmatpush1.msra.mxu0 %v476
    %1307 = vmatprep.subr.mxu0 %v479
    %1308 = vmatpush1.msra.mxu0 %v478
    %1309 = vmatprep.subr.mxu0 %v481
    %1310 = vmatpush1.msra.mxu0 %v480
    %1311 = vmatprep.subr.mxu0 %v483
    %1312 = vmatpush1.msra.mxu0 %v482
    %1313 = vmatprep.subr.mxu0 %v485
    %1314 = vmatpush1.msra.mxu0 %v484
    %1315 = vmatprep.subr.mxu0 %v487
    %1316 = vmatpush1.msra.mxu0 %v486
    %1317 = vmatprep.subr.mxu0 %v489
    %1318 = vmatpush1.msra.mxu0 %v488
    %1319 = vmatprep.mubr.f32.mxu0 %v1251
    %1320 = vmatmul.mubr.f32.gmra.mrb[0].mxu0 %v1234
    %v1321 = vpop.f32.mrb[0].mxu0
    %v1322 = vadd.f32 0.0, %v1321
    %v1323 = vpop.f32.mrb[0].mxu0
    %v1324 = vadd.f32 0.0, %v1323
    %1325 = vdwg.mxu0
    %v1326 = vadd.f32 %v1253, %v1322
    %v1327 = vadd.f32 %v1254, %v1324
    %v1328 = vmul.f32 %v1326, %v116
    %v1329 = vtanh.pop %v1328
    %v1330 = vmul.f32 %v1329, 0.5
    %v1331 = vadd.f32 %v1330, 0.5
    %v1332 = vsel %vm115, %v1329, %v1331
    %1333 = vrot.lane.b32.xlu0 %v1332, 64
    %v1334 = vpop.permute.xlu0 %1333
    %1335 = vrot.lane.b32.xlu0 %v1332, 32
    %v1336 = vpop.permute.xlu0 %1335
    %1337 = vrot.lane.b32.xlu0 %v1332, 96
    %v1338 = vpop.permute.xlu0 %1337
    %v1339 = vmul.f32 %v1332, %v1232
    %v1340 = vmul.f32 %v1336, %v1338
    %v1341 = vadd.f32 %v1339, %v1340
    %v1342 = vtanh.pop %v1341
    %v1343 = vmul.f32 %v1334, %v1342
    %1344 = vst [vmem:[#allocation4 + $0x70] sm:$0xff] %v1343
    %v1345 = vmul.f32 %v1327, %v116
    %v1346 = vtanh.pop %v1345
    %v1347 = vmul.f32 %v1346, 0.5
    %v1348 = vadd.f32 %v1347, 0.5
    %v1349 = vsel %vm115, %v1346, %v1348
    %1350 = vrot.lane.b32.xlu0 %v1349, 64
    %v1351 = vpop.permute.xlu0 %1350
    %1352 = vrot.lane.b32.xlu0 %v1349, 32
    %v1353 = vpop.permute.xlu0 %1352
    %1354 = vrot.lane.b32.xlu0 %v1349, 96
    %v1355 = vpop.permute.xlu0 %1354
    %v1356 = vmul.f32 %v1349, %v1249
    %v1357 = vmul.f32 %v1353, %v1355
    %v1358 = vadd.f32 %v1356, %v1357
    %v1359 = vtanh.pop %v1358
    %v1360 = vmul.f32 %v1351, %v1359
    %1361 = vst [vmem:[#allocation4 + $0x8] sm:$0xff] %v1360
    %v1362 = vld [vmem:[#allocation4] sm:$0xff]
    %v1363 = vld [vmem:[#allocation4 + $0x8] sm:$0xff]
    %v1364 = vld [vmem:[#allocation4 + $0x10] sm:$0xff]
    %v1365 = vld [vmem:[#allocation4 + $0x18] sm:$0xff]
    %v1366 = vld [vmem:[#allocation4 + $0x20] sm:$0xff]
    %v1367 = vld [vmem:[#allocation4 + $0x28] sm:$0xff]
    %v1368 = vld [vmem:[#allocation4 + $0x30] sm:$0xff]
    %v1369 = vld [vmem:[#allocation4 + $0x38] sm:$0xff]
    %v1370 = vld [vmem:[#allocation4 + $0x40] sm:$0xff]
    %v1371 = vld [vmem:[#allocation4 + $0x48] sm:$0xff]
    %v1372 = vld [vmem:[#allocation4 + $0x50] sm:$0xff]
    %v1373 = vld [vmem:[#allocation4 + $0x58] sm:$0xff]
    %v1374 = vld [vmem:[#allocation4 + $0x60] sm:$0xff]
    %v1375 = vld [vmem:[#allocation4 + $0x68] sm:$0xff]
    %v1376 = vld [vmem:[#allocation4 + $0x70] sm:$0xff]
    %v1377 = vld [vmem:[#allocation4 + $0x78] sm:$0xff]
    %v1378 = vld [vmem:[#allocation8] sm:$0xff]
    %v1379 = vld [vmem:[#allocation8 + $0x8] sm:$0xff]
    %v1380 = vld [vmem:[#allocation8 + $0x10] sm:$0xff]
    %v1381 = vld [vmem:[#allocation8 + $0x18] sm:$0xff]
    %v1382 = vld [vmem:[#allocation8 + $0x20] sm:$0xff]
    %v1383 = vld [vmem:[#allocation8 + $0x28] sm:$0xff]
    %v1384 = vld [vmem:[#allocation8 + $0x30] sm:$0xff]
    %v1385 = vld [vmem:[#allocation8 + $0x38] sm:$0xff]
    %v1386 = vld [vmem:[#allocation8 + $0x40] sm:$0xff]
    %v1387 = vld [vmem:[#allocation8 + $0x48] sm:$0xff]
    %v1388 = vld [vmem:[#allocation8 + $0x50] sm:$0xff]
    %v1389 = vld [vmem:[#allocation8 + $0x58] sm:$0xff]
    %v1390 = vld [vmem:[#allocation8 + $0x60] sm:$0xff]
    %v1391 = vld [vmem:[#allocation8 + $0x68] sm:$0xff]
    %v1392 = vld [vmem:[#allocation8 + $0x70] sm:$0xff]
    %v1393 = vld [vmem:[#allocation8 + $0x78] sm:$0xff]
    %v1394 = vld [vmem:[#allocation8 + $0x80] sm:$0xff]
    %v1395 = vld [vmem:[#allocation8 + $0x88] sm:$0xff]
    %v1396 = vld [vmem:[#allocation8 + $0x90] sm:$0xff]
    %v1397 = vld [vmem:[#allocation8 + $0x98] sm:$0xff]
    %v1398 = vld [vmem:[#allocation8 + $0xa0] sm:$0xff]
    %v1399 = vld [vmem:[#allocation8 + $0xa8] sm:$0xff]
    %v1400 = vld [vmem:[#allocation8 + $0xb0] sm:$0xff]
    %v1401 = vld [vmem:[#allocation8 + $0xb8] sm:$0xff]
    %v1402 = vld [vmem:[#allocation8 + $0xc0] sm:$0xff]
    %v1403 = vld [vmem:[#allocation8 + $0xc8] sm:$0xff]
    %v1404 = vld [vmem:[#allocation8 + $0xd0] sm:$0xff]
    %v1405 = vld [vmem:[#allocation8 + $0xd8] sm:$0xff]
    %v1406 = vld [vmem:[#allocation8 + $0xe0] sm:$0xff]
    %v1407 = vld [vmem:[#allocation8 + $0xe8] sm:$0xff]
    %v1408 = vld [vmem:[#allocation8 + $0xf0] sm:$0xff]
    %v1409 = vld [vmem:[#allocation8 + $0xf8] sm:$0xff]
    %v1410 = vld [vmem:[%s7] sm:$0x1]
    %v1412 = vlaneseq
    %v1413 = vshrl.u32 %v1412, 7
    %v1414 = vsub.s32 0, %v1413
    %v1415 = vrot.slane %v1410, %v1414
    %1417 = vmatprep.subr.mxu0 0.0
    %1418 = vmatpush1.msra.mxu0 %v1378
    %1419 = vmatprep.subr.mxu0 0.0
    %1420 = vmatpush1.msra.mxu0 %v1379
    %1421 = vmatprep.subr.mxu0 0.0
    %1422 = vmatpush1.msra.mxu0 %v1380
    %1423 = vmatprep.subr.mxu0 0.0
    %1424 = vmatpush1.msra.mxu0 %v1381
    %1425 = vmatprep.subr.mxu0 0.0
    %1426 = vmatpush1.msra.mxu0 %v1382
    %1427 = vmatprep.subr.mxu0 0.0
    %1428 = vmatpush1.msra.mxu0 %v1383
    %1429 = vmatprep.subr.mxu0 0.0
    %1430 = vmatpush1.msra.mxu0 %v1384
    %1431 = vmatprep.subr.mxu0 0.0
    %1432 = vmatpush1.msra.mxu0 %v1385
    %1433 = vmatprep.subr.mxu0 0.0
    %1434 = vmatpush1.msra.mxu0 %v1386
    %1435 = vmatprep.subr.mxu0 0.0
    %1436 = vmatpush1.msra.mxu0 %v1387
    %1437 = vmatprep.subr.mxu0 0.0
    %1438 = vmatpush1.msra.mxu0 %v1388
    %1439 = vmatprep.subr.mxu0 0.0
    %1440 = vmatpush1.msra.mxu0 %v1389
    %1441 = vmatprep.subr.mxu0 0.0
    %1442 = vmatpush1.msra.mxu0 %v1390
    %1443 = vmatprep.subr.mxu0 0.0
    %1444 = vmatpush1.msra.mxu0 %v1391
    %1445 = vmatprep.subr.mxu0 0.0
    %1446 = vmatpush1.msra.mxu0 %v1392
    %1447 = vmatprep.subr.mxu0 0.0
    %1448 = vmatpush1.msra.mxu0 %v1393
    %1449 = vmatprep.subr.mxu0 0.0
    %1450 = vmatpush1.msra.mxu0 %v1394
    %1451 = vmatprep.subr.mxu0 0.0
    %1452 = vmatpush1.msra.mxu0 %v1395
    %1453 = vmatprep.subr.mxu0 0.0
    %1454 = vmatpush1.msra.mxu0 %v1396
    %1455 = vmatprep.subr.mxu0 0.0
    %1456 = vmatpush1.msra.mxu0 %v1397
    %1457 = vmatprep.subr.mxu0 0.0
    %1458 = vmatpush1.msra.mxu0 %v1398
    %1459 = vmatprep.subr.mxu0 0.0
    %1460 = vmatpush1.msra.mxu0 %v1399
    %1461 = vmatprep.subr.mxu0 0.0
    %1462 = vmatpush1.msra.mxu0 %v1400
    %1463 = vmatprep.subr.mxu0 0.0
    %1464 = vmatpush1.msra.mxu0 %v1401
    %1465 = vmatprep.subr.mxu0 0.0
    %1466 = vmatpush1.msra.mxu0 %v1402
    %1467 = vmatprep.subr.mxu0 0.0
    %1468 = vmatpush1.msra.mxu0 %v1403
    %1469 = vmatprep.subr.mxu0 0.0
    %1470 = vmatpush1.msra.mxu0 %v1404
    %1471 = vmatprep.subr.mxu0 0.0
    %1472 = vmatpush1.msra.mxu0 %v1405
    %1473 = vmatprep.subr.mxu0 0.0
    %1474 = vmatpush1.msra.mxu0 %v1406
    %1475 = vmatprep.subr.mxu0 0.0
    %1476 = vmatpush1.msra.mxu0 %v1407
    %1477 = vmatprep.subr.mxu0 0.0
    %1478 = vmatpush1.msra.mxu0 %v1408
    %1479 = vmatprep.subr.mxu0 0.0
    %1480 = vmatpush1.msra.mxu0 %v1409
    %1481 = vmatprep.mubr.f32.mxu0 %v1363
    %1482 = vmatmul.mubr.f32.gmra.mrb[0].mxu0 %v1362
    %v1483 = vpop.f32.mrb[0].mxu0
    %v1484 = vadd.f32 %v1415, %v1483
    %v1485 = vpop.f32.mrb[0].mxu0
    %1486 = vmatprep.mubr.f32.mxu0 %v1365
    %1487 = vmatmul.mubr.f32.gmra.mrb[0].mxu0 %v1364
    %v1488 = vpop.f32.mrb[0].mxu0
    %v1489 = vadd.f32 %v1415, %v1488
    %v1490 = vpop.f32.mrb[0].mxu0
    %1491 = vmatprep.mubr.f32.mxu0 %v1367
    %1492 = vmatmul.mubr.f32.gmra.mrb[0].mxu0 %v1366
    %v1493 = vpop.f32.mrb[0].mxu0
    %v1494 = vadd.f32 %v1415, %v1493
    %v1495 = vpop.f32.mrb[0].mxu0
    %1496 = vmatprep.mubr.f32.mxu0 %v1369
    %1497 = vmatmul.mubr.f32.gmra.mrb[0].mxu0 %v1368
    %v1498 = vpop.f32.mrb[0].mxu0
    %v1499 = vadd.f32 %v1415, %v1498
    %v1500 = vpop.f32.mrb[0].mxu0
    %1501 = vmatprep.mubr.f32.mxu0 %v1371
    %1502 = vmatmul.mubr.f32.gmra.mrb[0].mxu0 %v1370
    %v1503 = vpop.f32.mrb[0].mxu0
    %v1504 = vadd.f32 %v1415, %v1503
    %v1505 = vpop.f32.mrb[0].mxu0
    %1506 = vmatprep.mubr.f32.mxu0 %v1373
    %1507 = vmatmul.mubr.f32.gmra.mrb[0].mxu0 %v1372
    %v1508 = vpop.f32.mrb[0].mxu0
    %v1509 = vadd.f32 %v1415, %v1508
    %v1510 = vpop.f32.mrb[0].mxu0
    %1511 = vmatprep.mubr.f32.mxu0 %v1375
    %1512 = vmatmul.mubr.f32.gmra.mrb[0].mxu0 %v1374
    %v1513 = vpop.f32.mrb[0].mxu0
    %v1514 = vadd.f32 %v1415, %v1513
    %v1515 = vpop.f32.mrb[0].mxu0
    %1516 = vmatprep.mubr.f32.mxu0 %v1377
    %1517 = vmatmul.mubr.f32.gmra.mrb[0].mxu0 %v1376
    %v1518 = vpop.f32.mrb[0].mxu0
    %v1519 = vadd.f32 %v1415, %v1518
    %v1520 = vpop.f32.mrb[0].mxu0
    %1521 = vdwg.mxu0
    %1522 = vst [vmem:[#allocation2] sm:$0xff] %v1484
    %1523 = vst [vmem:[#allocation2 + $0x8] sm:$0xff] %v1489
    %1524 = vst [vmem:[#allocation2 + $0x10] sm:$0xff] %v1494
    %1525 = vst [vmem:[#allocation2 + $0x18] sm:$0xff] %v1499
    %1526 = vst [vmem:[#allocation2 + $0x20] sm:$0xff] %v1504
    %1527 = vst [vmem:[#allocation2 + $0x28] sm:$0xff] %v1509
    %1528 = vst [vmem:[#allocation2 + $0x30] sm:$0xff] %v1514
    %1529 = vst [vmem:[#allocation2 + $0x38] sm:$0xff] %v1519
    %v1530 = vld [vmem:[#allocation4] sm:$0xff]
    %v1531 = vld [vmem:[#allocation4 + $0x8] sm:$0xff]
    %v1532 = vld [vmem:[#allocation4 + $0x10] sm:$0xff]
    %v1533 = vld [vmem:[#allocation4 + $0x18] sm:$0xff]
    %v1534 = vld [vmem:[#allocation4 + $0x20] sm:$0xff]
    %v1535 = vld [vmem:[#allocation4 + $0x28] sm:$0xff]
    %v1536 = vld [vmem:[#allocation4 + $0x30] sm:$0xff]
    %v1537 = vld [vmem:[#allocation4 + $0x38] sm:$0xff]
    %v1538 = vld [vmem:[#allocation4 + $0x40] sm:$0xff]
    %v1539 = vld [vmem:[#allocation4 + $0x48] sm:$0xff]
    %v1540 = vld [vmem:[#allocation4 + $0x50] sm:$0xff]
    %v1541 = vld [vmem:[#allocation4 + $0x58] sm:$0xff]
    %v1542 = vld [vmem:[#allocation4 + $0x60] sm:$0xff]
    %v1543 = vld [vmem:[#allocation4 + $0x68] sm:$0xff]
    %v1544 = vld [vmem:[#allocation4 + $0x70] sm:$0xff]
    %v1545 = vld [vmem:[#allocation4 + $0x78] sm:$0xff]
    %v1546 = vld [vmem:[#allocation10] sm:$0xff]
    %v1547 = vld [vmem:[#allocation10 + $0x8] sm:$0xff]
    %v1548 = vld [vmem:[#allocation10 + $0x10] sm:$0xff]
    %v1549 = vld [vmem:[#allocation10 + $0x18] sm:$0xff]
    %v1550 = vld [vmem:[#allocation10 + $0x20] sm:$0xff]
    %v1551 = vld [vmem:[#allocation10 + $0x28] sm:$0xff]
    %v1552 = vld [vmem:[#allocation10 + $0x30] sm:$0xff]
    %v1553 = vld [vmem:[#allocation10 + $0x38] sm:$0xff]
    %v1554 = vld [vmem:[#allocation10 + $0x40] sm:$0xff]
    %v1555 = vld [vmem:[#allocation10 + $0x48] sm:$0xff]
    %v1556 = vld [vmem:[#allocation10 + $0x50] sm:$0xff]
    %v1557 = vld [vmem:[#allocation10 + $0x58] sm:$0xff]
    %v1558 = vld [vmem:[#allocation10 + $0x60] sm:$0xff]
    %v1559 = vld [vmem:[#allocation10 + $0x68] sm:$0xff]
    %v1560 = vld [vmem:[#allocation10 + $0x70] sm:$0xff]
    %v1561 = vld [vmem:[#allocation10 + $0x78] sm:$0xff]
    %v1562 = vld [vmem:[#allocation10 + $0x80] sm:$0xff]
    %v1563 = vld [vmem:[#allocation10 + $0x88] sm:$0xff]
    %v1564 = vld [vmem:[#allocation10 + $0x90] sm:$0xff]
    %v1565 = vld [vmem:[#allocation10 + $0x98] sm:$0xff]
    %v1566 = vld [vmem:[#allocation10 + $0xa0] sm:$0xff]
    %v1567 = vld [vmem:[#allocation10 + $0xa8] sm:$0xff]
    %v1568 = vld [vmem:[#allocation10 + $0xb0] sm:$0xff]
    %v1569 = vld [vmem:[#allocation10 + $0xb8] sm:$0xff]
    %v1570 = vld [vmem:[#allocation10 + $0xc0] sm:$0xff]
    %v1571 = vld [vmem:[#allocation10 + $0xc8] sm:$0xff]
    %v1572 = vld [vmem:[#allocation10 + $0xd0] sm:$0xff]
    %v1573 = vld [vmem:[#allocation10 + $0xd8] sm:$0xff]
    %v1574 = vld [vmem:[#allocation10 + $0xe0] sm:$0xff]
    %v1575 = vld [vmem:[#allocation10 + $0xe8] sm:$0xff]
    %v1576 = vld [vmem:[#allocation10 + $0xf0] sm:$0xff]
    %v1577 = vld [vmem:[#allocation10 + $0xf8] sm:$0xff]
    %v1578 = vld [vmem:[%s9] sm:$0x1]
    %v1580 = vlaneseq
    %v1581 = vshrl.u32 %v1580, 7
    %v1582 = vsub.s32 0, %v1581
    %v1583 = vrot.slane %v1578, %v1582
    %1585 = vmatprep.subr.mxu0 0.0
    %1586 = vmatpush1.msra.mxu0 %v1546
    %1587 = vmatprep.subr.mxu0 0.0
    %1588 = vmatpush1.msra.mxu0 %v1547
    %1589 = vmatprep.subr.mxu0 0.0
    %1590 = vmatpush1.msra.mxu0 %v1548
    %1591 = vmatprep.subr.mxu0 0.0
    %1592 = vmatpush1.msra.mxu0 %v1549
    %1593 = vmatprep.subr.mxu0 0.0
    %1594 = vmatpush1.msra.mxu0 %v1550
    %1595 = vmatprep.subr.mxu0 0.0
    %1596 = vmatpush1.msra.mxu0 %v1551
    %1597 = vmatprep.subr.mxu0 0.0
    %1598 = vmatpush1.msra.mxu0 %v1552
    %1599 = vmatprep.subr.mxu0 0.0
    %1600 = vmatpush1.msra.mxu0 %v1553
    %1601 = vmatprep.subr.mxu0 0.0
    %1602 = vmatpush1.msra.mxu0 %v1554
    %1603 = vmatprep.subr.mxu0 0.0
    %1604 = vmatpush1.msra.mxu0 %v1555
    %1605 = vmatprep.subr.mxu0 0.0
    %1606 = vmatpush1.msra.mxu0 %v1556
    %1607 = vmatprep.subr.mxu0 0.0
    %1608 = vmatpush1.msra.mxu0 %v1557
    %1609 = vmatprep.subr.mxu0 0.0
    %1610 = vmatpush1.msra.mxu0 %v1558
    %1611 = vmatprep.subr.mxu0 0.0
    %1612 = vmatpush1.msra.mxu0 %v1559
    %1613 = vmatprep.subr.mxu0 0.0
    %1614 = vmatpush1.msra.mxu0 %v1560
    %1615 = vmatprep.subr.mxu0 0.0
    %1616 = vmatpush1.msra.mxu0 %v1561
    %1617 = vmatprep.subr.mxu0 0.0
    %1618 = vmatpush1.msra.mxu0 %v1562
    %1619 = vmatprep.subr.mxu0 0.0
    %1620 = vmatpush1.msra.mxu0 %v1563
    %1621 = vmatprep.subr.mxu0 0.0
    %1622 = vmatpush1.msra.mxu0 %v1564
    %1623 = vmatprep.subr.mxu0 0.0
    %1624 = vmatpush1.msra.mxu0 %v1565
    %1625 = vmatprep.subr.mxu0 0.0
    %1626 = vmatpush1.msra.mxu0 %v1566
    %1627 = vmatprep.subr.mxu0 0.0
    %1628 = vmatpush1.msra.mxu0 %v1567
    %1629 = vmatprep.subr.mxu0 0.0
    %1630 = vmatpush1.msra.mxu0 %v1568
    %1631 = vmatprep.subr.mxu0 0.0
    %1632 = vmatpush1.msra.mxu0 %v1569
    %1633 = vmatprep.subr.mxu0 0.0
    %1634 = vmatpush1.msra.mxu0 %v1570
    %1635 = vmatprep.subr.mxu0 0.0
    %1636 = vmatpush1.msra.mxu0 %v1571
    %1637 = vmatprep.subr.mxu0 0.0
    %1638 = vmatpush1.msra.mxu0 %v1572
    %1639 = vmatprep.subr.mxu0 0.0
    %1640 = vmatpush1.msra.mxu0 %v1573
    %1641 = vmatprep.subr.mxu0 0.0
    %1642 = vmatpush1.msra.mxu0 %v1574
    %1643 = vmatprep.subr.mxu0 0.0
    %1644 = vmatpush1.msra.mxu0 %v1575
    %1645 = vmatprep.subr.mxu0 0.0
    %1646 = vmatpush1.msra.mxu0 %v1576
    %1647 = vmatprep.subr.mxu0 0.0
    %1648 = vmatpush1.msra.mxu0 %v1577
    %1649 = vmatprep.mubr.f32.mxu0 %v1531
    %1650 = vmatmul.mubr.f32.gmra.mrb[0].mxu0 %v1530
    %v1651 = vpop.f32.mrb[0].mxu0
    %v1652 = vadd.f32 %v1583, %v1651
    %v1653 = vpop.f32.mrb[0].mxu0
    %1654 = vmatprep.mubr.f32.mxu0 %v1533
    %1655 = vmatmul.mubr.f32.gmra.mrb[0].mxu0 %v1532
    %v1656 = vpop.f32.mrb[0].mxu0
    %v1657 = vadd.f32 %v1583, %v1656
    %v1658 = vpop.f32.mrb[0].mxu0
    %1659 = vmatprep.mubr.f32.mxu0 %v1535
    %1660 = vmatmul.mubr.f32.gmra.mrb[0].mxu0 %v1534
    %v1661 = vpop.f32.mrb[0].mxu0
    %v1662 = vadd.f32 %v1583, %v1661
    %v1663 = vpop.f32.mrb[0].mxu0
    %1664 = vmatprep.mubr.f32.mxu0 %v1537
    %1665 = vmatmul.mubr.f32.gmra.mrb[0].mxu0 %v1536
    %v1666 = vpop.f32.mrb[0].mxu0
    %v1667 = vadd.f32 %v1583, %v1666
    %v1668 = vpop.f32.mrb[0].mxu0
    %1669 = vmatprep.mubr.f32.mxu0 %v1539
    %1670 = vmatmul.mubr.f32.gmra.mrb[0].mxu0 %v1538
    %v1671 = vpop.f32.mrb[0].mxu0
    %v1672 = vadd.f32 %v1583, %v1671
    %v1673 = vpop.f32.mrb[0].mxu0
    %1674 = vmatprep.mubr.f32.mxu0 %v1541
    %1675 = vmatmul.mubr.f32.gmra.mrb[0].mxu0 %v1540
    %v1676 = vpop.f32.mrb[0].mxu0
    %v1677 = vadd.f32 %v1583, %v1676
    %v1678 = vpop.f32.mrb[0].mxu0
    %1679 = vmatprep.mubr.f32.mxu0 %v1543
    %1680 = vmatmul.mubr.f32.gmra.mrb[0].mxu0 %v1542
    %v1681 = vpop.f32.mrb[0].mxu0
    %v1682 = vadd.f32 %v1583, %v1681
    %v1683 = vpop.f32.mrb[0].mxu0
    %1684 = vmatprep.mubr.f32.mxu0 %v1545
    %1685 = vmatmul.mubr.f32.gmra.mrb[0].mxu0 %v1544
    %v1686 = vpop.f32.mrb[0].mxu0
    %v1687 = vadd.f32 %v1583, %v1686
    %v1688 = vpop.f32.mrb[0].mxu0
    %1689 = vdwg.mxu0
    %1690 = vst [vmem:[#allocation3] sm:$0xff] %v1652
    %1691 = vst [vmem:[#allocation3 + $0x8] sm:$0xff] %v1657
    %1692 = vst [vmem:[#allocation3 + $0x10] sm:$0xff] %v1662
    %1693 = vst [vmem:[#allocation3 + $0x18] sm:$0xff] %v1667
    %1694 = vst [vmem:[#allocation3 + $0x20] sm:$0xff] %v1672
    %1695 = vst [vmem:[#allocation3 + $0x28] sm:$0xff] %v1677
    %1696 = vst [vmem:[#allocation3 + $0x30] sm:$0xff] %v1682
    %1697 = vst [vmem:[#allocation3 + $0x38] sm:$0xff] %v1687
    %v1698 = vld [vmem:[#allocation11] sm:$0xff]
    %v1699 = vld [vmem:[#allocation11 + $0x8] sm:$0xff]
    %v1700 = vld [vmem:[#allocation11 + $0x10] sm:$0xff]
    %v1701 = vld [vmem:[#allocation11 + $0x18] sm:$0xff]
    %v1702 = vld [vmem:[#allocation11 + $0x20] sm:$0xff]
    %v1703 = vld [vmem:[#allocation11 + $0x28] sm:$0xff]
    %v1704 = vld [vmem:[#allocation11 + $0x30] sm:$0xff]
    %v1705 = vld [vmem:[#allocation11 + $0x38] sm:$0xff]
    %v1706 = vld [vmem:[#allocation11 + $0x40] sm:$0xff]
    %v1707 = vld [vmem:[#allocation11 + $0x48] sm:$0xff]
    %v1708 = vld [vmem:[#allocation11 + $0x50] sm:$0xff]
    %v1709 = vld [vmem:[#allocation11 + $0x58] sm:$0xff]
    %v1710 = vld [vmem:[#allocation11 + $0x60] sm:$0xff]
    %v1711 = vld [vmem:[#allocation11 + $0x68] sm:$0xff]
    %v1712 = vld [vmem:[#allocation11 + $0x70] sm:$0xff]
    %v1713 = vld [vmem:[#allocation11 + $0x78] sm:$0xff]
    %v1714 = vld [vmem:[#allocation11 + $0x80] sm:$0xff]
    %v1715 = vld [vmem:[#allocation11 + $0x88] sm:$0xff]
    %v1716 = vld [vmem:[#allocation11 + $0x90] sm:$0xff]
    %v1717 = vld [vmem:[#allocation11 + $0x98] sm:$0xff]
    %v1718 = vld [vmem:[#allocation11 + $0xa0] sm:$0xff]
    %v1719 = vld [vmem:[#allocation11 + $0xa8] sm:$0xff]
    %v1720 = vld [vmem:[#allocation11 + $0xb0] sm:$0xff]
    %v1721 = vld [vmem:[#allocation11 + $0xb8] sm:$0xff]
    %v1722 = vld [vmem:[#allocation11 + $0xc0] sm:$0xff]
    %v1723 = vld [vmem:[#allocation11 + $0xc8] sm:$0xff]
    %v1724 = vld [vmem:[#allocation11 + $0xd0] sm:$0xff]
    %v1725 = vld [vmem:[#allocation11 + $0xd8] sm:$0xff]
    %v1726 = vld [vmem:[#allocation11 + $0xe0] sm:$0xff]
    %v1727 = vld [vmem:[#allocation11 + $0xe8] sm:$0xff]
    %v1728 = vld [vmem:[#allocation11 + $0xf0] sm:$0xff]
    %v1729 = vld [vmem:[#allocation11 + $0xf8] sm:$0xff]
    %v1730 = vld [vmem:[#allocation11 + $0x100] sm:$0xff]
    %v1731 = vld [vmem:[#allocation11 + $0x108] sm:$0xff]
    %v1732 = vld [vmem:[#allocation11 + $0x110] sm:$0xff]
    %v1733 = vld [vmem:[#allocation11 + $0x118] sm:$0xff]
    %v1734 = vld [vmem:[#allocation11 + $0x120] sm:$0xff]
    %v1735 = vld [vmem:[#allocation11 + $0x128] sm:$0xff]
    %v1736 = vld [vmem:[#allocation11 + $0x130] sm:$0xff]
    %v1737 = vld [vmem:[#allocation11 + $0x138] sm:$0xff]
    %v1738 = vld [vmem:[#allocation11 + $0x140] sm:$0xff]
    %v1739 = vld [vmem:[#allocation11 + $0x148] sm:$0xff]
    %v1740 = vld [vmem:[#allocation11 + $0x150] sm:$0xff]
    %v1741 = vld [vmem:[#allocation11 + $0x158] sm:$0xff]
    %v1742 = vld [vmem:[#allocation11 + $0x160] sm:$0xff]
    %v1743 = vld [vmem:[#allocation11 + $0x168] sm:$0xff]
    %v1744 = vld [vmem:[#allocation11 + $0x170] sm:$0xff]
    %v1745 = vld [vmem:[#allocation11 + $0x178] sm:$0xff]
    %v1746 = vld [vmem:[#allocation11 + $0x180] sm:$0xff]
    %v1747 = vld [vmem:[#allocation11 + $0x188] sm:$0xff]
    %v1748 = vld [vmem:[#allocation11 + $0x190] sm:$0xff]
    %v1749 = vld [vmem:[#allocation11 + $0x198] sm:$0xff]
    %v1750 = vld [vmem:[#allocation11 + $0x1a0] sm:$0xff]
    %v1751 = vld [vmem:[#allocation11 + $0x1a8] sm:$0xff]
    %v1752 = vld [vmem:[#allocation11 + $0x1b0] sm:$0xff]
    %v1753 = vld [vmem:[#allocation11 + $0x1b8] sm:$0xff]
    %v1754 = vld [vmem:[#allocation11 + $0x1c0] sm:$0xff]
    %v1755 = vld [vmem:[#allocation11 + $0x1c8] sm:$0xff]
    %v1756 = vld [vmem:[#allocation11 + $0x1d0] sm:$0xff]
    %v1757 = vld [vmem:[#allocation11 + $0x1d8] sm:$0xff]
    %v1758 = vld [vmem:[#allocation11 + $0x1e0] sm:$0xff]
    %v1759 = vld [vmem:[#allocation11 + $0x1e8] sm:$0xff]
    %v1760 = vld [vmem:[#allocation11 + $0x1f0] sm:$0xff]
    %v1761 = vld [vmem:[#allocation11 + $0x1f8] sm:$0xff]
    %v1762 = vld [vmem:[#allocation2] sm:$0xff]
    %v1763 = vld [vmem:[#allocation3 + $0x38] sm:$0xff]
    %1764 = vmatprep.subr.mxu0 %v1699
    %1765 = vmatpush1.msra.mxu0 %v1698
    %1766 = vmatprep.subr.mxu0 %v1701
    %1767 = vmatpush1.msra.mxu0 %v1700
    %1768 = vmatprep.subr.mxu0 %v1703
    %1769 = vmatpush1.msra.mxu0 %v1702
    %1770 = vmatprep.subr.mxu0 %v1705
    %1771 = vmatpush1.msra.mxu0 %v1704
    %1772 = vmatprep.subr.mxu0 %v1707
    %1773 = vmatpush1.msra.mxu0 %v1706
    %1774 = vmatprep.subr.mxu0 %v1709
    %1775 = vmatpush1.msra.mxu0 %v1708
    %1776 = vmatprep.subr.mxu0 %v1711
    %1777 = vmatpush1.msra.mxu0 %v1710
    %1778 = vmatprep.subr.mxu0 %v1713
    %1779 = vmatpush1.msra.mxu0 %v1712
    %1780 = vmatprep.subr.mxu0 %v1715
    %1781 = vmatpush1.msra.mxu0 %v1714
    %1782 = vmatprep.subr.mxu0 %v1717
    %1783 = vmatpush1.msra.mxu0 %v1716
    %1784 = vmatprep.subr.mxu0 %v1719
    %1785 = vmatpush1.msra.mxu0 %v1718
    %1786 = vmatprep.subr.mxu0 %v1721
    %1787 = vmatpush1.msra.mxu0 %v1720
    %1788 = vmatprep.subr.mxu0 %v1723
    %1789 = vmatpush1.msra.mxu0 %v1722
    %1790 = vmatprep.subr.mxu0 %v1725
    %1791 = vmatpush1.msra.mxu0 %v1724
    %1792 = vmatprep.subr.mxu0 %v1727
    %1793 = vmatpush1.msra.mxu0 %v1726
    %1794 = vmatprep.subr.mxu0 %v1729
    %1795 = vmatpush1.msra.mxu0 %v1728
    %1796 = vmatprep.subr.mxu0 %v1731
    %1797 = vmatpush1.msra.mxu0 %v1730
    %1798 = vmatprep.subr.mxu0 %v1733
    %1799 = vmatpush1.msra.mxu0 %v1732
    %1800 = vmatprep.subr.mxu0 %v1735
    %1801 = vmatpush1.msra.mxu0 %v1734
    %1802 = vmatprep.subr.mxu0 %v1737
    %1803 = vmatpush1.msra.mxu0 %v1736
    %1804 = vmatprep.subr.mxu0 %v1739
    %1805 = vmatpush1.msra.mxu0 %v1738
    %1806 = vmatprep.subr.mxu0 %v1741
    %1807 = vmatpush1.msra.mxu0 %v1740
    %1808 = vmatprep.subr.mxu0 %v1743
    %1809 = vmatpush1.msra.mxu0 %v1742
    %1810 = vmatprep.subr.mxu0 %v1745
    %1811 = vmatpush1.msra.mxu0 %v1744
    %1812 = vmatprep.subr.mxu0 %v1747
    %1813 = vmatpush1.msra.mxu0 %v1746
    %1814 = vmatprep.subr.mxu0 %v1749
    %1815 = vmatpush1.msra.mxu0 %v1748
    %1816 = vmatprep.subr.mxu0 %v1751
    %1817 = vmatpush1.msra.mxu0 %v1750
    %1818 = vmatprep.subr.mxu0 %v1753
    %1819 = vmatpush1.msra.mxu0 %v1752
    %1820 = vmatprep.subr.mxu0 %v1755
    %1821 = vmatpush1.msra.mxu0 %v1754
    %1822 = vmatprep.subr.mxu0 %v1757
    %1823 = vmatpush1.msra.mxu0 %v1756
    %1824 = vmatprep.subr.mxu0 %v1759
    %1825 = vmatpush1.msra.mxu0 %v1758
    %1826 = vmatprep.subr.mxu0 %v1761
    %1827 = vmatpush1.msra.mxu0 %v1760
    %1828 = vmatprep.mubr.f32.mxu0 0.0
    %1829 = vmatmul.mubr.f32.gmra.mrb[0].mxu0 0.0
    %v1830 = vpop.f32.mrb[0].mxu0
    %v1831 = vadd.f32 0.0, %v1830
    %v1832 = vpop.f32.mrb[0].mxu0
    %v1833 = vadd.f32 0.0, %v1832
    %1834 = vdwg.mxu0
    %v1835 = vadd.f32 %v1762, %v1831
    %v1836 = vadd.f32 %v1763, %v1833
    %v1837 = vmul.f32 %v1835, %v116
    %v1838 = vtanh.pop %v1837
    %v1839 = vmul.f32 %v1838, 0.5
    %v1840 = vadd.f32 %v1839, 0.5
    %v1841 = vsel %vm115, %v1838, %v1840
    %1842 = vrot.lane.b32.xlu0 %v1841, 64
    %v1843 = vpop.permute.xlu0 %1842
    %1844 = vrot.lane.b32.xlu0 %v1841, 32
    %v1845 = vpop.permute.xlu0 %1844
    %1846 = vrot.lane.b32.xlu0 %v1841, 96
    %v1847 = vpop.permute.xlu0 %1846
    %v1848 = vmul.f32 %v1841, 0.0
    %v1849 = vmul.f32 %v1845, %v1847
    %v1850 = vadd.f32 %v1848, %v1849
    %v1851 = vtanh.pop %v1850
    %v1852 = vmul.f32 %v1843, %v1851
    %v1853 = vmul.f32 %v1836, %v116
    %v1854 = vtanh.pop %v1853
    %v1855 = vmul.f32 %v1854, 0.5
    %v1856 = vadd.f32 %v1855, 0.5
    %v1857 = vsel %vm115, %v1854, %v1856
    %1858 = vrot.lane.b32.xlu0 %v1857, 64
    %v1859 = vpop.permute.xlu0 %1858
    %1860 = vrot.lane.b32.xlu0 %v1857, 32
    %v1861 = vpop.permute.xlu0 %1860
    %1862 = vrot.lane.b32.xlu0 %v1857, 96
    %v1863 = vpop.permute.xlu0 %1862
    %v1864 = vmul.f32 %v1857, 0.0
    %v1865 = vmul.f32 %v1861, %v1863
    %v1866 = vadd.f32 %v1864, %v1865
    %v1867 = vtanh.pop %v1866
    %v1868 = vmul.f32 %v1859, %v1867
    %v1869 = vld [vmem:[#allocation2 + $0x8] sm:$0xff]
    %v1870 = vld [vmem:[#allocation3 + $0x30] sm:$0xff]
    %1871 = vmatprep.subr.mxu0 %v1699
    %1872 = vmatpush1.msra.mxu0 %v1698
    %1873 = vmatprep.subr.mxu0 %v1701
    %1874 = vmatpush1.msra.mxu0 %v1700
    %1875 = vmatprep.subr.mxu0 %v1703
    %1876 = vmatpush1.msra.mxu0 %v1702
    %1877 = vmatprep.subr.mxu0 %v1705
    %1878 = vmatpush1.msra.mxu0 %v1704
    %1879 = vmatprep.subr.mxu0 %v1707
    %1880 = vmatpush1.msra.mxu0 %v1706
    %1881 = vmatprep.subr.mxu0 %v1709
    %1882 = vmatpush1.msra.mxu0 %v1708
    %1883 = vmatprep.subr.mxu0 %v1711
    %1884 = vmatpush1.msra.mxu0 %v1710
    %1885 = vmatprep.subr.mxu0 %v1713
    %1886 = vmatpush1.msra.mxu0 %v1712
    %1887 = vmatprep.subr.mxu0 %v1715
    %1888 = vmatpush1.msra.mxu0 %v1714
    %1889 = vmatprep.subr.mxu0 %v1717
    %1890 = vmatpush1.msra.mxu0 %v1716
    %1891 = vmatprep.subr.mxu0 %v1719
    %1892 = vmatpush1.msra.mxu0 %v1718
    %1893 = vmatprep.subr.mxu0 %v1721
    %1894 = vmatpush1.msra.mxu0 %v1720
    %1895 = vmatprep.subr.mxu0 %v1723
    %1896 = vmatpush1.msra.mxu0 %v1722
    %1897 = vmatprep.subr.mxu0 %v1725
    %1898 = vmatpush1.msra.mxu0 %v1724
    %1899 = vmatprep.subr.mxu0 %v1727
    %1900 = vmatpush1.msra.mxu0 %v1726
    %1901 = vmatprep.subr.mxu0 %v1729
    %1902 = vmatpush1.msra.mxu0 %v1728
    %1903 = vmatprep.subr.mxu0 %v1731
    %1904 = vmatpush1.msra.mxu0 %v1730
    %1905 = vmatprep.subr.mxu0 %v1733
    %1906 = vmatpush1.msra.mxu0 %v1732
    %1907 = vmatprep.subr.mxu0 %v1735
    %1908 = vmatpush1.msra.mxu0 %v1734
    %1909 = vmatprep.subr.mxu0 %v1737
    %1910 = vmatpush1.msra.mxu0 %v1736
    %1911 = vmatprep.subr.mxu0 %v1739
    %1912 = vmatpush1.msra.mxu0 %v1738
    %1913 = vmatprep.subr.mxu0 %v1741
    %1914 = vmatpush1.msra.mxu0 %v1740
    %1915 = vmatprep.subr.mxu0 %v1743
    %1916 = vmatpush1.msra.mxu0 %v1742
    %1917 = vmatprep.subr.mxu0 %v1745
    %1918 = vmatpush1.msra.mxu0 %v1744
    %1919 = vmatprep.subr.mxu0 %v1747
    %1920 = vmatpush1.msra.mxu0 %v1746
    %1921 = vmatprep.subr.mxu0 %v1749
    %1922 = vmatpush1.msra.mxu0 %v1748
    %1923 = vmatprep.subr.mxu0 %v1751
    %1924 = vmatpush1.msra.mxu0 %v1750
    %1925 = vmatprep.subr.mxu0 %v1753
    %1926 = vmatpush1.msra.mxu0 %v1752
    %1927 = vmatprep.subr.mxu0 %v1755
    %1928 = vmatpush1.msra.mxu0 %v1754
    %1929 = vmatprep.subr.mxu0 %v1757
    %1930 = vmatpush1.msra.mxu0 %v1756
    %1931 = vmatprep.subr.mxu0 %v1759
    %1932 = vmatpush1.msra.mxu0 %v1758
    %1933 = vmatprep.subr.mxu0 %v1761
    %1934 = vmatpush1.msra.mxu0 %v1760
    %1935 = vmatprep.mubr.f32.mxu0 %v1868
    %1936 = vmatmul.mubr.f32.gmra.mrb[0].mxu0 %v1852
    %v1937 = vpop.f32.mrb[0].mxu0
    %v1938 = vadd.f32 0.0, %v1937
    %v1939 = vpop.f32.mrb[0].mxu0
    %v1940 = vadd.f32 0.0, %v1939
    %1941 = vdwg.mxu0
    %v1942 = vadd.f32 %v1869, %v1938
    %v1943 = vadd.f32 %v1870, %v1940
    %v1944 = vmul.f32 %v1942, %v116
    %v1945 = vtanh.pop %v1944
    %v1946 = vmul.f32 %v1945, 0.5
    %v1947 = vadd.f32 %v1946, 0.5
    %v1948 = vsel %vm115, %v1945, %v1947
    %1949 = vrot.lane.b32.xlu0 %v1948, 64
    %v1950 = vpop.permute.xlu0 %1949
    %1951 = vrot.lane.b32.xlu0 %v1948, 32
    %v1952 = vpop.permute.xlu0 %1951
    %1953 = vrot.lane.b32.xlu0 %v1948, 96
    %v1954 = vpop.permute.xlu0 %1953
    %v1955 = vmul.f32 %v1948, %v1850
    %v1956 = vmul.f32 %v1952, %v1954
    %v1957 = vadd.f32 %v1955, %v1956
    %v1958 = vtanh.pop %v1957
    %v1959 = vmul.f32 %v1950, %v1958
    %v1960 = vmul.f32 %v1943, %v116
    %v1961 = vtanh.pop %v1960
    %v1962 = vmul.f32 %v1961, 0.5
    %v1963 = vadd.f32 %v1962, 0.5
    %v1964 = vsel %vm115, %v1961, %v1963
    %1965 = vrot.lane.b32.xlu0 %v1964, 64
    %v1966 = vpop.permute.xlu0 %1965
    %1967 = vrot.lane.b32.xlu0 %v1964, 32
    %v1968 = vpop.permute.xlu0 %1967
    %1969 = vrot.lane.b32.xlu0 %v1964, 96
    %v1970 = vpop.permute.xlu0 %1969
    %v1971 = vmul.f32 %v1964, %v1866
    %v1972 = vmul.f32 %v1968, %v1970
    %v1973 = vadd.f32 %v1971, %v1972
    %v1974 = vtanh.pop %v1973
    %v1975 = vmul.f32 %v1966, %v1974
    %v1976 = vld [vmem:[#allocation2 + $0x10] sm:$0xff]
    %v1977 = vld [vmem:[#allocation3 + $0x28] sm:$0xff]
    %1978 = vmatprep.subr.mxu0 %v1699
    %1979 = vmatpush1.msra.mxu0 %v1698
    %1980 = vmatprep.subr.mxu0 %v1701
    %1981 = vmatpush1.msra.mxu0 %v1700
    %1982 = vmatprep.subr.mxu0 %v1703
    %1983 = vmatpush1.msra.mxu0 %v1702
    %1984 = vmatprep.subr.mxu0 %v1705
    %1985 = vmatpush1.msra.mxu0 %v1704
    %1986 = vmatprep.subr.mxu0 %v1707
    %1987 = vmatpush1.msra.mxu0 %v1706
    %1988 = vmatprep.subr.mxu0 %v1709
    %1989 = vmatpush1.msra.mxu0 %v1708
    %1990 = vmatprep.subr.mxu0 %v1711
    %1991 = vmatpush1.msra.mxu0 %v1710
    %1992 = vmatprep.subr.mxu0 %v1713
    %1993 = vmatpush1.msra.mxu0 %v1712
    %1994 = vmatprep.subr.mxu0 %v1715
    %1995 = vmatpush1.msra.mxu0 %v1714
    %1996 = vmatprep.subr.mxu0 %v1717
    %1997 = vmatpush1.msra.mxu0 %v1716
    %1998 = vmatprep.subr.mxu0 %v1719
    %1999 = vmatpush1.msra.mxu0 %v1718
    %2000 = vmatprep.subr.mxu0 %v1721
    %2001 = vmatpush1.msra.mxu0 %v1720
    %2002 = vmatprep.subr.mxu0 %v1723
    %2003 = vmatpush1.msra.mxu0 %v1722
    %2004 = vmatprep.subr.mxu0 %v1725
    %2005 = vmatpush1.msra.mxu0 %v1724
    %2006 = vmatprep.subr.mxu0 %v1727
    %2007 = vmatpush1.msra.mxu0 %v1726
    %2008 = vmatprep.subr.mxu0 %v1729
    %2009 = vmatpush1.msra.mxu0 %v1728
    %2010 = vmatprep.subr.mxu0 %v1731
    %2011 = vmatpush1.msra.mxu0 %v1730
    %2012 = vmatprep.subr.mxu0 %v1733
    %2013 = vmatpush1.msra.mxu0 %v1732
    %2014 = vmatprep.subr.mxu0 %v1735
    %2015 = vmatpush1.msra.mxu0 %v1734
    %2016 = vmatprep.subr.mxu0 %v1737
    %2017 = vmatpush1.msra.mxu0 %v1736
    %2018 = vmatprep.subr.mxu0 %v1739
    %2019 = vmatpush1.msra.mxu0 %v1738
    %2020 = vmatprep.subr.mxu0 %v1741
    %2021 = vmatpush1.msra.mxu0 %v1740
    %2022 = vmatprep.subr.mxu0 %v1743
    %2023 = vmatpush1.msra.mxu0 %v1742
    %2024 = vmatprep.subr.mxu0 %v1745
    %2025 = vmatpush1.msra.mxu0 %v1744
    %2026 = vmatprep.subr.mxu0 %v1747
    %2027 = vmatpush1.msra.mxu0 %v1746
    %2028 = vmatprep.subr.mxu0 %v1749
    %2029 = vmatpush1.msra.mxu0 %v1748
    %2030 = vmatprep.subr.mxu0 %v1751
    %2031 = vmatpush1.msra.mxu0 %v1750
    %2032 = vmatprep.subr.mxu0 %v1753
    %2033 = vmatpush1.msra.mxu0 %v1752
    %2034 = vmatprep.subr.mxu0 %v1755
    %2035 = vmatpush1.msra.mxu0 %v1754
    %2036 = vmatprep.subr.mxu0 %v1757
    %2037 = vmatpush1.msra.mxu0 %v1756
    %2038 = vmatprep.subr.mxu0 %v1759
    %2039 = vmatpush1.msra.mxu0 %v1758
    %2040 = vmatprep.subr.mxu0 %v1761
    %2041 = vmatpush1.msra.mxu0 %v1760
    %2042 = vmatprep.mubr.f32.mxu0 %v1975
    %2043 = vmatmul.mubr.f32.gmra.mrb[0].mxu0 %v1959
    %v2044 = vpop.f32.mrb[0].mxu0
    %v2045 = vadd.f32 0.0, %v2044
    %v2046 = vpop.f32.mrb[0].mxu0
    %v2047 = vadd.f32 0.0, %v2046
    %2048 = vdwg.mxu0
    %v2049 = vadd.f32 %v1976, %v2045
    %v2050 = vadd.f32 %v1977, %v2047
    %v2051 = vmul.f32 %v2049, %v116
    %v2052 = vtanh.pop %v2051
    %v2053 = vmul.f32 %v2052, 0.5
    %v2054 = vadd.f32 %v2053, 0.5
    %v2055 = vsel %vm115, %v2052, %v2054
    %2056 = vrot.lane.b32.xlu0 %v2055, 64
    %v2057 = vpop.permute.xlu0 %2056
    %2058 = vrot.lane.b32.xlu0 %v2055, 32
    %v2059 = vpop.permute.xlu0 %2058
    %2060 = vrot.lane.b32.xlu0 %v2055, 96
    %v2061 = vpop.permute.xlu0 %2060
    %v2062 = vmul.f32 %v2055, %v1957
    %v2063 = vmul.f32 %v2059, %v2061
    %v2064 = vadd.f32 %v2062, %v2063
    %v2065 = vtanh.pop %v2064
    %v2066 = vmul.f32 %v2057, %v2065
    %v2067 = vmul.f32 %v2050, %v116
    %v2068 = vtanh.pop %v2067
    %v2069 = vmul.f32 %v2068, 0.5
    %v2070 = vadd.f32 %v2069, 0.5
    %v2071 = vsel %vm115, %v2068, %v2070
    %2072 = vrot.lane.b32.xlu0 %v2071, 64
    %v2073 = vpop.permute.xlu0 %2072
    %2074 = vrot.lane.b32.xlu0 %v2071, 32
    %v2075 = vpop.permute.xlu0 %2074
    %2076 = vrot.lane.b32.xlu0 %v2071, 96
    %v2077 = vpop.permute.xlu0 %2076
    %v2078 = vmul.f32 %v2071, %v1973
    %v2079 = vmul.f32 %v2075, %v2077
    %v2080 = vadd.f32 %v2078, %v2079
    %v2081 = vtanh.pop %v2080
    %v2082 = vmul.f32 %v2073, %v2081
    %v2083 = vld [vmem:[#allocation2 + $0x18] sm:$0xff]
    %v2084 = vld [vmem:[#allocation3 + $0x20] sm:$0xff]
    %2085 = vmatprep.subr.mxu0 %v1699
    %2086 = vmatpush1.msra.mxu0 %v1698
    %2087 = vmatprep.subr.mxu0 %v1701
    %2088 = vmatpush1.msra.mxu0 %v1700
    %2089 = vmatprep.subr.mxu0 %v1703
    %2090 = vmatpush1.msra.mxu0 %v1702
    %2091 = vmatprep.subr.mxu0 %v1705
    %2092 = vmatpush1.msra.mxu0 %v1704
    %2093 = vmatprep.subr.mxu0 %v1707
    %2094 = vmatpush1.msra.mxu0 %v1706
    %2095 = vmatprep.subr.mxu0 %v1709
    %2096 = vmatpush1.msra.mxu0 %v1708
    %2097 = vmatprep.subr.mxu0 %v1711
    %2098 = vmatpush1.msra.mxu0 %v1710
    %2099 = vmatprep.subr.mxu0 %v1713
    %2100 = vmatpush1.msra.mxu0 %v1712
    %2101 = vmatprep.subr.mxu0 %v1715
    %2102 = vmatpush1.msra.mxu0 %v1714
    %2103 = vmatprep.subr.mxu0 %v1717
    %2104 = vmatpush1.msra.mxu0 %v1716
    %2105 = vmatprep.subr.mxu0 %v1719
    %2106 = vmatpush1.msra.mxu0 %v1718
    %2107 = vmatprep.subr.mxu0 %v1721
    %2108 = vmatpush1.msra.mxu0 %v1720
    %2109 = vmatprep.subr.mxu0 %v1723
    %2110 = vmatpush1.msra.mxu0 %v1722
    %2111 = vmatprep.subr.mxu0 %v1725
    %2112 = vmatpush1.msra.mxu0 %v1724
    %2113 = vmatprep.subr.mxu0 %v1727
    %2114 = vmatpush1.msra.mxu0 %v1726
    %2115 = vmatprep.subr.mxu0 %v1729
    %2116 = vmatpush1.msra.mxu0 %v1728
    %2117 = vmatprep.subr.mxu0 %v1731
    %2118 = vmatpush1.msra.mxu0 %v1730
    %2119 = vmatprep.subr.mxu0 %v1733
    %2120 = vmatpush1.msra.mxu0 %v1732
    %2121 = vmatprep.subr.mxu0 %v1735
    %2122 = vmatpush1.msra.mxu0 %v1734
    %2123 = vmatprep.subr.mxu0 %v1737
    %2124 = vmatpush1.msra.mxu0 %v1736
    %2125 = vmatprep.subr.mxu0 %v1739
    %2126 = vmatpush1.msra.mxu0 %v1738
    %2127 = vmatprep.subr.mxu0 %v1741
    %2128 = vmatpush1.msra.mxu0 %v1740
    %2129 = vmatprep.subr.mxu0 %v1743
    %2130 = vmatpush1.msra.mxu0 %v1742
    %2131 = vmatprep.subr.mxu0 %v1745
    %2132 = vmatpush1.msra.mxu0 %v1744
    %2133 = vmatprep.subr.mxu0 %v1747
    %2134 = vmatpush1.msra.mxu0 %v1746
    %2135 = vmatprep.subr.mxu0 %v1749
    %2136 = vmatpush1.msra.mxu0 %v1748
    %2137 = vmatprep.subr.mxu0 %v1751
    %2138 = vmatpush1.msra.mxu0 %v1750
    %2139 = vmatprep.subr.mxu0 %v1753
    %2140 = vmatpush1.msra.mxu0 %v1752
    %2141 = vmatprep.subr.mxu0 %v1755
    %2142 = vmatpush1.msra.mxu0 %v1754
    %2143 = vmatprep.subr.mxu0 %v1757
    %2144 = vmatpush1.msra.mxu0 %v1756
    %2145 = vmatprep.subr.mxu0 %v1759
    %2146 = vmatpush1.msra.mxu0 %v1758
    %2147 = vmatprep.subr.mxu0 %v1761
    %2148 = vmatpush1.msra.mxu0 %v1760
    %2149 = vmatprep.mubr.f32.mxu0 %v2082
    %2150 = vmatmul.mubr.f32.gmra.mrb[0].mxu0 %v2066
    %v2151 = vpop.f32.mrb[0].mxu0
    %v2152 = vadd.f32 0.0, %v2151
    %v2153 = vpop.f32.mrb[0].mxu0
    %v2154 = vadd.f32 0.0, %v2153
    %2155 = vdwg.mxu0
    %v2156 = vadd.f32 %v2083, %v2152
    %v2157 = vadd.f32 %v2084, %v2154
    %v2158 = vmul.f32 %v2156, %v116
    %v2159 = vtanh.pop %v2158
    %v2160 = vmul.f32 %v2159, 0.5
    %v2161 = vadd.f32 %v2160, 0.5
    %v2162 = vsel %vm115, %v2159, %v2161
    %2163 = vrot.lane.b32.xlu0 %v2162, 64
    %v2164 = vpop.permute.xlu0 %2163
    %2165 = vrot.lane.b32.xlu0 %v2162, 32
    %v2166 = vpop.permute.xlu0 %2165
    %2167 = vrot.lane.b32.xlu0 %v2162, 96
    %v2168 = vpop.permute.xlu0 %2167
    %v2169 = vmul.f32 %v2162, %v2064
    %v2170 = vmul.f32 %v2166, %v2168
    %v2171 = vadd.f32 %v2169, %v2170
    %v2172 = vtanh.pop %v2171
    %v2173 = vmul.f32 %v2164, %v2172
    %v2174 = vmul.f32 %v2157, %v116
    %v2175 = vtanh.pop %v2174
    %v2176 = vmul.f32 %v2175, 0.5
    %v2177 = vadd.f32 %v2176, 0.5
    %v2178 = vsel %vm115, %v2175, %v2177
    %2179 = vrot.lane.b32.xlu0 %v2178, 64
    %v2180 = vpop.permute.xlu0 %2179
    %2181 = vrot.lane.b32.xlu0 %v2178, 32
    %v2182 = vpop.permute.xlu0 %2181
    %2183 = vrot.lane.b32.xlu0 %v2178, 96
    %v2184 = vpop.permute.xlu0 %2183
    %v2185 = vmul.f32 %v2178, %v2080
    %v2186 = vmul.f32 %v2182, %v2184
    %v2187 = vadd.f32 %v2185, %v2186
    %v2188 = vtanh.pop %v2187
    %v2189 = vmul.f32 %v2180, %v2188
    %v2190 = vld [vmem:[#allocation2 + $0x20] sm:$0xff]
    %v2191 = vld [vmem:[#allocation3 + $0x18] sm:$0xff]
    %2192 = vmatprep.subr.mxu0 %v1699
    %2193 = vmatpush1.msra.mxu0 %v1698
    %2194 = vmatprep.subr.mxu0 %v1701
    %2195 = vmatpush1.msra.mxu0 %v1700
    %2196 = vmatprep.subr.mxu0 %v1703
    %2197 = vmatpush1.msra.mxu0 %v1702
    %2198 = vmatprep.subr.mxu0 %v1705
    %2199 = vmatpush1.msra.mxu0 %v1704
    %2200 = vmatprep.subr.mxu0 %v1707
    %2201 = vmatpush1.msra.mxu0 %v1706
    %2202 = vmatprep.subr.mxu0 %v1709
    %2203 = vmatpush1.msra.mxu0 %v1708
    %2204 = vmatprep.subr.mxu0 %v1711
    %2205 = vmatpush1.msra.mxu0 %v1710
    %2206 = vmatprep.subr.mxu0 %v1713
    %2207 = vmatpush1.msra.mxu0 %v1712
    %2208 = vmatprep.subr.mxu0 %v1715
    %2209 = vmatpush1.msra.mxu0 %v1714
    %2210 = vmatprep.subr.mxu0 %v1717
    %2211 = vmatpush1.msra.mxu0 %v1716
    %2212 = vmatprep.subr.mxu0 %v1719
    %2213 = vmatpush1.msra.mxu0 %v1718
    %2214 = vmatprep.subr.mxu0 %v1721
    %2215 = vmatpush1.msra.mxu0 %v1720
    %2216 = vmatprep.subr.mxu0 %v1723
    %2217 = vmatpush1.msra.mxu0 %v1722
    %2218 = vmatprep.subr.mxu0 %v1725
    %2219 = vmatpush1.msra.mxu0 %v1724
    %2220 = vmatprep.subr.mxu0 %v1727
    %2221 = vmatpush1.msra.mxu0 %v1726
    %2222 = vmatprep.subr.mxu0 %v1729
    %2223 = vmatpush1.msra.mxu0 %v1728
    %2224 = vmatprep.subr.mxu0 %v1731
    %2225 = vmatpush1.msra.mxu0 %v1730
    %2226 = vmatprep.subr.mxu0 %v1733
    %2227 = vmatpush1.msra.mxu0 %v1732
    %2228 = vmatprep.subr.mxu0 %v1735
    %2229 = vmatpush1.msra.mxu0 %v1734
    %2230 = vmatprep.subr.mxu0 %v1737
    %2231 = vmatpush1.msra.mxu0 %v1736
    %2232 = vmatprep.subr.mxu0 %v1739
    %2233 = vmatpush1.msra.mxu0 %v1738
    %2234 = vmatprep.subr.mxu0 %v1741
    %2235 = vmatpush1.msra.mxu0 %v1740
    %2236 = vmatprep.subr.mxu0 %v1743
    %2237 = vmatpush1.msra.mxu0 %v1742
    %2238 = vmatprep.subr.mxu0 %v1745
    %2239 = vmatpush1.msra.mxu0 %v1744
    %2240 = vmatprep.subr.mxu0 %v1747
    %2241 = vmatpush1.msra.mxu0 %v1746
    %2242 = vmatprep.subr.mxu0 %v1749
    %2243 = vmatpush1.msra.mxu0 %v1748
    %2244 = vmatprep.subr.mxu0 %v1751
    %2245 = vmatpush1.msra.mxu0 %v1750
    %2246 = vmatprep.subr.mxu0 %v1753
    %2247 = vmatpush1.msra.mxu0 %v1752
    %2248 = vmatprep.subr.mxu0 %v1755
    %2249 = vmatpush1.msra.mxu0 %v1754
    %2250 = vmatprep.subr.mxu0 %v1757
    %2251 = vmatpush1.msra.mxu0 %v1756
    %2252 = vmatprep.subr.mxu0 %v1759
    %2253 = vmatpush1.msra.mxu0 %v1758
    %2254 = vmatprep.subr.mxu0 %v1761
    %2255 = vmatpush1.msra.mxu0 %v1760
    %2256 = vmatprep.mubr.f32.mxu0 %v2189
    %2257 = vmatmul.mubr.f32.gmra.mrb[0].mxu0 %v2173
    %v2258 = vpop.f32.mrb[0].mxu0
    %v2259 = vadd.f32 0.0, %v2258
    %v2260 = vpop.f32.mrb[0].mxu0
    %v2261 = vadd.f32 0.0, %v2260
    %2262 = vdwg.mxu0
    %v2263 = vadd.f32 %v2190, %v2259
    %v2264 = vadd.f32 %v2191, %v2261
    %v2265 = vmul.f32 %v2263, %v116
    %v2266 = vtanh.pop %v2265
    %v2267 = vmul.f32 %v2266, 0.5
    %v2268 = vadd.f32 %v2267, 0.5
    %v2269 = vsel %vm115, %v2266, %v2268
    %2270 = vrot.lane.b32.xlu0 %v2269, 64
    %v2271 = vpop.permute.xlu0 %2270
    %2272 = vrot.lane.b32.xlu0 %v2269, 32
    %v2273 = vpop.permute.xlu0 %2272
    %2274 = vrot.lane.b32.xlu0 %v2269, 96
    %v2275 = vpop.permute.xlu0 %2274
    %v2276 = vmul.f32 %v2269, %v2171
    %v2277 = vmul.f32 %v2273, %v2275
    %v2278 = vadd.f32 %v2276, %v2277
    %v2279 = vtanh.pop %v2278
    %v2280 = vmul.f32 %v2271, %v2279
    %v2281 = vmul.f32 %v2264, %v116
    %v2282 = vtanh.pop %v2281
    %v2283 = vmul.f32 %v2282, 0.5
    %v2284 = vadd.f32 %v2283, 0.5
    %v2285 = vsel %vm115, %v2282, %v2284
    %2286 = vrot.lane.b32.xlu0 %v2285, 64
    %v2287 = vpop.permute.xlu0 %2286
    %2288 = vrot.lane.b32.xlu0 %v2285, 32
    %v2289 = vpop.permute.xlu0 %2288
    %2290 = vrot.lane.b32.xlu0 %v2285, 96
    %v2291 = vpop.permute.xlu0 %2290
    %v2292 = vmul.f32 %v2285, %v2187
    %v2293 = vmul.f32 %v2289, %v2291
    %v2294 = vadd.f32 %v2292, %v2293
    %v2295 = vtanh.pop %v2294
    %v2296 = vmul.f32 %v2287, %v2295
    %v2297 = vld [vmem:[#allocation2 + $0x28] sm:$0xff]
    %v2298 = vld [vmem:[#allocation3 + $0x10] sm:$0xff]
    %2299 = vmatprep.subr.mxu0 %v1699
    %2300 = vmatpush1.msra.mxu0 %v1698
    %2301 = vmatprep.subr.mxu0 %v1701
    %2302 = vmatpush1.msra.mxu0 %v1700
    %2303 = vmatprep.subr.mxu0 %v1703
    %2304 = vmatpush1.msra.mxu0 %v1702
    %2305 = vmatprep.subr.mxu0 %v1705
    %2306 = vmatpush1.msra.mxu0 %v1704
    %2307 = vmatprep.subr.mxu0 %v1707
    %2308 = vmatpush1.msra.mxu0 %v1706
    %2309 = vmatprep.subr.mxu0 %v1709
    %2310 = vmatpush1.msra.mxu0 %v1708
    %2311 = vmatprep.subr.mxu0 %v1711
    %2312 = vmatpush1.msra.mxu0 %v1710
    %2313 = vmatprep.subr.mxu0 %v1713
    %2314 = vmatpush1.msra.mxu0 %v1712
    %2315 = vmatprep.subr.mxu0 %v1715
    %2316 = vmatpush1.msra.mxu0 %v1714
    %2317 = vmatprep.subr.mxu0 %v1717
    %2318 = vmatpush1.msra.mxu0 %v1716
    %2319 = vmatprep.subr.mxu0 %v1719
    %2320 = vmatpush1.msra.mxu0 %v1718
    %2321 = vmatprep.subr.mxu0 %v1721
    %2322 = vmatpush1.msra.mxu0 %v1720
    %2323 = vmatprep.subr.mxu0 %v1723
    %2324 = vmatpush1.msra.mxu0 %v1722
    %2325 = vmatprep.subr.mxu0 %v1725
    %2326 = vmatpush1.msra.mxu0 %v1724
    %2327 = vmatprep.subr.mxu0 %v1727
    %2328 = vmatpush1.msra.mxu0 %v1726
    %2329 = vmatprep.subr.mxu0 %v1729
    %2330 = vmatpush1.msra.mxu0 %v1728
    %2331 = vmatprep.subr.mxu0 %v1731
    %2332 = vmatpush1.msra.mxu0 %v1730
    %2333 = vmatprep.subr.mxu0 %v1733
    %2334 = vmatpush1.msra.mxu0 %v1732
    %2335 = vmatprep.subr.mxu0 %v1735
    %2336 = vmatpush1.msra.mxu0 %v1734
    %2337 = vmatprep.subr.mxu0 %v1737
    %2338 = vmatpush1.msra.mxu0 %v1736
    %2339 = vmatprep.subr.mxu0 %v1739
    %2340 = vmatpush1.msra.mxu0 %v1738
    %2341 = vmatprep.subr.mxu0 %v1741
    %2342 = vmatpush1.msra.mxu0 %v1740
    %2343 = vmatprep.subr.mxu0 %v1743
    %2344 = vmatpush1.msra.mxu0 %v1742
    %2345 = vmatprep.subr.mxu0 %v1745
    %2346 = vmatpush1.msra.mxu0 %v1744
    %2347 = vmatprep.subr.mxu0 %v1747
    %2348 = vmatpush1.msra.mxu0 %v1746
    %2349 = vmatprep.subr.mxu0 %v1749
    %2350 = vmatpush1.msra.mxu0 %v1748
    %2351 = vmatprep.subr.mxu0 %v1751
    %2352 = vmatpush1.msra.mxu0 %v1750
    %2353 = vmatprep.subr.mxu0 %v1753
    %2354 = vmatpush1.msra.mxu0 %v1752
    %2355 = vmatprep.subr.mxu0 %v1755
    %2356 = vmatpush1.msra.mxu0 %v1754
    %2357 = vmatprep.subr.mxu0 %v1757
    %2358 = vmatpush1.msra.mxu0 %v1756
    %2359 = vmatprep.subr.mxu0 %v1759
    %2360 = vmatpush1.msra.mxu0 %v1758
    %2361 = vmatprep.subr.mxu0 %v1761
    %2362 = vmatpush1.msra.mxu0 %v1760
    %2363 = vmatprep.mubr.f32.mxu0 %v2296
    %2364 = vmatmul.mubr.f32.gmra.mrb[0].mxu0 %v2280
    %v2365 = vpop.f32.mrb[0].mxu0
    %v2366 = vadd.f32 0.0, %v2365
    %v2367 = vpop.f32.mrb[0].mxu0
    %v2368 = vadd.f32 0.0, %v2367
    %2369 = vdwg.mxu0
    %v2370 = vadd.f32 %v2297, %v2366
    %v2371 = vadd.f32 %v2298, %v2368
    %v2372 = vmul.f32 %v2370, %v116
    %v2373 = vtanh.pop %v2372
    %v2374 = vmul.f32 %v2373, 0.5
    %v2375 = vadd.f32 %v2374, 0.5
    %v2376 = vsel %vm115, %v2373, %v2375
    %2377 = vrot.lane.b32.xlu0 %v2376, 64
    %v2378 = vpop.permute.xlu0 %2377
    %2379 = vrot.lane.b32.xlu0 %v2376, 32
    %v2380 = vpop.permute.xlu0 %2379
    %2381 = vrot.lane.b32.xlu0 %v2376, 96
    %v2382 = vpop.permute.xlu0 %2381
    %v2383 = vmul.f32 %v2376, %v2278
    %v2384 = vmul.f32 %v2380, %v2382
    %v2385 = vadd.f32 %v2383, %v2384
    %v2386 = vtanh.pop %v2385
    %v2387 = vmul.f32 %v2378, %v2386
    %v2388 = vmul.f32 %v2371, %v116
    %v2389 = vtanh.pop %v2388
    %v2390 = vmul.f32 %v2389, 0.5
    %v2391 = vadd.f32 %v2390, 0.5
    %v2392 = vsel %vm115, %v2389, %v2391
    %2393 = vrot.lane.b32.xlu0 %v2392, 64
    %v2394 = vpop.permute.xlu0 %2393
    %2395 = vrot.lane.b32.xlu0 %v2392, 32
    %v2396 = vpop.permute.xlu0 %2395
    %2397 = vrot.lane.b32.xlu0 %v2392, 96
    %v2398 = vpop.permute.xlu0 %2397
    %v2399 = vmul.f32 %v2392, %v2294
    %v2400 = vmul.f32 %v2396, %v2398
    %v2401 = vadd.f32 %v2399, %v2400
    %v2402 = vtanh.pop %v2401
    %v2403 = vmul.f32 %v2394, %v2402
    %v2404 = vld [vmem:[#allocation2 + $0x30] sm:$0xff]
    %v2405 = vld [vmem:[#allocation3 + $0x8] sm:$0xff]
    %2406 = vmatprep.subr.mxu0 %v1699
    %2407 = vmatpush1.msra.mxu0 %v1698
    %2408 = vmatprep.subr.mxu0 %v1701
    %2409 = vmatpush1.msra.mxu0 %v1700
    %2410 = vmatprep.subr.mxu0 %v1703
    %2411 = vmatpush1.msra.mxu0 %v1702
    %2412 = vmatprep.subr.mxu0 %v1705
    %2413 = vmatpush1.msra.mxu0 %v1704
    %2414 = vmatprep.subr.mxu0 %v1707
    %2415 = vmatpush1.msra.mxu0 %v1706
    %2416 = vmatprep.subr.mxu0 %v1709
    %2417 = vmatpush1.msra.mxu0 %v1708
    %2418 = vmatprep.subr.mxu0 %v1711
    %2419 = vmatpush1.msra.mxu0 %v1710
    %2420 = vmatprep.subr.mxu0 %v1713
    %2421 = vmatpush1.msra.mxu0 %v1712
    %2422 = vmatprep.subr.mxu0 %v1715
    %2423 = vmatpush1.msra.mxu0 %v1714
    %2424 = vmatprep.subr.mxu0 %v1717
    %2425 = vmatpush1.msra.mxu0 %v1716
    %2426 = vmatprep.subr.mxu0 %v1719
    %2427 = vmatpush1.msra.mxu0 %v1718
    %2428 = vmatprep.subr.mxu0 %v1721
    %2429 = vmatpush1.msra.mxu0 %v1720
    %2430 = vmatprep.subr.mxu0 %v1723
    %2431 = vmatpush1.msra.mxu0 %v1722
    %2432 = vmatprep.subr.mxu0 %v1725
    %2433 = vmatpush1.msra.mxu0 %v1724
    %2434 = vmatprep.subr.mxu0 %v1727
    %2435 = vmatpush1.msra.mxu0 %v1726
    %2436 = vmatprep.subr.mxu0 %v1729
    %2437 = vmatpush1.msra.mxu0 %v1728
    %2438 = vmatprep.subr.mxu0 %v1731
    %2439 = vmatpush1.msra.mxu0 %v1730
    %2440 = vmatprep.subr.mxu0 %v1733
    %2441 = vmatpush1.msra.mxu0 %v1732
    %2442 = vmatprep.subr.mxu0 %v1735
    %2443 = vmatpush1.msra.mxu0 %v1734
    %2444 = vmatprep.subr.mxu0 %v1737
    %2445 = vmatpush1.msra.mxu0 %v1736
    %2446 = vmatprep.subr.mxu0 %v1739
    %2447 = vmatpush1.msra.mxu0 %v1738
    %2448 = vmatprep.subr.mxu0 %v1741
    %2449 = vmatpush1.msra.mxu0 %v1740
    %2450 = vmatprep.subr.mxu0 %v1743
    %2451 = vmatpush1.msra.mxu0 %v1742
    %2452 = vmatprep.subr.mxu0 %v1745
    %2453 = vmatpush1.msra.mxu0 %v1744
    %2454 = vmatprep.subr.mxu0 %v1747
    %2455 = vmatpush1.msra.mxu0 %v1746
    %2456 = vmatprep.subr.mxu0 %v1749
    %2457 = vmatpush1.msra.mxu0 %v1748
    %2458 = vmatprep.subr.mxu0 %v1751
    %2459 = vmatpush1.msra.mxu0 %v1750
    %2460 = vmatprep.subr.mxu0 %v1753
    %2461 = vmatpush1.msra.mxu0 %v1752
    %2462 = vmatprep.subr.mxu0 %v1755
    %2463 = vmatpush1.msra.mxu0 %v1754
    %2464 = vmatprep.subr.mxu0 %v1757
    %2465 = vmatpush1.msra.mxu0 %v1756
    %2466 = vmatprep.subr.mxu0 %v1759
    %2467 = vmatpush1.msra.mxu0 %v1758
    %2468 = vmatprep.subr.mxu0 %v1761
    %2469 = vmatpush1.msra.mxu0 %v1760
    %2470 = vmatprep.mubr.f32.mxu0 %v2403
    %2471 = vmatmul.mubr.f32.gmra.mrb[0].mxu0 %v2387
    %v2472 = vpop.f32.mrb[0].mxu0
    %v2473 = vadd.f32 0.0, %v2472
    %v2474 = vpop.f32.mrb[0].mxu0
    %v2475 = vadd.f32 0.0, %v2474
    %2476 = vdwg.mxu0
    %v2477 = vadd.f32 %v2404, %v2473
    %v2478 = vadd.f32 %v2405, %v2475
    %v2479 = vmul.f32 %v2477, %v116
    %v2480 = vtanh.pop %v2479
    %v2481 = vmul.f32 %v2480, 0.5
    %v2482 = vadd.f32 %v2481, 0.5
    %v2483 = vsel %vm115, %v2480, %v2482
    %2484 = vrot.lane.b32.xlu0 %v2483, 64
    %v2485 = vpop.permute.xlu0 %2484
    %2486 = vrot.lane.b32.xlu0 %v2483, 32
    %v2487 = vpop.permute.xlu0 %2486
    %2488 = vrot.lane.b32.xlu0 %v2483, 96
    %v2489 = vpop.permute.xlu0 %2488
    %v2490 = vmul.f32 %v2483, %v2385
    %v2491 = vmul.f32 %v2487, %v2489
    %v2492 = vadd.f32 %v2490, %v2491
    %v2493 = vtanh.pop %v2492
    %v2494 = vmul.f32 %v2485, %v2493
    %v2495 = vmul.f32 %v2478, %v116
    %v2496 = vtanh.pop %v2495
    %v2497 = vmul.f32 %v2496, 0.5
    %v2498 = vadd.f32 %v2497, 0.5
    %v2499 = vsel %vm115, %v2496, %v2498
    %2500 = vrot.lane.b32.xlu0 %v2499, 64
    %v2501 = vpop.permute.xlu0 %2500
    %2502 = vrot.lane.b32.xlu0 %v2499, 32
    %v2503 = vpop.permute.xlu0 %2502
    %2504 = vrot.lane.b32.xlu0 %v2499, 96
    %v2505 = vpop.permute.xlu0 %2504
    %v2506 = vmul.f32 %v2499, %v2401
    %v2507 = vmul.f32 %v2503, %v2505
    %v2508 = vadd.f32 %v2506, %v2507
    %v2509 = vtanh.pop %v2508
    %v2510 = vmul.f32 %v2501, %v2509
    %v2511 = vld [vmem:[#allocation2 + $0x38] sm:$0xff]
    %v2512 = vld [vmem:[#allocation3] sm:$0xff]
    %2513 = vmatprep.subr.mxu0 %v1699
    %2514 = vmatpush1.msra.mxu0 %v1698
    %2515 = vmatprep.subr.mxu0 %v1701
    %2516 = vmatpush1.msra.mxu0 %v1700
    %2517 = vmatprep.subr.mxu0 %v1703
    %2518 = vmatpush1.msra.mxu0 %v1702
    %2519 = vmatprep.subr.mxu0 %v1705
    %2520 = vmatpush1.msra.mxu0 %v1704
    %2521 = vmatprep.subr.mxu0 %v1707
    %2522 = vmatpush1.msra.mxu0 %v1706
    %2523 = vmatprep.subr.mxu0 %v1709
    %2524 = vmatpush1.msra.mxu0 %v1708
    %2525 = vmatprep.subr.mxu0 %v1711
    %2526 = vmatpush1.msra.mxu0 %v1710
    %2527 = vmatprep.subr.mxu0 %v1713
    %2528 = vmatpush1.msra.mxu0 %v1712
    %2529 = vmatprep.subr.mxu0 %v1715
    %2530 = vmatpush1.msra.mxu0 %v1714
    %2531 = vmatprep.subr.mxu0 %v1717
    %2532 = vmatpush1.msra.mxu0 %v1716
    %2533 = vmatprep.subr.mxu0 %v1719
    %2534 = vmatpush1.msra.mxu0 %v1718
    %2535 = vmatprep.subr.mxu0 %v1721
    %2536 = vmatpush1.msra.mxu0 %v1720
    %2537 = vmatprep.subr.mxu0 %v1723
    %2538 = vmatpush1.msra.mxu0 %v1722
    %2539 = vmatprep.subr.mxu0 %v1725
    %2540 = vmatpush1.msra.mxu0 %v1724
    %2541 = vmatprep.subr.mxu0 %v1727
    %2542 = vmatpush1.msra.mxu0 %v1726
    %2543 = vmatprep.subr.mxu0 %v1729
    %2544 = vmatpush1.msra.mxu0 %v1728
    %2545 = vmatprep.subr.mxu0 %v1731
    %2546 = vmatpush1.msra.mxu0 %v1730
    %2547 = vmatprep.subr.mxu0 %v1733
    %2548 = vmatpush1.msra.mxu0 %v1732
    %2549 = vmatprep.subr.mxu0 %v1735
    %2550 = vmatpush1.msra.mxu0 %v1734
    %2551 = vmatprep.subr.mxu0 %v1737
    %2552 = vmatpush1.msra.mxu0 %v1736
    %2553 = vmatprep.subr.mxu0 %v1739
    %2554 = vmatpush1.msra.mxu0 %v1738
    %2555 = vmatprep.subr.mxu0 %v1741
    %2556 = vmatpush1.msra.mxu0 %v1740
    %2557 = vmatprep.subr.mxu0 %v1743
    %2558 = vmatpush1.msra.mxu0 %v1742
    %2559 = vmatprep.subr.mxu0 %v1745
    %2560 = vmatpush1.msra.mxu0 %v1744
    %2561 = vmatprep.subr.mxu0 %v1747
    %2562 = vmatpush1.msra.mxu0 %v1746
    %2563 = vmatprep.subr.mxu0 %v1749
    %2564 = vmatpush1.msra.mxu0 %v1748
    %2565 = vmatprep.subr.mxu0 %v1751
    %2566 = vmatpush1.msra.mxu0 %v1750
    %2567 = vmatprep.subr.mxu0 %v1753
    %2568 = vmatpush1.msra.mxu0 %v1752
    %2569 = vmatprep.subr.mxu0 %v1755
    %2570 = vmatpush1.msra.mxu0 %v1754
    %2571 = vmatprep.subr.mxu0 %v1757
    %2572 = vmatpush1.msra.mxu0 %v1756
    %2573 = vmatprep.subr.mxu0 %v1759
    %2574 = vmatpush1.msra.mxu0 %v1758
    %2575 = vmatprep.subr.mxu0 %v1761
    %2576 = vmatpush1.msra.mxu0 %v1760
    %2577 = vmatprep.mubr.f32.mxu0 %v2510
    %2578 = vmatmul.mubr.f32.gmra.mrb[0].mxu0 %v2494
    %v2579 = vpop.f32.mrb[0].mxu0
    %v2580 = vadd.f32 0.0, %v2579
    %v2581 = vpop.f32.mrb[0].mxu0
    %v2582 = vadd.f32 0.0, %v2581
    %2583 = vdwg.mxu0
    %v2584 = vadd.f32 %v2511, %v2580
    %v2585 = vadd.f32 %v2512, %v2582
    %v2586 = vmul.f32 %v2584, %v116
    %v2587 = vtanh.pop %v2586
    %v2588 = vmul.f32 %v2587, 0.5
    %v2589 = vadd.f32 %v2588, 0.5
    %v2590 = vsel %vm115, %v2587, %v2589
    %2591 = vrot.lane.b32.xlu0 %v2590, 64
    %v2592 = vpop.permute.xlu0 %2591
    %2593 = vrot.lane.b32.xlu0 %v2590, 32
    %v2594 = vpop.permute.xlu0 %2593
    %2595 = vrot.lane.b32.xlu0 %v2590, 96
    %v2596 = vpop.permute.xlu0 %2595
    %v2597 = vmul.f32 %v2590, %v2492
    %v2598 = vmul.f32 %v2594, %v2596
    %v2599 = vadd.f32 %v2597, %v2598
    %v2600 = vtanh.pop %v2599
    %v2601 = vmul.f32 %v2592, %v2600
    %v2602 = vmul.f32 %v2585, %v116
    %v2603 = vtanh.pop %v2602
    %v2604 = vmul.f32 %v2603, 0.5
    %v2605 = vadd.f32 %v2604, 0.5
    %v2606 = vsel %vm115, %v2603, %v2605
    %2607 = vrot.lane.b32.xlu0 %v2606, 64
    %v2608 = vpop.permute.xlu0 %2607
    %2609 = vrot.lane.b32.xlu0 %v2606, 32
    %v2610 = vpop.permute.xlu0 %2609
    %2611 = vrot.lane.b32.xlu0 %v2606, 96
    %v2612 = vpop.permute.xlu0 %2611
    %v2613 = vmul.f32 %v2606, %v2508
    %v2614 = vmul.f32 %v2610, %v2612
    %v2615 = vadd.f32 %v2613, %v2614
    %v2616 = vtanh.pop %v2615
    %v2617 = vmul.f32 %v2608, %v2616
    %v2618 = vld [vmem:[#allocation13] sm:$0xff]
    %v2619 = vld [vmem:[#allocation13 + $0x8] sm:$0xff]
    %v2620 = vld [vmem:[#allocation13 + $0x10] sm:$0xff]
    %v2621 = vld [vmem:[#allocation13 + $0x18] sm:$0xff]
    %v2622 = vld [vmem:[#allocation13 + $0x20] sm:$0xff]
    %v2623 = vld [vmem:[#allocation13 + $0x28] sm:$0xff]
    %v2624 = vld [vmem:[#allocation13 + $0x30] sm:$0xff]
    %v2625 = vld [vmem:[#allocation13 + $0x38] sm:$0xff]
    %v2626 = vld [vmem:[#allocation13 + $0x40] sm:$0xff]
    %v2627 = vld [vmem:[#allocation13 + $0x48] sm:$0xff]
    %v2628 = vld [vmem:[#allocation13 + $0x50] sm:$0xff]
    %v2629 = vld [vmem:[#allocation13 + $0x58] sm:$0xff]
    %v2630 = vld [vmem:[#allocation13 + $0x60] sm:$0xff]
    %v2631 = vld [vmem:[#allocation13 + $0x68] sm:$0xff]
    %v2632 = vld [vmem:[#allocation13 + $0x70] sm:$0xff]
    %v2633 = vld [vmem:[#allocation13 + $0x78] sm:$0xff]
    %v2634 = vld [vmem:[#allocation13 + $0x80] sm:$0xff]
    %v2635 = vld [vmem:[#allocation13 + $0x88] sm:$0xff]
    %v2636 = vld [vmem:[#allocation13 + $0x90] sm:$0xff]
    %v2637 = vld [vmem:[#allocation13 + $0x98] sm:$0xff]
    %v2638 = vld [vmem:[#allocation13 + $0xa0] sm:$0xff]
    %v2639 = vld [vmem:[#allocation13 + $0xa8] sm:$0xff]
    %v2640 = vld [vmem:[#allocation13 + $0xb0] sm:$0xff]
    %v2641 = vld [vmem:[#allocation13 + $0xb8] sm:$0xff]
    %v2642 = vld [vmem:[#allocation13 + $0xc0] sm:$0xff]
    %v2643 = vld [vmem:[#allocation13 + $0xc8] sm:$0xff]
    %v2644 = vld [vmem:[#allocation13 + $0xd0] sm:$0xff]
    %v2645 = vld [vmem:[#allocation13 + $0xd8] sm:$0xff]
    %v2646 = vld [vmem:[#allocation13 + $0xe0] sm:$0xff]
    %v2647 = vld [vmem:[#allocation13 + $0xe8] sm:$0xff]
    %v2648 = vld [vmem:[#allocation13 + $0xf0] sm:$0xff]
    %v2649 = vld [vmem:[#allocation13 + $0xf8] sm:$0xff]
    %v2650 = vld [vmem:[%s12] sm:$0x1]
    %v2652 = vlaneseq
    %v2653 = vshrl.u32 %v2652, 7
    %v2654 = vsub.s32 0, %v2653
    %v2655 = vrot.slane %v2650, %v2654
    %2657 = vmatprep.subr.mxu0 0.0
    %2658 = vmatpush1.msra.mxu0 %v2618
    %2659 = vmatprep.subr.mxu0 0.0
    %2660 = vmatpush1.msra.mxu0 %v2619
    %2661 = vmatprep.subr.mxu0 0.0
    %2662 = vmatpush1.msra.mxu0 %v2620
    %2663 = vmatprep.subr.mxu0 0.0
    %2664 = vmatpush1.msra.mxu0 %v2621
    %2665 = vmatprep.subr.mxu0 0.0
    %2666 = vmatpush1.msra.mxu0 %v2622
    %2667 = vmatprep.subr.mxu0 0.0
    %2668 = vmatpush1.msra.mxu0 %v2623
    %2669 = vmatprep.subr.mxu0 0.0
    %2670 = vmatpush1.msra.mxu0 %v2624
    %2671 = vmatprep.subr.mxu0 0.0
    %2672 = vmatpush1.msra.mxu0 %v2625
    %2673 = vmatprep.subr.mxu0 0.0
    %2674 = vmatpush1.msra.mxu0 %v2626
    %2675 = vmatprep.subr.mxu0 0.0
    %2676 = vmatpush1.msra.mxu0 %v2627
    %2677 = vmatprep.subr.mxu0 0.0
    %2678 = vmatpush1.msra.mxu0 %v2628
    %2679 = vmatprep.subr.mxu0 0.0
    %2680 = vmatpush1.msra.mxu0 %v2629
    %2681 = vmatprep.subr.mxu0 0.0
    %2682 = vmatpush1.msra.mxu0 %v2630
    %2683 = vmatprep.subr.mxu0 0.0
    %2684 = vmatpush1.msra.mxu0 %v2631
    %2685 = vmatprep.subr.mxu0 0.0
    %2686 = vmatpush1.msra.mxu0 %v2632
    %2687 = vmatprep.subr.mxu0 0.0
    %2688 = vmatpush1.msra.mxu0 %v2633
    %2689 = vmatprep.subr.mxu0 0.0
    %2690 = vmatpush1.msra.mxu0 %v2634
    %2691 = vmatprep.subr.mxu0 0.0
    %2692 = vmatpush1.msra.mxu0 %v2635
    %2693 = vmatprep.subr.mxu0 0.0
    %2694 = vmatpush1.msra.mxu0 %v2636
    %2695 = vmatprep.subr.mxu0 0.0
    %2696 = vmatpush1.msra.mxu0 %v2637
    %2697 = vmatprep.subr.mxu0 0.0
    %2698 = vmatpush1.msra.mxu0 %v2638
    %2699 = vmatprep.subr.mxu0 0.0
    %2700 = vmatpush1.msra.mxu0 %v2639
    %2701 = vmatprep.subr.mxu0 0.0
    %2702 = vmatpush1.msra.mxu0 %v2640
    %2703 = vmatprep.subr.mxu0 0.0
    %2704 = vmatpush1.msra.mxu0 %v2641
    %2705 = vmatprep.subr.mxu0 0.0
    %2706 = vmatpush1.msra.mxu0 %v2642
    %2707 = vmatprep.subr.mxu0 0.0
    %2708 = vmatpush1.msra.mxu0 %v2643
    %2709 = vmatprep.subr.mxu0 0.0
    %2710 = vmatpush1.msra.mxu0 %v2644
    %2711 = vmatprep.subr.mxu0 0.0
    %2712 = vmatpush1.msra.mxu0 %v2645
    %2713 = vmatprep.subr.mxu0 0.0
    %2714 = vmatpush1.msra.mxu0 %v2646
    %2715 = vmatprep.subr.mxu0 0.0
    %2716 = vmatpush1.msra.mxu0 %v2647
    %2717 = vmatprep.subr.mxu0 0.0
    %2718 = vmatpush1.msra.mxu0 %v2648
    %2719 = vmatprep.subr.mxu0 0.0
    %2720 = vmatpush1.msra.mxu0 %v2649
    %2721 = vmatprep.mubr.f32.mxu0 %v2617
    %2722 = vmatmul.mubr.f32.gmra.mrb[0].mxu0 %v2601
    %v2723 = vpop.f32.mrb[0].mxu0
    %v2724 = vadd.f32 %v2655, %v2723
    %v2725 = vpop.f32.mrb[0].mxu0
    %2726 = vdwg.mxu0
    %v2727 = vmax.f32 %v2724, 0.0
    %2728 = vst [vmem:[#allocation14] sm:$0xff] %v2727
    // Predicated region
    $region74: #{tpu_custom_call.1} parent=1 // pred_check
      _
    $region75: #{tpu_custom_call.1} parent=1 // pred_check_branch
      %2730 = sbr.rel (0) target = $region77
    $region76: #{tpu_custom_call.1} parent=1 // pred_region
      %s2732 = ssub.s32 128, 128
      %2733 = vsyncadd [#allocation7], %s2732
      %s2735 = sshll.u32 [#allocation14], 4
      %s2736 = int_to_ptr.vmem [resolvable:$true] %s2735
      %2738 = dma.vmem_to_hbm [thread:$0]  %s2736, 128, %s13, [#allocation7]
    $region77: #{tpu_custom_call.1} parent=1 // pred_fallthru
      _
    // Predicated region
    $region78: #{tpu_custom_call.1} parent=1 // pred_check
      _
    $region79: #{tpu_custom_call.1} parent=1 // pred_check_branch
      %2740 = sbr.rel (0) target = $region81
    $region80: #{tpu_custom_call.1} parent=1 // pred_region
      %2741 = dma.done [#allocation7], 128
    $region81: #{tpu_custom_call.1} parent=1 // pred_fallthru
      _
    %2742 = vsyncpa [#allocation6], 1
    %2743 = vsyncpa [#allocation9], 1
    %2744 = vsyncpa [#allocation12], 1
    %2745 = vsyncpa [#allocation7], 1

</llo_original>
